<compile_context>
chip_gen: v7x
topology: tpu7x:2x2x1
jax: 0.10.0
libtpu: 0.0.40
codegen_flags: <defaults>
</compile_context>

<pallas_src>
import math

import jax
import jax.numpy as jnp
from jax.experimental import pallas as pl
from jax.experimental.pallas import tpu as pltpu

# ----------------------------- hyper-parameters ------------------------------
INPUT_SIZE = 4       # number of input features
D_MODEL = 64
NHEAD = 4
HEAD_DIM = D_MODEL // NHEAD
NUM_LAYERS = 2
DIM_FF = 256
OUTPUT_SIZE = 1
SEQ_LEN = 8
BATCH = 2
EPS = 1e-5
SCALE = 1.0 / math.sqrt(HEAD_DIM)


# --------------------------------- kernel ------------------------------------
def _layernorm(x, gamma, beta):
    mu = jnp.mean(x, axis=-1, keepdims=True)
    var = jnp.mean((x - mu) ** 2, axis=-1, keepdims=True)
    return (x - mu) * jax.lax.rsqrt(var + EPS) * gamma + beta


def transformer_kernel(x_ref, pe_ref, wi_ref, bi_ref,
                       wq_ref, wk_ref, wv_ref, bq_ref, bk_ref, bv_ref,
                       ow_ref, ob_ref, n1w_ref, n1b_ref,
                       l1w_ref, l1b_ref, l2w_ref, l2b_ref,
                       n2w_ref, n2b_ref, o_ref):
    """Whole-batch fused forward pass (single invocation, batch folded into sublanes)."""
    x = x_ref[...]                                               # (B*S, F)

    # input projection + positional encoding (dropout = identity in eval)
    h = jnp.dot(x, wi_ref[...], preferred_element_type=jnp.float32) + bi_ref[...]
    h = h + pe_ref[...]                                          # pe pre-tiled to (B*S, D)

    for l in range(NUM_LAYERS):
        wq, wk, wv = wq_ref[l], wk_ref[l], wv_ref[l]             # lane-aligned (D, D) pieces
        ow = ow_ref[l]

        # ---- Q/K/V: three lane-dense (D, D) matmuls (no 3D-wide slicing) ------
        q = jnp.dot(h, wq, preferred_element_type=jnp.float32) + bq_ref[l]
        k = jnp.dot(h, wk, preferred_element_type=jnp.float32) + bk_ref[l]
        v = jnp.dot(h, wv, preferred_element_type=jnp.float32) + bv_ref[l]

        # ---- scores for every (batch, head) pair, stacked along sublanes ------
        blocks = []
        for b in range(BATCH):
            r0 = b * SEQ_LEN
            for hh in range(NHEAD):
                c0 = hh * HEAD_DIM
                qs = q[r0:r0 + SEQ_LEN, c0:c0 + HEAD_DIM]        # (S, hd)
                ks = k[r0:r0 + SEQ_LEN, c0:c0 + HEAD_DIM]        # (S, hd)
                blocks.append(jax.lax.dot_general(               # qs @ ks.T  -> (S, S)
                    qs, ks, (((1,), (1,)), ((), ())),
                    preferred_element_type=jnp.float32))
        s = jnp.concatenate(blocks, axis=0) * SCALE              # (B*NHEAD*S, S)

        # ---- one batched softmax covering all (batch, head) pairs -------------
        s = s - jnp.max(s, axis=-1, keepdims=True)
        p = jnp.exp(s)
        p = p * pl.reciprocal(jnp.sum(p, axis=-1, keepdims=True), approx=True)

        # ---- P@V with the output projection fused per head (no lane concat) ---
        rows = []
        for b in range(BATCH):
            r0 = b * SEQ_LEN
            acc = jnp.zeros((SEQ_LEN, D_MODEL), jnp.float32)
            for hh in range(NHEAD):
                c0 = hh * HEAD_DIM
                blk = (b * NHEAD + hh) * SEQ_LEN
                ph = p[blk:blk + SEQ_LEN, :]                     # (S, S)
                vh = v[r0:r0 + SEQ_LEN, c0:c0 + HEAD_DIM]        # (S, hd)
                head = jnp.dot(ph, vh, preferred_element_type=jnp.float32)
                acc = acc + jnp.dot(head, ow[c0:c0 + HEAD_DIM, :],
                                    preferred_element_type=jnp.float32)
            rows.append(acc)
        attn = jnp.concatenate(rows, axis=0) + ob_ref[l]         # (B*S, D)

        # ---- add & norm 1 ------------------------------------------------------
        h = _layernorm(h + attn, n1w_ref[l], n1b_ref[l])

        # ---- feed-forward ------------------------------------------------------
        ff = jnp.dot(h, l1w_ref[l], preferred_element_type=jnp.float32) + l1b_ref[l]
        ff = jnp.maximum(ff, 0.0)                                # ReLU
        ff = jnp.dot(ff, l2w_ref[l], preferred_element_type=jnp.float32) + l2b_ref[l]

        # ---- add & norm 2 ------------------------------------------------------
        h = _layernorm(h + ff, n2w_ref[l], n2b_ref[l])

    # last time step of every batch element -> lane-dense (B, D_MODEL) output
    last = jnp.concatenate(
        [h[(b + 1) * SEQ_LEN - 1:(b + 1) * SEQ_LEN, :] for b in range(BATCH)],
        axis=0)
    o_ref[...] = last


# --------------------------------- wrapper ------------------------------------
@jax.jit
def transformer_forward(x, params):
    (pe, wi, bi, wq, wk, wv, bq, bk, bv, ow, ob,
     n1w, n1b, l1w, l1b, l2w, l2b, n2w, n2b, wo, bo) = params

    B, S, F = x.shape
    x_flat = x.reshape(B * S, F)                 # fold batch into sublane axis
    pe_tiled = jnp.tile(pe[:S], (B, 1))          # (B*S, D)

    vmem = pl.BlockSpec(memory_space=pltpu.MemorySpace.VMEM)
    kernel_inputs = (x_flat, pe_tiled, wi, bi, wq, wk, wv, bq, bk, bv,
                     ow, ob, n1w, n1b, l1w, l1b, l2w, l2b, n2w, n2b)

    last_hidden = pl.pallas_call(
        transformer_kernel,
        out_shape=jax.ShapeDtypeStruct((B, D_MODEL), jnp.float32),
        in_specs=[vmem] * len(kernel_inputs),
        out_specs=vmem,
    )(*kernel_inputs)

    # tiny lane-reducing (D_MODEL -> 1) output head kept in the XLA wrapper so the
    # kernel epilogue stays lane-dense (no 1-lane-wide masked store / MXU drain).
    return last_hidden @ wo + bo


# --------------------------- parameter construction ---------------------------
def _xavier(key, shape):
    fan_in, fan_out = shape[-2], shape[-1]
    lim = math.sqrt(6.0 / (fan_in + fan_out))
    return jax.random.uniform(key, shape, jnp.float32, -lim, lim)


def make_params(key):
    ks = jax.random.split(key, 16)
    # positional encoding buffer (first SEQ_LEN rows of the max_len table)
    position = jnp.arange(SEQ_LEN, dtype=jnp.float32)[:, None]
    div_term = jnp.exp(jnp.arange(0, D_MODEL, 2, dtype=jnp.float32)
                       * -(math.log(10000.0) / D_MODEL))
    pe = jnp.zeros((SEQ_LEN, D_MODEL), jnp.float32)
    pe = pe.at[:, 0::2].set(jnp.sin(position * div_term))
    pe = pe.at[:, 1::2].set(jnp.cos(position * div_term))

    wi = _xavier(ks[0], (INPUT_SIZE, D_MODEL))
    bi = jax.random.uniform(ks[1], (1, D_MODEL), jnp.float32, -0.1, 0.1)

    wq = _xavier(ks[2], (NUM_LAYERS, D_MODEL, D_MODEL))
    wk = _xavier(ks[3], (NUM_LAYERS, D_MODEL, D_MODEL))
    wv = _xavier(ks[4], (NUM_LAYERS, D_MODEL, D_MODEL))
    bq = jax.random.uniform(ks[5], (NUM_LAYERS, 1, D_MODEL), jnp.float32, -0.1, 0.1)
    bk = jax.random.uniform(ks[6], (NUM_LAYERS, 1, D_MODEL), jnp.float32, -0.1, 0.1)
    bv = jax.random.uniform(ks[7], (NUM_LAYERS, 1, D_MODEL), jnp.float32, -0.1, 0.1)

    ow = _xavier(ks[8], (NUM_LAYERS, D_MODEL, D_MODEL))
    ob = jax.random.uniform(ks[9], (NUM_LAYERS, 1, D_MODEL), jnp.float32, -0.1, 0.1)

    n1w = jnp.ones((NUM_LAYERS, 1, D_MODEL), jnp.float32)     # LayerNorm defaults
    n1b = jnp.zeros((NUM_LAYERS, 1, D_MODEL), jnp.float32)
    l1w = _xavier(ks[10], (NUM_LAYERS, D_MODEL, DIM_FF))
    l1b = jax.random.uniform(ks[11], (NUM_LAYERS, 1, DIM_FF), jnp.float32, -0.1, 0.1)
    l2w = _xavier(ks[12], (NUM_LAYERS, DIM_FF, D_MODEL))
    l2b = jax.random.uniform(ks[13], (NUM_LAYERS, 1, D_MODEL), jnp.float32, -0.1, 0.1)
    n2w = jnp.ones((NUM_LAYERS, 1, D_MODEL), jnp.float32)
    n2b = jnp.zeros((NUM_LAYERS, 1, D_MODEL), jnp.float32)

    wo = _xavier(ks[14], (D_MODEL, OUTPUT_SIZE))
    bo = jax.random.uniform(ks[15], (1, OUTPUT_SIZE), jnp.float32, -0.1, 0.1)

    return (pe, wi, bi, wq, wk, wv, bq, bk, bv, ow, ob,
            n1w, n1b, l1w, l1b, l2w, l2b, n2w, n2b, wo, bo)


# ----------------------------- pure-JAX reference -----------------------------
def reference_forward(x, params):
    (pe, wi, bi, wq, wk, wv, bq, bk, bv, ow, ob,
     n1w, n1b, l1w, l1b, l2w, l2b, n2w, n2b, wo, bo) = params

    def ln(t, g, bta):
        mu = jnp.mean(t, axis=-1, keepdims=True)
        var = jnp.mean((t - mu) ** 2, axis=-1, keepdims=True)
        return (t - mu) * jax.lax.rsqrt(var + EPS) * g + bta

    h = x @ wi + bi + pe[None]
    for l in range(NUM_LAYERS):
        q = h @ wq[l] + bq[l]
        k = h @ wk[l] + bk[l]
        v = h @ wv[l] + bv[l]

        def sh(t):
            return t.reshape(BATCH, SEQ_LEN, NHEAD, HEAD_DIM).transpose(0, 2, 1, 3)

        qh, kh, vh = sh(q), sh(k), sh(v)
        s = jnp.einsum('bhqd,bhkd->bhqk', qh, kh) / math.sqrt(HEAD_DIM)
        p = jax.nn.softmax(s, axis=-1)
        a = jnp.einsum('bhqk,bhkd->bhqd', p, vh)
        a = a.transpose(0, 2, 1, 3).reshape(BATCH, SEQ_LEN, D_MODEL)
        a = a @ ow[l] + ob[l]
        h = ln(h + a, n1w[l], n1b[l])
        ff = jax.nn.relu(h @ l1w[l] + l1b[l]) @ l2w[l] + l2b[l]
        h = ln(h + ff, n2w[l], n2b[l])
    return h[:, -1, :] @ wo + bo


# ----------------------------------- main -------------------------------------
if __name__ == "__main__":
    key = jax.random.PRNGKey(0)
    k_x, k_p = jax.random.split(key)
    x = jax.random.normal(k_x, (BATCH, SEQ_LEN, INPUT_SIZE), jnp.float32)
    params = make_params(k_p)

    out = transformer_forward(x, params)
    out = jax.block_until_ready(out)

    ref = reference_forward(x, params)
    assert out.shape == (BATCH, OUTPUT_SIZE), out.shape
    assert jnp.allclose(out, ref, rtol=2e-3, atol=2e-3), (out, ref)

    print("KERNEL_OK")
</pallas_src>

<mosaic_0001>
module attributes {stable_mosaic.version = 11 : i64} {
  func.func @transformer_kernel(%arg0: memref<16x4xf32, #tpu.memory_space<vmem>>, %arg1: memref<16x64xf32, #tpu.memory_space<vmem>>, %arg2: memref<4x64xf32, #tpu.memory_space<vmem>>, %arg3: memref<1x64xf32, #tpu.memory_space<vmem>>, %arg4: memref<2x64x64xf32, #tpu.memory_space<vmem>>, %arg5: memref<2x64x64xf32, #tpu.memory_space<vmem>>, %arg6: memref<2x64x64xf32, #tpu.memory_space<vmem>>, %arg7: memref<2x1x64xf32, #tpu.memory_space<vmem>>, %arg8: memref<2x1x64xf32, #tpu.memory_space<vmem>>, %arg9: memref<2x1x64xf32, #tpu.memory_space<vmem>>, %arg10: memref<2x64x64xf32, #tpu.memory_space<vmem>>, %arg11: memref<2x1x64xf32, #tpu.memory_space<vmem>>, %arg12: memref<2x1x64xf32, #tpu.memory_space<vmem>>, %arg13: memref<2x1x64xf32, #tpu.memory_space<vmem>>, %arg14: memref<2x64x256xf32, #tpu.memory_space<vmem>>, %arg15: memref<2x1x256xf32, #tpu.memory_space<vmem>>, %arg16: memref<2x256x64xf32, #tpu.memory_space<vmem>>, %arg17: memref<2x1x64xf32, #tpu.memory_space<vmem>>, %arg18: memref<2x1x64xf32, #tpu.memory_space<vmem>>, %arg19: memref<2x1x64xf32, #tpu.memory_space<vmem>>, %arg20: memref<2x64xf32, #tpu.memory_space<vmem>>) attributes {dimension_semantics = [], scalar_prefetch = 0 : i64, scratch_operands = 0 : i64, tpu.core_type = #tpu.core_type<tc>} {
    %c0 = arith.constant 0 : index
    %c0_0 = arith.constant 0 : index
    %0 = vector.load %arg0[%c0, %c0_0] : memref<16x4xf32, #tpu.memory_space<vmem>>, vector<16x4xf32>
    %c0_1 = arith.constant 0 : index
    %c0_2 = arith.constant 0 : index
    %1 = vector.load %arg2[%c0_1, %c0_2] : memref<4x64xf32, #tpu.memory_space<vmem>>, vector<4x64xf32>
    %cst = arith.constant dense<0.000000e+00> : vector<16x64xf32>
    %2 = tpu.matmul %0, %1, %cst {dimension_numbers = #tpu.dot_dimension_numbers<[1], [0], [0], [1], [0, 0, 1, 1], [], []>} : vector<16x4xf32>, vector<4x64xf32>, vector<16x64xf32> -> vector<16x64xf32>
    %c0_3 = arith.constant 0 : index
    %c0_4 = arith.constant 0 : index
    %3 = vector.load %arg3[%c0_3, %c0_4] : memref<1x64xf32, #tpu.memory_space<vmem>>, vector<1x64xf32>
    %4 = vector.broadcast %3 : vector<1x64xf32> to vector<16x64xf32>
    %5 = arith.addf %2, %4 : vector<16x64xf32>
    %c0_5 = arith.constant 0 : index
    %c0_6 = arith.constant 0 : index
    %6 = vector.load %arg1[%c0_5, %c0_6] : memref<16x64xf32, #tpu.memory_space<vmem>>, vector<16x64xf32>
    %7 = arith.addf %5, %6 : vector<16x64xf32>
    %c0_7 = arith.constant 0 : index
    %c0_8 = arith.constant 0 : index
    %c0_9 = arith.constant 0 : index
    %8 = vector.load %arg4[%c0_7, %c0_8, %c0_9] : memref<2x64x64xf32, #tpu.memory_space<vmem>>, vector<1x64x64xf32>
    %9 = vector.shape_cast %8 : vector<1x64x64xf32> to vector<64x64xf32>
    %c0_10 = arith.constant 0 : index
    %c0_11 = arith.constant 0 : index
    %c0_12 = arith.constant 0 : index
    %10 = vector.load %arg5[%c0_10, %c0_11, %c0_12] : memref<2x64x64xf32, #tpu.memory_space<vmem>>, vector<1x64x64xf32>
    %11 = vector.shape_cast %10 : vector<1x64x64xf32> to vector<64x64xf32>
    %c0_13 = arith.constant 0 : index
    %c0_14 = arith.constant 0 : index
    %c0_15 = arith.constant 0 : index
    %12 = vector.load %arg6[%c0_13, %c0_14, %c0_15] : memref<2x64x64xf32, #tpu.memory_space<vmem>>, vector<1x64x64xf32>
    %13 = vector.shape_cast %12 : vector<1x64x64xf32> to vector<64x64xf32>
    %c0_16 = arith.constant 0 : index
    %c0_17 = arith.constant 0 : index
    %c0_18 = arith.constant 0 : index
    %14 = vector.load %arg10[%c0_16, %c0_17, %c0_18] : memref<2x64x64xf32, #tpu.memory_space<vmem>>, vector<1x64x64xf32>
    %15 = vector.shape_cast %14 : vector<1x64x64xf32> to vector<64x64xf32>
    %cst_19 = arith.constant dense<0.000000e+00> : vector<16x64xf32>
    %16 = tpu.matmul %7, %9, %cst_19 {dimension_numbers = #tpu.dot_dimension_numbers<[1], [0], [0], [1], [0, 0, 1, 1], [], []>} : vector<16x64xf32>, vector<64x64xf32>, vector<16x64xf32> -> vector<16x64xf32>
    %c0_20 = arith.constant 0 : index
    %c0_21 = arith.constant 0 : index
    %c0_22 = arith.constant 0 : index
    %17 = vector.load %arg7[%c0_20, %c0_21, %c0_22] : memref<2x1x64xf32, #tpu.memory_space<vmem>>, vector<1x1x64xf32>
    %18 = vector.shape_cast %17 : vector<1x1x64xf32> to vector<1x64xf32>
    %19 = vector.broadcast %18 : vector<1x64xf32> to vector<16x64xf32>
    %20 = arith.addf %16, %19 : vector<16x64xf32>
    %cst_23 = arith.constant dense<0.000000e+00> : vector<16x64xf32>
    %21 = tpu.matmul %7, %11, %cst_23 {dimension_numbers = #tpu.dot_dimension_numbers<[1], [0], [0], [1], [0, 0, 1, 1], [], []>} : vector<16x64xf32>, vector<64x64xf32>, vector<16x64xf32> -> vector<16x64xf32>
    %c0_24 = arith.constant 0 : index
    %c0_25 = arith.constant 0 : index
    %c0_26 = arith.constant 0 : index
    %22 = vector.load %arg8[%c0_24, %c0_25, %c0_26] : memref<2x1x64xf32, #tpu.memory_space<vmem>>, vector<1x1x64xf32>
    %23 = vector.shape_cast %22 : vector<1x1x64xf32> to vector<1x64xf32>
    %24 = vector.broadcast %23 : vector<1x64xf32> to vector<16x64xf32>
    %25 = arith.addf %21, %24 : vector<16x64xf32>
    %cst_27 = arith.constant dense<0.000000e+00> : vector<16x64xf32>
    %26 = tpu.matmul %7, %13, %cst_27 {dimension_numbers = #tpu.dot_dimension_numbers<[1], [0], [0], [1], [0, 0, 1, 1], [], []>} : vector<16x64xf32>, vector<64x64xf32>, vector<16x64xf32> -> vector<16x64xf32>
    %c0_28 = arith.constant 0 : index
    %c0_29 = arith.constant 0 : index
    %c0_30 = arith.constant 0 : index
    %27 = vector.load %arg9[%c0_28, %c0_29, %c0_30] : memref<2x1x64xf32, #tpu.memory_space<vmem>>, vector<1x1x64xf32>
    %28 = vector.shape_cast %27 : vector<1x1x64xf32> to vector<1x64xf32>
    %29 = vector.broadcast %28 : vector<1x64xf32> to vector<16x64xf32>
    %30 = arith.addf %26, %29 : vector<16x64xf32>
    %31 = vector.extract_strided_slice %20 {offsets = [0, 0], sizes = [8, 16], strides = [1, 1]} : vector<16x64xf32> to vector<8x16xf32>
    %32 = vector.extract_strided_slice %25 {offsets = [0, 0], sizes = [8, 16], strides = [1, 1]} : vector<16x64xf32> to vector<8x16xf32>
    %cst_31 = arith.constant dense<0.000000e+00> : vector<8x8xf32>
    %33 = tpu.matmul %31, %32, %cst_31 {dimension_numbers = #tpu.dot_dimension_numbers<[1], [1], [0], [0], [0, 0, 1, 0], [], []>} : vector<8x16xf32>, vector<8x16xf32>, vector<8x8xf32> -> vector<8x8xf32>
    %34 = vector.extract_strided_slice %20 {offsets = [0, 16], sizes = [8, 16], strides = [1, 1]} : vector<16x64xf32> to vector<8x16xf32>
    %35 = vector.extract_strided_slice %25 {offsets = [0, 16], sizes = [8, 16], strides = [1, 1]} : vector<16x64xf32> to vector<8x16xf32>
    %cst_32 = arith.constant dense<0.000000e+00> : vector<8x8xf32>
    %36 = tpu.matmul %34, %35, %cst_32 {dimension_numbers = #tpu.dot_dimension_numbers<[1], [1], [0], [0], [0, 0, 1, 0], [], []>} : vector<8x16xf32>, vector<8x16xf32>, vector<8x8xf32> -> vector<8x8xf32>
    %37 = vector.extract_strided_slice %20 {offsets = [0, 32], sizes = [8, 16], strides = [1, 1]} : vector<16x64xf32> to vector<8x16xf32>
    %38 = vector.extract_strided_slice %25 {offsets = [0, 32], sizes = [8, 16], strides = [1, 1]} : vector<16x64xf32> to vector<8x16xf32>
    %cst_33 = arith.constant dense<0.000000e+00> : vector<8x8xf32>
    %39 = tpu.matmul %37, %38, %cst_33 {dimension_numbers = #tpu.dot_dimension_numbers<[1], [1], [0], [0], [0, 0, 1, 0], [], []>} : vector<8x16xf32>, vector<8x16xf32>, vector<8x8xf32> -> vector<8x8xf32>
    %40 = vector.extract_strided_slice %20 {offsets = [0, 48], sizes = [8, 16], strides = [1, 1]} : vector<16x64xf32> to vector<8x16xf32>
    %41 = vector.extract_strided_slice %25 {offsets = [0, 48], sizes = [8, 16], strides = [1, 1]} : vector<16x64xf32> to vector<8x16xf32>
    %cst_34 = arith.constant dense<0.000000e+00> : vector<8x8xf32>
    %42 = tpu.matmul %40, %41, %cst_34 {dimension_numbers = #tpu.dot_dimension_numbers<[1], [1], [0], [0], [0, 0, 1, 0], [], []>} : vector<8x16xf32>, vector<8x16xf32>, vector<8x8xf32> -> vector<8x8xf32>
    %43 = vector.extract_strided_slice %20 {offsets = [8, 0], sizes = [8, 16], strides = [1, 1]} : vector<16x64xf32> to vector<8x16xf32>
    %44 = vector.extract_strided_slice %25 {offsets = [8, 0], sizes = [8, 16], strides = [1, 1]} : vector<16x64xf32> to vector<8x16xf32>
    %cst_35 = arith.constant dense<0.000000e+00> : vector<8x8xf32>
    %45 = tpu.matmul %43, %44, %cst_35 {dimension_numbers = #tpu.dot_dimension_numbers<[1], [1], [0], [0], [0, 0, 1, 0], [], []>} : vector<8x16xf32>, vector<8x16xf32>, vector<8x8xf32> -> vector<8x8xf32>
    %46 = vector.extract_strided_slice %20 {offsets = [8, 16], sizes = [8, 16], strides = [1, 1]} : vector<16x64xf32> to vector<8x16xf32>
    %47 = vector.extract_strided_slice %25 {offsets = [8, 16], sizes = [8, 16], strides = [1, 1]} : vector<16x64xf32> to vector<8x16xf32>
    %cst_36 = arith.constant dense<0.000000e+00> : vector<8x8xf32>
    %48 = tpu.matmul %46, %47, %cst_36 {dimension_numbers = #tpu.dot_dimension_numbers<[1], [1], [0], [0], [0, 0, 1, 0], [], []>} : vector<8x16xf32>, vector<8x16xf32>, vector<8x8xf32> -> vector<8x8xf32>
    %49 = vector.extract_strided_slice %20 {offsets = [8, 32], sizes = [8, 16], strides = [1, 1]} : vector<16x64xf32> to vector<8x16xf32>
    %50 = vector.extract_strided_slice %25 {offsets = [8, 32], sizes = [8, 16], strides = [1, 1]} : vector<16x64xf32> to vector<8x16xf32>
    %cst_37 = arith.constant dense<0.000000e+00> : vector<8x8xf32>
    %51 = tpu.matmul %49, %50, %cst_37 {dimension_numbers = #tpu.dot_dimension_numbers<[1], [1], [0], [0], [0, 0, 1, 0], [], []>} : vector<8x16xf32>, vector<8x16xf32>, vector<8x8xf32> -> vector<8x8xf32>
    %52 = vector.extract_strided_slice %20 {offsets = [8, 48], sizes = [8, 16], strides = [1, 1]} : vector<16x64xf32> to vector<8x16xf32>
    %53 = vector.extract_strided_slice %25 {offsets = [8, 48], sizes = [8, 16], strides = [1, 1]} : vector<16x64xf32> to vector<8x16xf32>
    %cst_38 = arith.constant dense<0.000000e+00> : vector<8x8xf32>
    %54 = tpu.matmul %52, %53, %cst_38 {dimension_numbers = #tpu.dot_dimension_numbers<[1], [1], [0], [0], [0, 0, 1, 0], [], []>} : vector<8x16xf32>, vector<8x16xf32>, vector<8x8xf32> -> vector<8x8xf32>
    %55 = tpu.concatenate %33, %36, %39, %42, %45, %48, %51, %54 in 0 : vector<8x8xf32>, vector<8x8xf32>, vector<8x8xf32>, vector<8x8xf32>, vector<8x8xf32>, vector<8x8xf32>, vector<8x8xf32>, vector<8x8xf32> -> vector<64x8xf32>
    %cst_39 = arith.constant 2.500000e-01 : f32
    %56 = vector.broadcast %cst_39 : f32 to vector<64x8xf32>
    %57 = arith.mulf %55, %56 : vector<64x8xf32>
    %cst_40 = arith.constant dense<0xFF800000> : vector<64xf32>
    %58 = vector.multi_reduction <maximumf>, %57, %cst_40 [1] : vector<64x8xf32> to vector<64xf32>
    %59 = vector.shape_cast %58 : vector<64xf32> to vector<64x1xf32>
    %60 = vector.broadcast %59 : vector<64x1xf32> to vector<64x8xf32>
    %61 = arith.subf %57, %60 : vector<64x8xf32>
    %62 = math.exp %61 : vector<64x8xf32>
    %cst_41 = arith.constant dense<0.000000e+00> : vector<64xf32>
    %63 = vector.multi_reduction <add>, %62, %cst_41 [1] : vector<64x8xf32> to vector<64xf32>
    %64 = vector.shape_cast %63 : vector<64xf32> to vector<64x1xf32>
    %65 = tpu.reciprocal %64 {approx = true} : vector<64x1xf32> -> vector<64x1xf32>
    %66 = vector.broadcast %65 : vector<64x1xf32> to vector<64x8xf32>
    %67 = arith.mulf %62, %66 : vector<64x8xf32>
    %cst_42 = arith.constant 0.000000e+00 : f32
    %68 = vector.broadcast %cst_42 : f32 to vector<8x64xf32>
    %69 = vector.extract_strided_slice %67 {offsets = [0, 0], sizes = [8, 8], strides = [1, 1]} : vector<64x8xf32> to vector<8x8xf32>
    %70 = vector.extract_strided_slice %30 {offsets = [0, 0], sizes = [8, 16], strides = [1, 1]} : vector<16x64xf32> to vector<8x16xf32>
    %cst_43 = arith.constant dense<0.000000e+00> : vector<8x16xf32>
    %71 = tpu.matmul %69, %70, %cst_43 {dimension_numbers = #tpu.dot_dimension_numbers<[1], [0], [0], [1], [0, 0, 1, 1], [], []>} : vector<8x8xf32>, vector<8x16xf32>, vector<8x16xf32> -> vector<8x16xf32>
    %72 = vector.extract_strided_slice %15 {offsets = [0, 0], sizes = [16, 64], strides = [1, 1]} : vector<64x64xf32> to vector<16x64xf32>
    %cst_44 = arith.constant dense<0.000000e+00> : vector<8x64xf32>
    %73 = tpu.matmul %71, %72, %cst_44 {dimension_numbers = #tpu.dot_dimension_numbers<[1], [0], [0], [1], [0, 0, 1, 1], [], []>} : vector<8x16xf32>, vector<16x64xf32>, vector<8x64xf32> -> vector<8x64xf32>
    %74 = arith.addf %68, %73 : vector<8x64xf32>
    %75 = vector.extract_strided_slice %67 {offsets = [8, 0], sizes = [8, 8], strides = [1, 1]} : vector<64x8xf32> to vector<8x8xf32>
    %76 = vector.extract_strided_slice %30 {offsets = [0, 16], sizes = [8, 16], strides = [1, 1]} : vector<16x64xf32> to vector<8x16xf32>
    %cst_45 = arith.constant dense<0.000000e+00> : vector<8x16xf32>
    %77 = tpu.matmul %75, %76, %cst_45 {dimension_numbers = #tpu.dot_dimension_numbers<[1], [0], [0], [1], [0, 0, 1, 1], [], []>} : vector<8x8xf32>, vector<8x16xf32>, vector<8x16xf32> -> vector<8x16xf32>
    %78 = vector.extract_strided_slice %15 {offsets = [16, 0], sizes = [16, 64], strides = [1, 1]} : vector<64x64xf32> to vector<16x64xf32>
    %cst_46 = arith.constant dense<0.000000e+00> : vector<8x64xf32>
    %79 = tpu.matmul %77, %78, %cst_46 {dimension_numbers = #tpu.dot_dimension_numbers<[1], [0], [0], [1], [0, 0, 1, 1], [], []>} : vector<8x16xf32>, vector<16x64xf32>, vector<8x64xf32> -> vector<8x64xf32>
    %80 = arith.addf %74, %79 : vector<8x64xf32>
    %81 = vector.extract_strided_slice %67 {offsets = [16, 0], sizes = [8, 8], strides = [1, 1]} : vector<64x8xf32> to vector<8x8xf32>
    %82 = vector.extract_strided_slice %30 {offsets = [0, 32], sizes = [8, 16], strides = [1, 1]} : vector<16x64xf32> to vector<8x16xf32>
    %cst_47 = arith.constant dense<0.000000e+00> : vector<8x16xf32>
    %83 = tpu.matmul %81, %82, %cst_47 {dimension_numbers = #tpu.dot_dimension_numbers<[1], [0], [0], [1], [0, 0, 1, 1], [], []>} : vector<8x8xf32>, vector<8x16xf32>, vector<8x16xf32> -> vector<8x16xf32>
    %84 = vector.extract_strided_slice %15 {offsets = [32, 0], sizes = [16, 64], strides = [1, 1]} : vector<64x64xf32> to vector<16x64xf32>
    %cst_48 = arith.constant dense<0.000000e+00> : vector<8x64xf32>
    %85 = tpu.matmul %83, %84, %cst_48 {dimension_numbers = #tpu.dot_dimension_numbers<[1], [0], [0], [1], [0, 0, 1, 1], [], []>} : vector<8x16xf32>, vector<16x64xf32>, vector<8x64xf32> -> vector<8x64xf32>
    %86 = arith.addf %80, %85 : vector<8x64xf32>
    %87 = vector.extract_strided_slice %67 {offsets = [24, 0], sizes = [8, 8], strides = [1, 1]} : vector<64x8xf32> to vector<8x8xf32>
    %88 = vector.extract_strided_slice %30 {offsets = [0, 48], sizes = [8, 16], strides = [1, 1]} : vector<16x64xf32> to vector<8x16xf32>
    %cst_49 = arith.constant dense<0.000000e+00> : vector<8x16xf32>
    %89 = tpu.matmul %87, %88, %cst_49 {dimension_numbers = #tpu.dot_dimension_numbers<[1], [0], [0], [1], [0, 0, 1, 1], [], []>} : vector<8x8xf32>, vector<8x16xf32>, vector<8x16xf32> -> vector<8x16xf32>
    %90 = vector.extract_strided_slice %15 {offsets = [48, 0], sizes = [16, 64], strides = [1, 1]} : vector<64x64xf32> to vector<16x64xf32>
    %cst_50 = arith.constant dense<0.000000e+00> : vector<8x64xf32>
    %91 = tpu.matmul %89, %90, %cst_50 {dimension_numbers = #tpu.dot_dimension_numbers<[1], [0], [0], [1], [0, 0, 1, 1], [], []>} : vector<8x16xf32>, vector<16x64xf32>, vector<8x64xf32> -> vector<8x64xf32>
    %92 = arith.addf %86, %91 : vector<8x64xf32>
    %cst_51 = arith.constant 0.000000e+00 : f32
    %93 = vector.broadcast %cst_51 : f32 to vector<8x64xf32>
    %94 = vector.extract_strided_slice %67 {offsets = [32, 0], sizes = [8, 8], strides = [1, 1]} : vector<64x8xf32> to vector<8x8xf32>
    %95 = vector.extract_strided_slice %30 {offsets = [8, 0], sizes = [8, 16], strides = [1, 1]} : vector<16x64xf32> to vector<8x16xf32>
    %cst_52 = arith.constant dense<0.000000e+00> : vector<8x16xf32>
    %96 = tpu.matmul %94, %95, %cst_52 {dimension_numbers = #tpu.dot_dimension_numbers<[1], [0], [0], [1], [0, 0, 1, 1], [], []>} : vector<8x8xf32>, vector<8x16xf32>, vector<8x16xf32> -> vector<8x16xf32>
    %97 = vector.extract_strided_slice %15 {offsets = [0, 0], sizes = [16, 64], strides = [1, 1]} : vector<64x64xf32> to vector<16x64xf32>
    %cst_53 = arith.constant dense<0.000000e+00> : vector<8x64xf32>
    %98 = tpu.matmul %96, %97, %cst_53 {dimension_numbers = #tpu.dot_dimension_numbers<[1], [0], [0], [1], [0, 0, 1, 1], [], []>} : vector<8x16xf32>, vector<16x64xf32>, vector<8x64xf32> -> vector<8x64xf32>
    %99 = arith.addf %93, %98 : vector<8x64xf32>
    %100 = vector.extract_strided_slice %67 {offsets = [40, 0], sizes = [8, 8], strides = [1, 1]} : vector<64x8xf32> to vector<8x8xf32>
    %101 = vector.extract_strided_slice %30 {offsets = [8, 16], sizes = [8, 16], strides = [1, 1]} : vector<16x64xf32> to vector<8x16xf32>
    %cst_54 = arith.constant dense<0.000000e+00> : vector<8x16xf32>
    %102 = tpu.matmul %100, %101, %cst_54 {dimension_numbers = #tpu.dot_dimension_numbers<[1], [0], [0], [1], [0, 0, 1, 1], [], []>} : vector<8x8xf32>, vector<8x16xf32>, vector<8x16xf32> -> vector<8x16xf32>
    %103 = vector.extract_strided_slice %15 {offsets = [16, 0], sizes = [16, 64], strides = [1, 1]} : vector<64x64xf32> to vector<16x64xf32>
    %cst_55 = arith.constant dense<0.000000e+00> : vector<8x64xf32>
    %104 = tpu.matmul %102, %103, %cst_55 {dimension_numbers = #tpu.dot_dimension_numbers<[1], [0], [0], [1], [0, 0, 1, 1], [], []>} : vector<8x16xf32>, vector<16x64xf32>, vector<8x64xf32> -> vector<8x64xf32>
    %105 = arith.addf %99, %104 : vector<8x64xf32>
    %106 = vector.extract_strided_slice %67 {offsets = [48, 0], sizes = [8, 8], strides = [1, 1]} : vector<64x8xf32> to vector<8x8xf32>
    %107 = vector.extract_strided_slice %30 {offsets = [8, 32], sizes = [8, 16], strides = [1, 1]} : vector<16x64xf32> to vector<8x16xf32>
    %cst_56 = arith.constant dense<0.000000e+00> : vector<8x16xf32>
    %108 = tpu.matmul %106, %107, %cst_56 {dimension_numbers = #tpu.dot_dimension_numbers<[1], [0], [0], [1], [0, 0, 1, 1], [], []>} : vector<8x8xf32>, vector<8x16xf32>, vector<8x16xf32> -> vector<8x16xf32>
    %109 = vector.extract_strided_slice %15 {offsets = [32, 0], sizes = [16, 64], strides = [1, 1]} : vector<64x64xf32> to vector<16x64xf32>
    %cst_57 = arith.constant dense<0.000000e+00> : vector<8x64xf32>
    %110 = tpu.matmul %108, %109, %cst_57 {dimension_numbers = #tpu.dot_dimension_numbers<[1], [0], [0], [1], [0, 0, 1, 1], [], []>} : vector<8x16xf32>, vector<16x64xf32>, vector<8x64xf32> -> vector<8x64xf32>
    %111 = arith.addf %105, %110 : vector<8x64xf32>
    %112 = vector.extract_strided_slice %67 {offsets = [56, 0], sizes = [8, 8], strides = [1, 1]} : vector<64x8xf32> to vector<8x8xf32>
    %113 = vector.extract_strided_slice %30 {offsets = [8, 48], sizes = [8, 16], strides = [1, 1]} : vector<16x64xf32> to vector<8x16xf32>
    %cst_58 = arith.constant dense<0.000000e+00> : vector<8x16xf32>
    %114 = tpu.matmul %112, %113, %cst_58 {dimension_numbers = #tpu.dot_dimension_numbers<[1], [0], [0], [1], [0, 0, 1, 1], [], []>} : vector<8x8xf32>, vector<8x16xf32>, vector<8x16xf32> -> vector<8x16xf32>
    %115 = vector.extract_strided_slice %15 {offsets = [48, 0], sizes = [16, 64], strides = [1, 1]} : vector<64x64xf32> to vector<16x64xf32>
    %cst_59 = arith.constant dense<0.000000e+00> : vector<8x64xf32>
    %116 = tpu.matmul %114, %115, %cst_59 {dimension_numbers = #tpu.dot_dimension_numbers<[1], [0], [0], [1], [0, 0, 1, 1], [], []>} : vector<8x16xf32>, vector<16x64xf32>, vector<8x64xf32> -> vector<8x64xf32>
    %117 = arith.addf %111, %116 : vector<8x64xf32>
    %118 = tpu.concatenate %92, %117 in 0 : vector<8x64xf32>, vector<8x64xf32> -> vector<16x64xf32>
    %c0_60 = arith.constant 0 : index
    %c0_61 = arith.constant 0 : index
    %c0_62 = arith.constant 0 : index
    %119 = vector.load %arg11[%c0_60, %c0_61, %c0_62] : memref<2x1x64xf32, #tpu.memory_space<vmem>>, vector<1x1x64xf32>
    %120 = vector.shape_cast %119 : vector<1x1x64xf32> to vector<1x64xf32>
    %121 = vector.broadcast %120 : vector<1x64xf32> to vector<16x64xf32>
    %122 = arith.addf %118, %121 : vector<16x64xf32>
    %123 = arith.addf %7, %122 : vector<16x64xf32>
    %c0_63 = arith.constant 0 : index
    %c0_64 = arith.constant 0 : index
    %c0_65 = arith.constant 0 : index
    %124 = vector.load %arg12[%c0_63, %c0_64, %c0_65] : memref<2x1x64xf32, #tpu.memory_space<vmem>>, vector<1x1x64xf32>
    %125 = vector.shape_cast %124 : vector<1x1x64xf32> to vector<1x64xf32>
    %c0_66 = arith.constant 0 : index
    %c0_67 = arith.constant 0 : index
    %c0_68 = arith.constant 0 : index
    %126 = vector.load %arg13[%c0_66, %c0_67, %c0_68] : memref<2x1x64xf32, #tpu.memory_space<vmem>>, vector<1x1x64xf32>
    %127 = vector.shape_cast %126 : vector<1x1x64xf32> to vector<1x64xf32>
    %cst_69 = arith.constant dense<0.000000e+00> : vector<16xf32>
    %128 = vector.multi_reduction <add>, %123, %cst_69 [1] : vector<16x64xf32> to vector<16xf32>
    %129 = vector.shape_cast %128 : vector<16xf32> to vector<16x1xf32>
    %cst_70 = arith.constant 6.400000e+01 : f32
    %130 = vector.broadcast %cst_70 : f32 to vector<16x1xf32>
    %131 = arith.divf %129, %130 : vector<16x1xf32>
    %132 = vector.broadcast %131 : vector<16x1xf32> to vector<16x64xf32>
    %133 = arith.subf %123, %132 : vector<16x64xf32>
    %134 = arith.mulf %133, %133 : vector<16x64xf32>
    %cst_71 = arith.constant dense<0.000000e+00> : vector<16xf32>
    %135 = vector.multi_reduction <add>, %134, %cst_71 [1] : vector<16x64xf32> to vector<16xf32>
    %136 = vector.shape_cast %135 : vector<16xf32> to vector<16x1xf32>
    %cst_72 = arith.constant 6.400000e+01 : f32
    %137 = vector.broadcast %cst_72 : f32 to vector<16x1xf32>
    %138 = arith.divf %136, %137 : vector<16x1xf32>
    %139 = vector.broadcast %131 : vector<16x1xf32> to vector<16x64xf32>
    %140 = arith.subf %123, %139 : vector<16x64xf32>
    %cst_73 = arith.constant 9.99999974E-6 : f32
    %141 = vector.broadcast %cst_73 : f32 to vector<16x1xf32>
    %142 = arith.addf %138, %141 : vector<16x1xf32>
    %143 = math.rsqrt %142 : vector<16x1xf32>
    %144 = vector.broadcast %143 : vector<16x1xf32> to vector<16x64xf32>
    %145 = arith.mulf %140, %144 : vector<16x64xf32>
    %146 = vector.broadcast %125 : vector<1x64xf32> to vector<16x64xf32>
    %147 = arith.mulf %145, %146 : vector<16x64xf32>
    %148 = vector.broadcast %127 : vector<1x64xf32> to vector<16x64xf32>
    %149 = arith.addf %147, %148 : vector<16x64xf32>
    %c0_74 = arith.constant 0 : index
    %c0_75 = arith.constant 0 : index
    %c0_76 = arith.constant 0 : index
    %150 = vector.load %arg14[%c0_74, %c0_75, %c0_76] : memref<2x64x256xf32, #tpu.memory_space<vmem>>, vector<1x64x256xf32>
    %151 = vector.shape_cast %150 : vector<1x64x256xf32> to vector<64x256xf32>
    %cst_77 = arith.constant dense<0.000000e+00> : vector<16x256xf32>
    %152 = tpu.matmul %149, %151, %cst_77 {dimension_numbers = #tpu.dot_dimension_numbers<[1], [0], [0], [1], [0, 0, 1, 1], [], []>} : vector<16x64xf32>, vector<64x256xf32>, vector<16x256xf32> -> vector<16x256xf32>
    %c0_78 = arith.constant 0 : index
    %c0_79 = arith.constant 0 : index
    %c0_80 = arith.constant 0 : index
    %153 = vector.load %arg15[%c0_78, %c0_79, %c0_80] : memref<2x1x256xf32, #tpu.memory_space<vmem>>, vector<1x1x256xf32>
    %154 = vector.shape_cast %153 : vector<1x1x256xf32> to vector<1x256xf32>
    %155 = vector.broadcast %154 : vector<1x256xf32> to vector<16x256xf32>
    %156 = arith.addf %152, %155 : vector<16x256xf32>
    %cst_81 = arith.constant 0.000000e+00 : f32
    %157 = vector.broadcast %cst_81 : f32 to vector<16x256xf32>
    %158 = arith.maximumf %156, %157 : vector<16x256xf32>
    %c0_82 = arith.constant 0 : index
    %c0_83 = arith.constant 0 : index
    %c0_84 = arith.constant 0 : index
    %159 = vector.load %arg16[%c0_82, %c0_83, %c0_84] : memref<2x256x64xf32, #tpu.memory_space<vmem>>, vector<1x256x64xf32>
    %160 = vector.shape_cast %159 : vector<1x256x64xf32> to vector<256x64xf32>
    %cst_85 = arith.constant dense<0.000000e+00> : vector<16x64xf32>
    %161 = tpu.matmul %158, %160, %cst_85 {dimension_numbers = #tpu.dot_dimension_numbers<[1], [0], [0], [1], [0, 0, 1, 1], [], []>} : vector<16x256xf32>, vector<256x64xf32>, vector<16x64xf32> -> vector<16x64xf32>
    %c0_86 = arith.constant 0 : index
    %c0_87 = arith.constant 0 : index
    %c0_88 = arith.constant 0 : index
    %162 = vector.load %arg17[%c0_86, %c0_87, %c0_88] : memref<2x1x64xf32, #tpu.memory_space<vmem>>, vector<1x1x64xf32>
    %163 = vector.shape_cast %162 : vector<1x1x64xf32> to vector<1x64xf32>
    %164 = vector.broadcast %163 : vector<1x64xf32> to vector<16x64xf32>
    %165 = arith.addf %161, %164 : vector<16x64xf32>
    %166 = arith.addf %149, %165 : vector<16x64xf32>
    %c0_89 = arith.constant 0 : index
    %c0_90 = arith.constant 0 : index
    %c0_91 = arith.constant 0 : index
    %167 = vector.load %arg18[%c0_89, %c0_90, %c0_91] : memref<2x1x64xf32, #tpu.memory_space<vmem>>, vector<1x1x64xf32>
    %168 = vector.shape_cast %167 : vector<1x1x64xf32> to vector<1x64xf32>
    %c0_92 = arith.constant 0 : index
    %c0_93 = arith.constant 0 : index
    %c0_94 = arith.constant 0 : index
    %169 = vector.load %arg19[%c0_92, %c0_93, %c0_94] : memref<2x1x64xf32, #tpu.memory_space<vmem>>, vector<1x1x64xf32>
    %170 = vector.shape_cast %169 : vector<1x1x64xf32> to vector<1x64xf32>
    %cst_95 = arith.constant dense<0.000000e+00> : vector<16xf32>
    %171 = vector.multi_reduction <add>, %166, %cst_95 [1] : vector<16x64xf32> to vector<16xf32>
    %172 = vector.shape_cast %171 : vector<16xf32> to vector<16x1xf32>
    %cst_96 = arith.constant 6.400000e+01 : f32
    %173 = vector.broadcast %cst_96 : f32 to vector<16x1xf32>
    %174 = arith.divf %172, %173 : vector<16x1xf32>
    %175 = vector.broadcast %174 : vector<16x1xf32> to vector<16x64xf32>
    %176 = arith.subf %166, %175 : vector<16x64xf32>
    %177 = arith.mulf %176, %176 : vector<16x64xf32>
    %cst_97 = arith.constant dense<0.000000e+00> : vector<16xf32>
    %178 = vector.multi_reduction <add>, %177, %cst_97 [1] : vector<16x64xf32> to vector<16xf32>
    %179 = vector.shape_cast %178 : vector<16xf32> to vector<16x1xf32>
    %cst_98 = arith.constant 6.400000e+01 : f32
    %180 = vector.broadcast %cst_98 : f32 to vector<16x1xf32>
    %181 = arith.divf %179, %180 : vector<16x1xf32>
    %182 = vector.broadcast %174 : vector<16x1xf32> to vector<16x64xf32>
    %183 = arith.subf %166, %182 : vector<16x64xf32>
    %cst_99 = arith.constant 9.99999974E-6 : f32
    %184 = vector.broadcast %cst_99 : f32 to vector<16x1xf32>
    %185 = arith.addf %181, %184 : vector<16x1xf32>
    %186 = math.rsqrt %185 : vector<16x1xf32>
    %187 = vector.broadcast %186 : vector<16x1xf32> to vector<16x64xf32>
    %188 = arith.mulf %183, %187 : vector<16x64xf32>
    %189 = vector.broadcast %168 : vector<1x64xf32> to vector<16x64xf32>
    %190 = arith.mulf %188, %189 : vector<16x64xf32>
    %191 = vector.broadcast %170 : vector<1x64xf32> to vector<16x64xf32>
    %192 = arith.addf %190, %191 : vector<16x64xf32>
    %c1 = arith.constant 1 : index
    %c0_100 = arith.constant 0 : index
    %c0_101 = arith.constant 0 : index
    %193 = vector.load %arg4[%c1, %c0_100, %c0_101] : memref<2x64x64xf32, #tpu.memory_space<vmem>>, vector<1x64x64xf32>
    %194 = vector.shape_cast %193 : vector<1x64x64xf32> to vector<64x64xf32>
    %c1_102 = arith.constant 1 : index
    %c0_103 = arith.constant 0 : index
    %c0_104 = arith.constant 0 : index
    %195 = vector.load %arg5[%c1_102, %c0_103, %c0_104] : memref<2x64x64xf32, #tpu.memory_space<vmem>>, vector<1x64x64xf32>
    %196 = vector.shape_cast %195 : vector<1x64x64xf32> to vector<64x64xf32>
    %c1_105 = arith.constant 1 : index
    %c0_106 = arith.constant 0 : index
    %c0_107 = arith.constant 0 : index
    %197 = vector.load %arg6[%c1_105, %c0_106, %c0_107] : memref<2x64x64xf32, #tpu.memory_space<vmem>>, vector<1x64x64xf32>
    %198 = vector.shape_cast %197 : vector<1x64x64xf32> to vector<64x64xf32>
    %c1_108 = arith.constant 1 : index
    %c0_109 = arith.constant 0 : index
    %c0_110 = arith.constant 0 : index
    %199 = vector.load %arg10[%c1_108, %c0_109, %c0_110] : memref<2x64x64xf32, #tpu.memory_space<vmem>>, vector<1x64x64xf32>
    %200 = vector.shape_cast %199 : vector<1x64x64xf32> to vector<64x64xf32>
    %cst_111 = arith.constant dense<0.000000e+00> : vector<16x64xf32>
    %201 = tpu.matmul %192, %194, %cst_111 {dimension_numbers = #tpu.dot_dimension_numbers<[1], [0], [0], [1], [0, 0, 1, 1], [], []>} : vector<16x64xf32>, vector<64x64xf32>, vector<16x64xf32> -> vector<16x64xf32>
    %c1_112 = arith.constant 1 : index
    %c0_113 = arith.constant 0 : index
    %c0_114 = arith.constant 0 : index
    %202 = vector.load %arg7[%c1_112, %c0_113, %c0_114] : memref<2x1x64xf32, #tpu.memory_space<vmem>>, vector<1x1x64xf32>
    %203 = vector.shape_cast %202 : vector<1x1x64xf32> to vector<1x64xf32>
    %204 = vector.broadcast %203 : vector<1x64xf32> to vector<16x64xf32>
    %205 = arith.addf %201, %204 : vector<16x64xf32>
    %cst_115 = arith.constant dense<0.000000e+00> : vector<16x64xf32>
    %206 = tpu.matmul %192, %196, %cst_115 {dimension_numbers = #tpu.dot_dimension_numbers<[1], [0], [0], [1], [0, 0, 1, 1], [], []>} : vector<16x64xf32>, vector<64x64xf32>, vector<16x64xf32> -> vector<16x64xf32>
    %c1_116 = arith.constant 1 : index
    %c0_117 = arith.constant 0 : index
    %c0_118 = arith.constant 0 : index
    %207 = vector.load %arg8[%c1_116, %c0_117, %c0_118] : memref<2x1x64xf32, #tpu.memory_space<vmem>>, vector<1x1x64xf32>
    %208 = vector.shape_cast %207 : vector<1x1x64xf32> to vector<1x64xf32>
    %209 = vector.broadcast %208 : vector<1x64xf32> to vector<16x64xf32>
    %210 = arith.addf %206, %209 : vector<16x64xf32>
    %cst_119 = arith.constant dense<0.000000e+00> : vector<16x64xf32>
    %211 = tpu.matmul %192, %198, %cst_119 {dimension_numbers = #tpu.dot_dimension_numbers<[1], [0], [0], [1], [0, 0, 1, 1], [], []>} : vector<16x64xf32>, vector<64x64xf32>, vector<16x64xf32> -> vector<16x64xf32>
    %c1_120 = arith.constant 1 : index
    %c0_121 = arith.constant 0 : index
    %c0_122 = arith.constant 0 : index
    %212 = vector.load %arg9[%c1_120, %c0_121, %c0_122] : memref<2x1x64xf32, #tpu.memory_space<vmem>>, vector<1x1x64xf32>
    %213 = vector.shape_cast %212 : vector<1x1x64xf32> to vector<1x64xf32>
    %214 = vector.broadcast %213 : vector<1x64xf32> to vector<16x64xf32>
    %215 = arith.addf %211, %214 : vector<16x64xf32>
    %216 = vector.extract_strided_slice %205 {offsets = [0, 0], sizes = [8, 16], strides = [1, 1]} : vector<16x64xf32> to vector<8x16xf32>
    %217 = vector.extract_strided_slice %210 {offsets = [0, 0], sizes = [8, 16], strides = [1, 1]} : vector<16x64xf32> to vector<8x16xf32>
    %cst_123 = arith.constant dense<0.000000e+00> : vector<8x8xf32>
    %218 = tpu.matmul %216, %217, %cst_123 {dimension_numbers = #tpu.dot_dimension_numbers<[1], [1], [0], [0], [0, 0, 1, 0], [], []>} : vector<8x16xf32>, vector<8x16xf32>, vector<8x8xf32> -> vector<8x8xf32>
    %219 = vector.extract_strided_slice %205 {offsets = [0, 16], sizes = [8, 16], strides = [1, 1]} : vector<16x64xf32> to vector<8x16xf32>
    %220 = vector.extract_strided_slice %210 {offsets = [0, 16], sizes = [8, 16], strides = [1, 1]} : vector<16x64xf32> to vector<8x16xf32>
    %cst_124 = arith.constant dense<0.000000e+00> : vector<8x8xf32>
    %221 = tpu.matmul %219, %220, %cst_124 {dimension_numbers = #tpu.dot_dimension_numbers<[1], [1], [0], [0], [0, 0, 1, 0], [], []>} : vector<8x16xf32>, vector<8x16xf32>, vector<8x8xf32> -> vector<8x8xf32>
    %222 = vector.extract_strided_slice %205 {offsets = [0, 32], sizes = [8, 16], strides = [1, 1]} : vector<16x64xf32> to vector<8x16xf32>
    %223 = vector.extract_strided_slice %210 {offsets = [0, 32], sizes = [8, 16], strides = [1, 1]} : vector<16x64xf32> to vector<8x16xf32>
    %cst_125 = arith.constant dense<0.000000e+00> : vector<8x8xf32>
    %224 = tpu.matmul %222, %223, %cst_125 {dimension_numbers = #tpu.dot_dimension_numbers<[1], [1], [0], [0], [0, 0, 1, 0], [], []>} : vector<8x16xf32>, vector<8x16xf32>, vector<8x8xf32> -> vector<8x8xf32>
    %225 = vector.extract_strided_slice %205 {offsets = [0, 48], sizes = [8, 16], strides = [1, 1]} : vector<16x64xf32> to vector<8x16xf32>
    %226 = vector.extract_strided_slice %210 {offsets = [0, 48], sizes = [8, 16], strides = [1, 1]} : vector<16x64xf32> to vector<8x16xf32>
    %cst_126 = arith.constant dense<0.000000e+00> : vector<8x8xf32>
    %227 = tpu.matmul %225, %226, %cst_126 {dimension_numbers = #tpu.dot_dimension_numbers<[1], [1], [0], [0], [0, 0, 1, 0], [], []>} : vector<8x16xf32>, vector<8x16xf32>, vector<8x8xf32> -> vector<8x8xf32>
    %228 = vector.extract_strided_slice %205 {offsets = [8, 0], sizes = [8, 16], strides = [1, 1]} : vector<16x64xf32> to vector<8x16xf32>
    %229 = vector.extract_strided_slice %210 {offsets = [8, 0], sizes = [8, 16], strides = [1, 1]} : vector<16x64xf32> to vector<8x16xf32>
    %cst_127 = arith.constant dense<0.000000e+00> : vector<8x8xf32>
    %230 = tpu.matmul %228, %229, %cst_127 {dimension_numbers = #tpu.dot_dimension_numbers<[1], [1], [0], [0], [0, 0, 1, 0], [], []>} : vector<8x16xf32>, vector<8x16xf32>, vector<8x8xf32> -> vector<8x8xf32>
    %231 = vector.extract_strided_slice %205 {offsets = [8, 16], sizes = [8, 16], strides = [1, 1]} : vector<16x64xf32> to vector<8x16xf32>
    %232 = vector.extract_strided_slice %210 {offsets = [8, 16], sizes = [8, 16], strides = [1, 1]} : vector<16x64xf32> to vector<8x16xf32>
    %cst_128 = arith.constant dense<0.000000e+00> : vector<8x8xf32>
    %233 = tpu.matmul %231, %232, %cst_128 {dimension_numbers = #tpu.dot_dimension_numbers<[1], [1], [0], [0], [0, 0, 1, 0], [], []>} : vector<8x16xf32>, vector<8x16xf32>, vector<8x8xf32> -> vector<8x8xf32>
    %234 = vector.extract_strided_slice %205 {offsets = [8, 32], sizes = [8, 16], strides = [1, 1]} : vector<16x64xf32> to vector<8x16xf32>
    %235 = vector.extract_strided_slice %210 {offsets = [8, 32], sizes = [8, 16], strides = [1, 1]} : vector<16x64xf32> to vector<8x16xf32>
    %cst_129 = arith.constant dense<0.000000e+00> : vector<8x8xf32>
    %236 = tpu.matmul %234, %235, %cst_129 {dimension_numbers = #tpu.dot_dimension_numbers<[1], [1], [0], [0], [0, 0, 1, 0], [], []>} : vector<8x16xf32>, vector<8x16xf32>, vector<8x8xf32> -> vector<8x8xf32>
    %237 = vector.extract_strided_slice %205 {offsets = [8, 48], sizes = [8, 16], strides = [1, 1]} : vector<16x64xf32> to vector<8x16xf32>
    %238 = vector.extract_strided_slice %210 {offsets = [8, 48], sizes = [8, 16], strides = [1, 1]} : vector<16x64xf32> to vector<8x16xf32>
    %cst_130 = arith.constant dense<0.000000e+00> : vector<8x8xf32>
    %239 = tpu.matmul %237, %238, %cst_130 {dimension_numbers = #tpu.dot_dimension_numbers<[1], [1], [0], [0], [0, 0, 1, 0], [], []>} : vector<8x16xf32>, vector<8x16xf32>, vector<8x8xf32> -> vector<8x8xf32>
    %240 = tpu.concatenate %218, %221, %224, %227, %230, %233, %236, %239 in 0 : vector<8x8xf32>, vector<8x8xf32>, vector<8x8xf32>, vector<8x8xf32>, vector<8x8xf32>, vector<8x8xf32>, vector<8x8xf32>, vector<8x8xf32> -> vector<64x8xf32>
    %cst_131 = arith.constant 2.500000e-01 : f32
    %241 = vector.broadcast %cst_131 : f32 to vector<64x8xf32>
    %242 = arith.mulf %240, %241 : vector<64x8xf32>
    %cst_132 = arith.constant dense<0xFF800000> : vector<64xf32>
    %243 = vector.multi_reduction <maximumf>, %242, %cst_132 [1] : vector<64x8xf32> to vector<64xf32>
    %244 = vector.shape_cast %243 : vector<64xf32> to vector<64x1xf32>
    %245 = vector.broadcast %244 : vector<64x1xf32> to vector<64x8xf32>
    %246 = arith.subf %242, %245 : vector<64x8xf32>
    %247 = math.exp %246 : vector<64x8xf32>
    %cst_133 = arith.constant dense<0.000000e+00> : vector<64xf32>
    %248 = vector.multi_reduction <add>, %247, %cst_133 [1] : vector<64x8xf32> to vector<64xf32>
    %249 = vector.shape_cast %248 : vector<64xf32> to vector<64x1xf32>
    %250 = tpu.reciprocal %249 {approx = true} : vector<64x1xf32> -> vector<64x1xf32>
    %251 = vector.broadcast %250 : vector<64x1xf32> to vector<64x8xf32>
    %252 = arith.mulf %247, %251 : vector<64x8xf32>
    %cst_134 = arith.constant 0.000000e+00 : f32
    %253 = vector.broadcast %cst_134 : f32 to vector<8x64xf32>
    %254 = vector.extract_strided_slice %252 {offsets = [0, 0], sizes = [8, 8], strides = [1, 1]} : vector<64x8xf32> to vector<8x8xf32>
    %255 = vector.extract_strided_slice %215 {offsets = [0, 0], sizes = [8, 16], strides = [1, 1]} : vector<16x64xf32> to vector<8x16xf32>
    %cst_135 = arith.constant dense<0.000000e+00> : vector<8x16xf32>
    %256 = tpu.matmul %254, %255, %cst_135 {dimension_numbers = #tpu.dot_dimension_numbers<[1], [0], [0], [1], [0, 0, 1, 1], [], []>} : vector<8x8xf32>, vector<8x16xf32>, vector<8x16xf32> -> vector<8x16xf32>
    %257 = vector.extract_strided_slice %200 {offsets = [0, 0], sizes = [16, 64], strides = [1, 1]} : vector<64x64xf32> to vector<16x64xf32>
    %cst_136 = arith.constant dense<0.000000e+00> : vector<8x64xf32>
    %258 = tpu.matmul %256, %257, %cst_136 {dimension_numbers = #tpu.dot_dimension_numbers<[1], [0], [0], [1], [0, 0, 1, 1], [], []>} : vector<8x16xf32>, vector<16x64xf32>, vector<8x64xf32> -> vector<8x64xf32>
    %259 = arith.addf %253, %258 : vector<8x64xf32>
    %260 = vector.extract_strided_slice %252 {offsets = [8, 0], sizes = [8, 8], strides = [1, 1]} : vector<64x8xf32> to vector<8x8xf32>
    %261 = vector.extract_strided_slice %215 {offsets = [0, 16], sizes = [8, 16], strides = [1, 1]} : vector<16x64xf32> to vector<8x16xf32>
    %cst_137 = arith.constant dense<0.000000e+00> : vector<8x16xf32>
    %262 = tpu.matmul %260, %261, %cst_137 {dimension_numbers = #tpu.dot_dimension_numbers<[1], [0], [0], [1], [0, 0, 1, 1], [], []>} : vector<8x8xf32>, vector<8x16xf32>, vector<8x16xf32> -> vector<8x16xf32>
    %263 = vector.extract_strided_slice %200 {offsets = [16, 0], sizes = [16, 64], strides = [1, 1]} : vector<64x64xf32> to vector<16x64xf32>
    %cst_138 = arith.constant dense<0.000000e+00> : vector<8x64xf32>
    %264 = tpu.matmul %262, %263, %cst_138 {dimension_numbers = #tpu.dot_dimension_numbers<[1], [0], [0], [1], [0, 0, 1, 1], [], []>} : vector<8x16xf32>, vector<16x64xf32>, vector<8x64xf32> -> vector<8x64xf32>
    %265 = arith.addf %259, %264 : vector<8x64xf32>
    %266 = vector.extract_strided_slice %252 {offsets = [16, 0], sizes = [8, 8], strides = [1, 1]} : vector<64x8xf32> to vector<8x8xf32>
    %267 = vector.extract_strided_slice %215 {offsets = [0, 32], sizes = [8, 16], strides = [1, 1]} : vector<16x64xf32> to vector<8x16xf32>
    %cst_139 = arith.constant dense<0.000000e+00> : vector<8x16xf32>
    %268 = tpu.matmul %266, %267, %cst_139 {dimension_numbers = #tpu.dot_dimension_numbers<[1], [0], [0], [1], [0, 0, 1, 1], [], []>} : vector<8x8xf32>, vector<8x16xf32>, vector<8x16xf32> -> vector<8x16xf32>
    %269 = vector.extract_strided_slice %200 {offsets = [32, 0], sizes = [16, 64], strides = [1, 1]} : vector<64x64xf32> to vector<16x64xf32>
    %cst_140 = arith.constant dense<0.000000e+00> : vector<8x64xf32>
    %270 = tpu.matmul %268, %269, %cst_140 {dimension_numbers = #tpu.dot_dimension_numbers<[1], [0], [0], [1], [0, 0, 1, 1], [], []>} : vector<8x16xf32>, vector<16x64xf32>, vector<8x64xf32> -> vector<8x64xf32>
    %271 = arith.addf %265, %270 : vector<8x64xf32>
    %272 = vector.extract_strided_slice %252 {offsets = [24, 0], sizes = [8, 8], strides = [1, 1]} : vector<64x8xf32> to vector<8x8xf32>
    %273 = vector.extract_strided_slice %215 {offsets = [0, 48], sizes = [8, 16], strides = [1, 1]} : vector<16x64xf32> to vector<8x16xf32>
    %cst_141 = arith.constant dense<0.000000e+00> : vector<8x16xf32>
    %274 = tpu.matmul %272, %273, %cst_141 {dimension_numbers = #tpu.dot_dimension_numbers<[1], [0], [0], [1], [0, 0, 1, 1], [], []>} : vector<8x8xf32>, vector<8x16xf32>, vector<8x16xf32> -> vector<8x16xf32>
    %275 = vector.extract_strided_slice %200 {offsets = [48, 0], sizes = [16, 64], strides = [1, 1]} : vector<64x64xf32> to vector<16x64xf32>
    %cst_142 = arith.constant dense<0.000000e+00> : vector<8x64xf32>
    %276 = tpu.matmul %274, %275, %cst_142 {dimension_numbers = #tpu.dot_dimension_numbers<[1], [0], [0], [1], [0, 0, 1, 1], [], []>} : vector<8x16xf32>, vector<16x64xf32>, vector<8x64xf32> -> vector<8x64xf32>
    %277 = arith.addf %271, %276 : vector<8x64xf32>
    %cst_143 = arith.constant 0.000000e+00 : f32
    %278 = vector.broadcast %cst_143 : f32 to vector<8x64xf32>
    %279 = vector.extract_strided_slice %252 {offsets = [32, 0], sizes = [8, 8], strides = [1, 1]} : vector<64x8xf32> to vector<8x8xf32>
    %280 = vector.extract_strided_slice %215 {offsets = [8, 0], sizes = [8, 16], strides = [1, 1]} : vector<16x64xf32> to vector<8x16xf32>
    %cst_144 = arith.constant dense<0.000000e+00> : vector<8x16xf32>
    %281 = tpu.matmul %279, %280, %cst_144 {dimension_numbers = #tpu.dot_dimension_numbers<[1], [0], [0], [1], [0, 0, 1, 1], [], []>} : vector<8x8xf32>, vector<8x16xf32>, vector<8x16xf32> -> vector<8x16xf32>
    %282 = vector.extract_strided_slice %200 {offsets = [0, 0], sizes = [16, 64], strides = [1, 1]} : vector<64x64xf32> to vector<16x64xf32>
    %cst_145 = arith.constant dense<0.000000e+00> : vector<8x64xf32>
    %283 = tpu.matmul %281, %282, %cst_145 {dimension_numbers = #tpu.dot_dimension_numbers<[1], [0], [0], [1], [0, 0, 1, 1], [], []>} : vector<8x16xf32>, vector<16x64xf32>, vector<8x64xf32> -> vector<8x64xf32>
    %284 = arith.addf %278, %283 : vector<8x64xf32>
    %285 = vector.extract_strided_slice %252 {offsets = [40, 0], sizes = [8, 8], strides = [1, 1]} : vector<64x8xf32> to vector<8x8xf32>
    %286 = vector.extract_strided_slice %215 {offsets = [8, 16], sizes = [8, 16], strides = [1, 1]} : vector<16x64xf32> to vector<8x16xf32>
    %cst_146 = arith.constant dense<0.000000e+00> : vector<8x16xf32>
    %287 = tpu.matmul %285, %286, %cst_146 {dimension_numbers = #tpu.dot_dimension_numbers<[1], [0], [0], [1], [0, 0, 1, 1], [], []>} : vector<8x8xf32>, vector<8x16xf32>, vector<8x16xf32> -> vector<8x16xf32>
    %288 = vector.extract_strided_slice %200 {offsets = [16, 0], sizes = [16, 64], strides = [1, 1]} : vector<64x64xf32> to vector<16x64xf32>
    %cst_147 = arith.constant dense<0.000000e+00> : vector<8x64xf32>
    %289 = tpu.matmul %287, %288, %cst_147 {dimension_numbers = #tpu.dot_dimension_numbers<[1], [0], [0], [1], [0, 0, 1, 1], [], []>} : vector<8x16xf32>, vector<16x64xf32>, vector<8x64xf32> -> vector<8x64xf32>
    %290 = arith.addf %284, %289 : vector<8x64xf32>
    %291 = vector.extract_strided_slice %252 {offsets = [48, 0], sizes = [8, 8], strides = [1, 1]} : vector<64x8xf32> to vector<8x8xf32>
    %292 = vector.extract_strided_slice %215 {offsets = [8, 32], sizes = [8, 16], strides = [1, 1]} : vector<16x64xf32> to vector<8x16xf32>
    %cst_148 = arith.constant dense<0.000000e+00> : vector<8x16xf32>
    %293 = tpu.matmul %291, %292, %cst_148 {dimension_numbers = #tpu.dot_dimension_numbers<[1], [0], [0], [1], [0, 0, 1, 1], [], []>} : vector<8x8xf32>, vector<8x16xf32>, vector<8x16xf32> -> vector<8x16xf32>
    %294 = vector.extract_strided_slice %200 {offsets = [32, 0], sizes = [16, 64], strides = [1, 1]} : vector<64x64xf32> to vector<16x64xf32>
    %cst_149 = arith.constant dense<0.000000e+00> : vector<8x64xf32>
    %295 = tpu.matmul %293, %294, %cst_149 {dimension_numbers = #tpu.dot_dimension_numbers<[1], [0], [0], [1], [0, 0, 1, 1], [], []>} : vector<8x16xf32>, vector<16x64xf32>, vector<8x64xf32> -> vector<8x64xf32>
    %296 = arith.addf %290, %295 : vector<8x64xf32>
    %297 = vector.extract_strided_slice %252 {offsets = [56, 0], sizes = [8, 8], strides = [1, 1]} : vector<64x8xf32> to vector<8x8xf32>
    %298 = vector.extract_strided_slice %215 {offsets = [8, 48], sizes = [8, 16], strides = [1, 1]} : vector<16x64xf32> to vector<8x16xf32>
    %cst_150 = arith.constant dense<0.000000e+00> : vector<8x16xf32>
    %299 = tpu.matmul %297, %298, %cst_150 {dimension_numbers = #tpu.dot_dimension_numbers<[1], [0], [0], [1], [0, 0, 1, 1], [], []>} : vector<8x8xf32>, vector<8x16xf32>, vector<8x16xf32> -> vector<8x16xf32>
    %300 = vector.extract_strided_slice %200 {offsets = [48, 0], sizes = [16, 64], strides = [1, 1]} : vector<64x64xf32> to vector<16x64xf32>
    %cst_151 = arith.constant dense<0.000000e+00> : vector<8x64xf32>
    %301 = tpu.matmul %299, %300, %cst_151 {dimension_numbers = #tpu.dot_dimension_numbers<[1], [0], [0], [1], [0, 0, 1, 1], [], []>} : vector<8x16xf32>, vector<16x64xf32>, vector<8x64xf32> -> vector<8x64xf32>
    %302 = arith.addf %296, %301 : vector<8x64xf32>
    %303 = tpu.concatenate %277, %302 in 0 : vector<8x64xf32>, vector<8x64xf32> -> vector<16x64xf32>
    %c1_152 = arith.constant 1 : index
    %c0_153 = arith.constant 0 : index
    %c0_154 = arith.constant 0 : index
    %304 = vector.load %arg11[%c1_152, %c0_153, %c0_154] : memref<2x1x64xf32, #tpu.memory_space<vmem>>, vector<1x1x64xf32>
    %305 = vector.shape_cast %304 : vector<1x1x64xf32> to vector<1x64xf32>
    %306 = vector.broadcast %305 : vector<1x64xf32> to vector<16x64xf32>
    %307 = arith.addf %303, %306 : vector<16x64xf32>
    %308 = arith.addf %192, %307 : vector<16x64xf32>
    %c1_155 = arith.constant 1 : index
    %c0_156 = arith.constant 0 : index
    %c0_157 = arith.constant 0 : index
    %309 = vector.load %arg12[%c1_155, %c0_156, %c0_157] : memref<2x1x64xf32, #tpu.memory_space<vmem>>, vector<1x1x64xf32>
    %310 = vector.shape_cast %309 : vector<1x1x64xf32> to vector<1x64xf32>
    %c1_158 = arith.constant 1 : index
    %c0_159 = arith.constant 0 : index
    %c0_160 = arith.constant 0 : index
    %311 = vector.load %arg13[%c1_158, %c0_159, %c0_160] : memref<2x1x64xf32, #tpu.memory_space<vmem>>, vector<1x1x64xf32>
    %312 = vector.shape_cast %311 : vector<1x1x64xf32> to vector<1x64xf32>
    %cst_161 = arith.constant dense<0.000000e+00> : vector<16xf32>
    %313 = vector.multi_reduction <add>, %308, %cst_161 [1] : vector<16x64xf32> to vector<16xf32>
    %314 = vector.shape_cast %313 : vector<16xf32> to vector<16x1xf32>
    %cst_162 = arith.constant 6.400000e+01 : f32
    %315 = vector.broadcast %cst_162 : f32 to vector<16x1xf32>
    %316 = arith.divf %314, %315 : vector<16x1xf32>
    %317 = vector.broadcast %316 : vector<16x1xf32> to vector<16x64xf32>
    %318 = arith.subf %308, %317 : vector<16x64xf32>
    %319 = arith.mulf %318, %318 : vector<16x64xf32>
    %cst_163 = arith.constant dense<0.000000e+00> : vector<16xf32>
    %320 = vector.multi_reduction <add>, %319, %cst_163 [1] : vector<16x64xf32> to vector<16xf32>
    %321 = vector.shape_cast %320 : vector<16xf32> to vector<16x1xf32>
    %cst_164 = arith.constant 6.400000e+01 : f32
    %322 = vector.broadcast %cst_164 : f32 to vector<16x1xf32>
    %323 = arith.divf %321, %322 : vector<16x1xf32>
    %324 = vector.broadcast %316 : vector<16x1xf32> to vector<16x64xf32>
    %325 = arith.subf %308, %324 : vector<16x64xf32>
    %cst_165 = arith.constant 9.99999974E-6 : f32
    %326 = vector.broadcast %cst_165 : f32 to vector<16x1xf32>
    %327 = arith.addf %323, %326 : vector<16x1xf32>
    %328 = math.rsqrt %327 : vector<16x1xf32>
    %329 = vector.broadcast %328 : vector<16x1xf32> to vector<16x64xf32>
    %330 = arith.mulf %325, %329 : vector<16x64xf32>
    %331 = vector.broadcast %310 : vector<1x64xf32> to vector<16x64xf32>
    %332 = arith.mulf %330, %331 : vector<16x64xf32>
    %333 = vector.broadcast %312 : vector<1x64xf32> to vector<16x64xf32>
    %334 = arith.addf %332, %333 : vector<16x64xf32>
    %c1_166 = arith.constant 1 : index
    %c0_167 = arith.constant 0 : index
    %c0_168 = arith.constant 0 : index
    %335 = vector.load %arg14[%c1_166, %c0_167, %c0_168] : memref<2x64x256xf32, #tpu.memory_space<vmem>>, vector<1x64x256xf32>
    %336 = vector.shape_cast %335 : vector<1x64x256xf32> to vector<64x256xf32>
    %cst_169 = arith.constant dense<0.000000e+00> : vector<16x256xf32>
    %337 = tpu.matmul %334, %336, %cst_169 {dimension_numbers = #tpu.dot_dimension_numbers<[1], [0], [0], [1], [0, 0, 1, 1], [], []>} : vector<16x64xf32>, vector<64x256xf32>, vector<16x256xf32> -> vector<16x256xf32>
    %c1_170 = arith.constant 1 : index
    %c0_171 = arith.constant 0 : index
    %c0_172 = arith.constant 0 : index
    %338 = vector.load %arg15[%c1_170, %c0_171, %c0_172] : memref<2x1x256xf32, #tpu.memory_space<vmem>>, vector<1x1x256xf32>
    %339 = vector.shape_cast %338 : vector<1x1x256xf32> to vector<1x256xf32>
    %340 = vector.broadcast %339 : vector<1x256xf32> to vector<16x256xf32>
    %341 = arith.addf %337, %340 : vector<16x256xf32>
    %cst_173 = arith.constant 0.000000e+00 : f32
    %342 = vector.broadcast %cst_173 : f32 to vector<16x256xf32>
    %343 = arith.maximumf %341, %342 : vector<16x256xf32>
    %c1_174 = arith.constant 1 : index
    %c0_175 = arith.constant 0 : index
    %c0_176 = arith.constant 0 : index
    %344 = vector.load %arg16[%c1_174, %c0_175, %c0_176] : memref<2x256x64xf32, #tpu.memory_space<vmem>>, vector<1x256x64xf32>
    %345 = vector.shape_cast %344 : vector<1x256x64xf32> to vector<256x64xf32>
    %cst_177 = arith.constant dense<0.000000e+00> : vector<16x64xf32>
    %346 = tpu.matmul %343, %345, %cst_177 {dimension_numbers = #tpu.dot_dimension_numbers<[1], [0], [0], [1], [0, 0, 1, 1], [], []>} : vector<16x256xf32>, vector<256x64xf32>, vector<16x64xf32> -> vector<16x64xf32>
    %c1_178 = arith.constant 1 : index
    %c0_179 = arith.constant 0 : index
    %c0_180 = arith.constant 0 : index
    %347 = vector.load %arg17[%c1_178, %c0_179, %c0_180] : memref<2x1x64xf32, #tpu.memory_space<vmem>>, vector<1x1x64xf32>
    %348 = vector.shape_cast %347 : vector<1x1x64xf32> to vector<1x64xf32>
    %349 = vector.broadcast %348 : vector<1x64xf32> to vector<16x64xf32>
    %350 = arith.addf %346, %349 : vector<16x64xf32>
    %351 = arith.addf %334, %350 : vector<16x64xf32>
    %c1_181 = arith.constant 1 : index
    %c0_182 = arith.constant 0 : index
    %c0_183 = arith.constant 0 : index
    %352 = vector.load %arg18[%c1_181, %c0_182, %c0_183] : memref<2x1x64xf32, #tpu.memory_space<vmem>>, vector<1x1x64xf32>
    %353 = vector.shape_cast %352 : vector<1x1x64xf32> to vector<1x64xf32>
    %c1_184 = arith.constant 1 : index
    %c0_185 = arith.constant 0 : index
    %c0_186 = arith.constant 0 : index
    %354 = vector.load %arg19[%c1_184, %c0_185, %c0_186] : memref<2x1x64xf32, #tpu.memory_space<vmem>>, vector<1x1x64xf32>
    %355 = vector.shape_cast %354 : vector<1x1x64xf32> to vector<1x64xf32>
    %cst_187 = arith.constant dense<0.000000e+00> : vector<16xf32>
    %356 = vector.multi_reduction <add>, %351, %cst_187 [1] : vector<16x64xf32> to vector<16xf32>
    %357 = vector.shape_cast %356 : vector<16xf32> to vector<16x1xf32>
    %cst_188 = arith.constant 6.400000e+01 : f32
    %358 = vector.broadcast %cst_188 : f32 to vector<16x1xf32>
    %359 = arith.divf %357, %358 : vector<16x1xf32>
    %360 = vector.broadcast %359 : vector<16x1xf32> to vector<16x64xf32>
    %361 = arith.subf %351, %360 : vector<16x64xf32>
    %362 = arith.mulf %361, %361 : vector<16x64xf32>
    %cst_189 = arith.constant dense<0.000000e+00> : vector<16xf32>
    %363 = vector.multi_reduction <add>, %362, %cst_189 [1] : vector<16x64xf32> to vector<16xf32>
    %364 = vector.shape_cast %363 : vector<16xf32> to vector<16x1xf32>
    %cst_190 = arith.constant 6.400000e+01 : f32
    %365 = vector.broadcast %cst_190 : f32 to vector<16x1xf32>
    %366 = arith.divf %364, %365 : vector<16x1xf32>
    %367 = vector.broadcast %359 : vector<16x1xf32> to vector<16x64xf32>
    %368 = arith.subf %351, %367 : vector<16x64xf32>
    %cst_191 = arith.constant 9.99999974E-6 : f32
    %369 = vector.broadcast %cst_191 : f32 to vector<16x1xf32>
    %370 = arith.addf %366, %369 : vector<16x1xf32>
    %371 = math.rsqrt %370 : vector<16x1xf32>
    %372 = vector.broadcast %371 : vector<16x1xf32> to vector<16x64xf32>
    %373 = arith.mulf %368, %372 : vector<16x64xf32>
    %374 = vector.broadcast %353 : vector<1x64xf32> to vector<16x64xf32>
    %375 = arith.mulf %373, %374 : vector<16x64xf32>
    %376 = vector.broadcast %355 : vector<1x64xf32> to vector<16x64xf32>
    %377 = arith.addf %375, %376 : vector<16x64xf32>
    %378 = vector.extract_strided_slice %377 {offsets = [7, 0], sizes = [1, 64], strides = [1, 1]} : vector<16x64xf32> to vector<1x64xf32>
    %379 = vector.extract_strided_slice %377 {offsets = [15, 0], sizes = [1, 64], strides = [1, 1]} : vector<16x64xf32> to vector<1x64xf32>
    %380 = tpu.concatenate %378, %379 in 0 : vector<1x64xf32>, vector<1x64xf32> -> vector<2x64xf32>
    %c0_192 = arith.constant 0 : index
    %c0_193 = arith.constant 0 : index
    %381 = vector.load %arg20[%c0_192, %c0_193] : memref<2x64xf32, #tpu.memory_space<vmem>>, vector<2x64xf32>
    tpu.vector_store %arg20[%c0_192, %c0_193], %380 {strides = array<i32>} : memref<2x64xf32, #tpu.memory_space<vmem>>, vector<2x64xf32>,
    return
  }
}

</mosaic_0001>

<llo_original>
// kernel: transformer_forward.1
$region0: #{transformer_forward.1}
  #allocation0 [shape = 'u32[]', space=smem, size = 0x4, offset = 0x4, fixed_abs, tag = 'smem constant byte address 0x4 - core index']
  #allocation1 [shape = 'u32[144,128]{1,0:T(1,128)}', space=vmem, size = 0x12000, scoped, tag = 'internal scratch']
  %s0 = inlined_call_operand.vmem [shape: f32[16,4], index: 0, kind: input, shape index: {}]
  %s1 = inlined_call_operand.vmem [shape: f32[16,64], index: 1, kind: input, shape index: {}]
  %s2 = inlined_call_operand.vmem [shape: f32[4,64], index: 2, kind: input, shape index: {}]
  %s3 = inlined_call_operand.vmem [shape: f32[1,64], index: 3, kind: input, shape index: {}]
  %s4 = inlined_call_operand.vmem [shape: f32[2,64,64], index: 4, kind: input, shape index: {}]
  %s5 = inlined_call_operand.vmem [shape: f32[2,64,64], index: 5, kind: input, shape index: {}]
  %s6 = inlined_call_operand.vmem [shape: f32[2,64,64], index: 6, kind: input, shape index: {}]
  %s7 = inlined_call_operand.vmem [shape: f32[2,1,64], index: 7, kind: input, shape index: {}]
  %s8 = inlined_call_operand.vmem [shape: f32[2,1,64], index: 8, kind: input, shape index: {}]
  %s9 = inlined_call_operand.vmem [shape: f32[2,1,64], index: 9, kind: input, shape index: {}]
  %s10 = inlined_call_operand.vmem [shape: f32[2,64,64], index: 10, kind: input, shape index: {}]
  %s11 = inlined_call_operand.vmem [shape: f32[2,1,64], index: 11, kind: input, shape index: {}]
  %s12 = inlined_call_operand.vmem [shape: f32[2,1,64], index: 12, kind: input, shape index: {}]
  %s13 = inlined_call_operand.vmem [shape: f32[2,1,64], index: 13, kind: input, shape index: {}]
  %s14 = inlined_call_operand.vmem [shape: f32[2,64,256], index: 14, kind: input, shape index: {}]
  %s15 = inlined_call_operand.vmem [shape: f32[2,1,256], index: 15, kind: input, shape index: {}]
  %s16 = inlined_call_operand.vmem [shape: f32[2,256,64], index: 16, kind: input, shape index: {}]
  %s17 = inlined_call_operand.vmem [shape: f32[2,1,64], index: 17, kind: input, shape index: {}]
  %s18 = inlined_call_operand.vmem [shape: f32[2,1,64], index: 18, kind: input, shape index: {}]
  %s19 = inlined_call_operand.vmem [shape: f32[2,1,64], index: 19, kind: input, shape index: {}]
  %s20 = inlined_call_operand.vmem [shape: f32[2,64], index: 20, kind: output, shape index: {}]
  %s21 = sld [smem:[#allocation0]]
  $region90: #{transformer_forward.1} parent=0
    _
  %s23 = ssub.s32 1, %s21
  %s24 = scalar_select 0, %s23, %s21
  // Predicated region
  $region2: #{transformer_forward.1} parent=0 // pred_check
    _
  $region3: #{transformer_forward.1} parent=0 // pred_check_branch
    %26 = sbr.rel (0) target = $region5
  $region4: #{transformer_forward.1} parent=0 // pred_region
    _
  $region5: #{transformer_forward.1} parent=0 // pred_fallthru
    _
  // Predicated region
  $region6: #{transformer_forward.1} parent=0 // pred_check
    _
  $region7: #{transformer_forward.1} parent=0 // pred_check_branch
    %28 = sbr.rel (0) target = $region9
  $region8: #{transformer_forward.1} parent=0 // pred_region
    _
  $region9: #{transformer_forward.1} parent=0 // pred_fallthru
    _
  // Predicated region
  $region10: #{transformer_forward.1} parent=0 // pred_check
    _
  $region11: #{transformer_forward.1} parent=0 // pred_check_branch
    %30 = sbr.rel (0) target = $region13
  $region12: #{transformer_forward.1} parent=0 // pred_region
    _
  $region13: #{transformer_forward.1} parent=0 // pred_fallthru
    _
  // Predicated region
  $region14: #{transformer_forward.1} parent=0 // pred_check
    _
  $region15: #{transformer_forward.1} parent=0 // pred_check_branch
    %32 = sbr.rel (0) target = $region17
  $region16: #{transformer_forward.1} parent=0 // pred_region
    _
  $region17: #{transformer_forward.1} parent=0 // pred_fallthru
    _
  // Predicated region
  $region18: #{transformer_forward.1} parent=0 // pred_check
    _
  $region19: #{transformer_forward.1} parent=0 // pred_check_branch
    %34 = sbr.rel (0) target = $region21
  $region20: #{transformer_forward.1} parent=0 // pred_region
    _
  $region21: #{transformer_forward.1} parent=0 // pred_fallthru
    _
  // Predicated region
  $region22: #{transformer_forward.1} parent=0 // pred_check
    _
  $region23: #{transformer_forward.1} parent=0 // pred_check_branch
    %36 = sbr.rel (0) target = $region25
  $region24: #{transformer_forward.1} parent=0 // pred_region
    _
  $region25: #{transformer_forward.1} parent=0 // pred_fallthru
    _
  // Predicated region
  $region26: #{transformer_forward.1} parent=0 // pred_check
    _
  $region27: #{transformer_forward.1} parent=0 // pred_check_branch
    %38 = sbr.rel (0) target = $region29
  $region28: #{transformer_forward.1} parent=0 // pred_region
    _
  $region29: #{transformer_forward.1} parent=0 // pred_fallthru
    _
  // Predicated region
  $region30: #{transformer_forward.1} parent=0 // pred_check
    _
  $region31: #{transformer_forward.1} parent=0 // pred_check_branch
    %40 = sbr.rel (0) target = $region33
  $region32: #{transformer_forward.1} parent=0 // pred_region
    _
  $region33: #{transformer_forward.1} parent=0 // pred_fallthru
    _
  // Predicated region
  $region34: #{transformer_forward.1} parent=0 // pred_check
    _
  $region35: #{transformer_forward.1} parent=0 // pred_check_branch
    %42 = sbr.rel (0) target = $region37
  $region36: #{transformer_forward.1} parent=0 // pred_region
    _
  $region37: #{transformer_forward.1} parent=0 // pred_fallthru
    _
  // Predicated region
  $region38: #{transformer_forward.1} parent=0 // pred_check
    _
  $region39: #{transformer_forward.1} parent=0 // pred_check_branch
    %44 = sbr.rel (0) target = $region41
  $region40: #{transformer_forward.1} parent=0 // pred_region
    _
  $region41: #{transformer_forward.1} parent=0 // pred_fallthru
    _
  // Predicated region
  $region42: #{transformer_forward.1} parent=0 // pred_check
    _
  $region43: #{transformer_forward.1} parent=0 // pred_check_branch
    %46 = sbr.rel (0) target = $region45
  $region44: #{transformer_forward.1} parent=0 // pred_region
    _
  $region45: #{transformer_forward.1} parent=0 // pred_fallthru
    _
  // Predicated region
  $region46: #{transformer_forward.1} parent=0 // pred_check
    _
  $region47: #{transformer_forward.1} parent=0 // pred_check_branch
    %48 = sbr.rel (0) target = $region49
  $region48: #{transformer_forward.1} parent=0 // pred_region
    _
  $region49: #{transformer_forward.1} parent=0 // pred_fallthru
    _
  // Predicated region
  $region50: #{transformer_forward.1} parent=0 // pred_check
    _
  $region51: #{transformer_forward.1} parent=0 // pred_check_branch
    %50 = sbr.rel (0) target = $region53
  $region52: #{transformer_forward.1} parent=0 // pred_region
    _
  $region53: #{transformer_forward.1} parent=0 // pred_fallthru
    _
  // Predicated region
  $region54: #{transformer_forward.1} parent=0 // pred_check
    _
  $region55: #{transformer_forward.1} parent=0 // pred_check_branch
    %52 = sbr.rel (0) target = $region57
  $region56: #{transformer_forward.1} parent=0 // pred_region
    _
  $region57: #{transformer_forward.1} parent=0 // pred_fallthru
    _
  // Predicated region
  $region58: #{transformer_forward.1} parent=0 // pred_check
    _
  $region59: #{transformer_forward.1} parent=0 // pred_check_branch
    %54 = sbr.rel (0) target = $region61
  $region60: #{transformer_forward.1} parent=0 // pred_region
    _
  $region61: #{transformer_forward.1} parent=0 // pred_fallthru
    _
  // Predicated region
  $region62: #{transformer_forward.1} parent=0 // pred_check
    _
  $region63: #{transformer_forward.1} parent=0 // pred_check_branch
    %56 = sbr.rel (0) target = $region65
  $region64: #{transformer_forward.1} parent=0 // pred_region
    _
  $region65: #{transformer_forward.1} parent=0 // pred_fallthru
    _
  // Predicated region
  $region66: #{transformer_forward.1} parent=0 // pred_check
    _
  $region67: #{transformer_forward.1} parent=0 // pred_check_branch
    %58 = sbr.rel (0) target = $region69
  $region68: #{transformer_forward.1} parent=0 // pred_region
    _
  $region69: #{transformer_forward.1} parent=0 // pred_fallthru
    _
  // Predicated region
  $region70: #{transformer_forward.1} parent=0 // pred_check
    _
  $region71: #{transformer_forward.1} parent=0 // pred_check_branch
    %60 = sbr.rel (0) target = $region73
  $region72: #{transformer_forward.1} parent=0 // pred_region
    _
  $region73: #{transformer_forward.1} parent=0 // pred_fallthru
    _
  // Predicated region
  $region74: #{transformer_forward.1} parent=0 // pred_check
    _
  $region75: #{transformer_forward.1} parent=0 // pred_check_branch
    %62 = sbr.rel (0) target = $region77
  $region76: #{transformer_forward.1} parent=0 // pred_region
    _
  $region77: #{transformer_forward.1} parent=0 // pred_fallthru
    _
  // Predicated region
  $region78: #{transformer_forward.1} parent=0 // pred_check
    _
  $region79: #{transformer_forward.1} parent=0 // pred_check_branch
    %64 = sbr.rel (0) target = $region81
  $region80: #{transformer_forward.1} parent=0 // pred_region
    _
  $region81: #{transformer_forward.1} parent=0 // pred_fallthru
    _
  %v65 = vld [vmem:[%s0] sm:$0xff]
  %v66 = vld [vmem:[%s0 + $0x8] sm:$0xff]
  %v67 = vld [vmem:[%s2] sm:$0xf]
  %v68 = vld [vmem:[%s3] sm:$0x1]
  %v70 = vlaneseq
  %v71 = vshrl.u32 %v70, 7
  %v72 = vsub.s32 0, %v71
  %v73 = vrot.slane %v68, %v72
  %vm75 = vcmask 31744
  %v77 = vsel %vm75, %v65, 0
  %v80 = vsel %vm75, %v66, 0
  %vm82 = vcmask 1043456
  %v84 = vsel %vm82, %v67, 0
  %86 = vmatprep.subr.mxu0 0.0
  %87 = vmatpush1.msra.mxu0 %v84
  %88 = vmatprep.subr.mxu0 0.0
  %89 = vmatpush1.msra.mxu0 0.0
  %90 = vmatprep.subr.mxu0 0.0
  %91 = vmatpush1.msra.mxu0 0.0
  %92 = vmatprep.subr.mxu0 0.0
  %93 = vmatpush1.msra.mxu0 0.0
  %94 = vmatprep.subr.mxu0 0.0
  %95 = vmatpush1.msra.mxu0 0.0
  %96 = vmatprep.subr.mxu0 0.0
  %97 = vmatpush1.msra.mxu0 0.0
  %98 = vmatprep.subr.mxu0 0.0
  %99 = vmatpush1.msra.mxu0 0.0
  %100 = vmatprep.subr.mxu0 0.0
  %101 = vmatpush1.msra.mxu0 0.0
  %102 = vmatprep.subr.mxu0 0.0
  %103 = vmatpush1.msra.mxu0 0.0
  %104 = vmatprep.subr.mxu0 0.0
  %105 = vmatpush1.msra.mxu0 0.0
  %106 = vmatprep.subr.mxu0 0.0
  %107 = vmatpush1.msra.mxu0 0.0
  %108 = vmatprep.subr.mxu0 0.0
  %109 = vmatpush1.msra.mxu0 0.0
  %110 = vmatprep.subr.mxu0 0.0
  %111 = vmatpush1.msra.mxu0 0.0
  %112 = vmatprep.subr.mxu0 0.0
  %113 = vmatpush1.msra.mxu0 0.0
  %114 = vmatprep.subr.mxu0 0.0
  %115 = vmatpush1.msra.mxu0 0.0
  %116 = vmatprep.subr.mxu0 0.0
  %117 = vmatpush1.msra.mxu0 0.0
  %118 = vmatprep.subr.mxu0 0.0
  %119 = vmatpush1.msra.mxu0 0.0
  %120 = vmatprep.subr.mxu0 0.0
  %121 = vmatpush1.msra.mxu0 0.0
  %122 = vmatprep.subr.mxu0 0.0
  %123 = vmatpush1.msra.mxu0 0.0
  %124 = vmatprep.subr.mxu0 0.0
  %125 = vmatpush1.msra.mxu0 0.0
  %126 = vmatprep.subr.mxu0 0.0
  %127 = vmatpush1.msra.mxu0 0.0
  %128 = vmatprep.subr.mxu0 0.0
  %129 = vmatpush1.msra.mxu0 0.0
  %130 = vmatprep.subr.mxu0 0.0
  %131 = vmatpush1.msra.mxu0 0.0
  %132 = vmatprep.subr.mxu0 0.0
  %133 = vmatpush1.msra.mxu0 0.0
  %134 = vmatprep.subr.mxu0 0.0
  %135 = vmatpush1.msra.mxu0 0.0
  %136 = vmatprep.subr.mxu0 0.0
  %137 = vmatpush1.msra.mxu0 0.0
  %138 = vmatprep.subr.mxu0 0.0
  %139 = vmatpush1.msra.mxu0 0.0
  %140 = vmatprep.subr.mxu0 0.0
  %141 = vmatpush1.msra.mxu0 0.0
  %142 = vmatprep.subr.mxu0 0.0
  %143 = vmatpush1.msra.mxu0 0.0
  %144 = vmatprep.subr.mxu0 0.0
  %145 = vmatpush1.msra.mxu0 0.0
  %146 = vmatprep.subr.mxu0 0.0
  %147 = vmatpush1.msra.mxu0 0.0
  %148 = vmatprep.subr.mxu0 0.0
  %149 = vmatpush1.msra.mxu0 0.0
  %150 = vmatprep.mubr.f32.mxu0 0.0
  %151 = vmatmul.mubr.f32.gmra.mrb[0].mxu0 %v77
  %v152 = vpop.f32.mrb[0].mxu0
  %v153 = vadd.f32 %v73, %v152
  %v154 = vpop.f32.mrb[0].mxu0
  %155 = vmatprep.mubr.f32.mxu0 0.0
  %156 = vmatmul.mubr.f32.gmra.mrb[0].mxu0 %v80
  %v157 = vpop.f32.mrb[0].mxu0
  %v158 = vadd.f32 %v73, %v157
  %v159 = vpop.f32.mrb[0].mxu0
  %160 = vdwg.mxu0
  %v161 = vld [vmem:[%s1] sm:$0xff]
  %v162 = vld [vmem:[%s1 + $0x8] sm:$0xff]
  %v163 = vadd.f32 %v153, %v161
  %v164 = vadd.f32 %v158, %v162
  %v165 = vld [vmem:[%s4] sm:$0xff]
  %v166 = vld [vmem:[%s4 + $0x8] sm:$0xff]
  %v167 = vld [vmem:[%s4 + $0x10] sm:$0xff]
  %v168 = vld [vmem:[%s4 + $0x18] sm:$0xff]
  %v169 = vld [vmem:[%s4 + $0x20] sm:$0xff]
  %v170 = vld [vmem:[%s4 + $0x28] sm:$0xff]
  %v171 = vld [vmem:[%s4 + $0x30] sm:$0xff]
  %v172 = vld [vmem:[%s4 + $0x38] sm:$0xff]
  %v173 = vld [vmem:[%s5] sm:$0xff]
  %v174 = vld [vmem:[%s5 + $0x8] sm:$0xff]
  %v175 = vld [vmem:[%s5 + $0x10] sm:$0xff]
  %v176 = vld [vmem:[%s5 + $0x18] sm:$0xff]
  %v177 = vld [vmem:[%s5 + $0x20] sm:$0xff]
  %v178 = vld [vmem:[%s5 + $0x28] sm:$0xff]
  %v179 = vld [vmem:[%s5 + $0x30] sm:$0xff]
  %v180 = vld [vmem:[%s5 + $0x38] sm:$0xff]
  %v181 = vld [vmem:[%s6] sm:$0xff]
  %v182 = vld [vmem:[%s6 + $0x8] sm:$0xff]
  %v183 = vld [vmem:[%s6 + $0x10] sm:$0xff]
  %v184 = vld [vmem:[%s6 + $0x18] sm:$0xff]
  %v185 = vld [vmem:[%s6 + $0x20] sm:$0xff]
  %v186 = vld [vmem:[%s6 + $0x28] sm:$0xff]
  %v187 = vld [vmem:[%s6 + $0x30] sm:$0xff]
  %v188 = vld [vmem:[%s6 + $0x38] sm:$0xff]
  %v189 = vld [vmem:[%s10] sm:$0xff]
  %v190 = vld [vmem:[%s10 + $0x8] sm:$0xff]
  %v191 = vld [vmem:[%s10 + $0x10] sm:$0xff]
  %v192 = vld [vmem:[%s10 + $0x18] sm:$0xff]
  %v193 = vld [vmem:[%s10 + $0x20] sm:$0xff]
  %v194 = vld [vmem:[%s10 + $0x28] sm:$0xff]
  %v195 = vld [vmem:[%s10 + $0x30] sm:$0xff]
  %v196 = vld [vmem:[%s10 + $0x38] sm:$0xff]
  %v197 = vld [vmem:[%s7] sm:$0x1]
  %v199 = vlaneseq
  %v200 = vshrl.u32 %v199, 7
  %v201 = vsub.s32 0, %v200
  %v202 = vrot.slane %v197, %v201
  %vm204 = vcmask 523264
  %v206 = vsel %vm204, %v163, 0
  %v209 = vsel %vm204, %v164, 0
  %211 = vmatprep.subr.mxu0 0.0
  %212 = vmatpush1.msra.mxu0 %v165
  %213 = vmatprep.subr.mxu0 0.0
  %214 = vmatpush1.msra.mxu0 %v166
  %215 = vmatprep.subr.mxu0 0.0
  %216 = vmatpush1.msra.mxu0 %v167
  %217 = vmatprep.subr.mxu0 0.0
  %218 = vmatpush1.msra.mxu0 %v168
  %219 = vmatprep.subr.mxu0 0.0
  %220 = vmatpush1.msra.mxu0 %v169
  %221 = vmatprep.subr.mxu0 0.0
  %222 = vmatpush1.msra.mxu0 %v170
  %223 = vmatprep.subr.mxu0 0.0
  %224 = vmatpush1.msra.mxu0 %v171
  %225 = vmatprep.subr.mxu0 0.0
  %226 = vmatpush1.msra.mxu0 %v172
  %227 = vmatprep.subr.mxu0 0.0
  %228 = vmatpush1.msra.mxu0 0.0
  %229 = vmatprep.subr.mxu0 0.0
  %230 = vmatpush1.msra.mxu0 0.0
  %231 = vmatprep.subr.mxu0 0.0
  %232 = vmatpush1.msra.mxu0 0.0
  %233 = vmatprep.subr.mxu0 0.0
  %234 = vmatpush1.msra.mxu0 0.0
  %235 = vmatprep.subr.mxu0 0.0
  %236 = vmatpush1.msra.mxu0 0.0
  %237 = vmatprep.subr.mxu0 0.0
  %238 = vmatpush1.msra.mxu0 0.0
  %239 = vmatprep.subr.mxu0 0.0
  %240 = vmatpush1.msra.mxu0 0.0
  %241 = vmatprep.subr.mxu0 0.0
  %242 = vmatpush1.msra.mxu0 0.0
  %243 = vmatprep.subr.mxu0 0.0
  %244 = vmatpush1.msra.mxu0 0.0
  %245 = vmatprep.subr.mxu0 0.0
  %246 = vmatpush1.msra.mxu0 0.0
  %247 = vmatprep.subr.mxu0 0.0
  %248 = vmatpush1.msra.mxu0 0.0
  %249 = vmatprep.subr.mxu0 0.0
  %250 = vmatpush1.msra.mxu0 0.0
  %251 = vmatprep.subr.mxu0 0.0
  %252 = vmatpush1.msra.mxu0 0.0
  %253 = vmatprep.subr.mxu0 0.0
  %254 = vmatpush1.msra.mxu0 0.0
  %255 = vmatprep.subr.mxu0 0.0
  %256 = vmatpush1.msra.mxu0 0.0
  %257 = vmatprep.subr.mxu0 0.0
  %258 = vmatpush1.msra.mxu0 0.0
  %259 = vmatprep.subr.mxu0 0.0
  %260 = vmatpush1.msra.mxu0 0.0
  %261 = vmatprep.subr.mxu0 0.0
  %262 = vmatpush1.msra.mxu0 0.0
  %263 = vmatprep.subr.mxu0 0.0
  %264 = vmatpush1.msra.mxu0 0.0
  %265 = vmatprep.subr.mxu0 0.0
  %266 = vmatpush1.msra.mxu0 0.0
  %267 = vmatprep.subr.mxu0 0.0
  %268 = vmatpush1.msra.mxu0 0.0
  %269 = vmatprep.subr.mxu0 0.0
  %270 = vmatpush1.msra.mxu0 0.0
  %271 = vmatprep.subr.mxu0 0.0
  %272 = vmatpush1.msra.mxu0 0.0
  %273 = vmatprep.subr.mxu0 0.0
  %274 = vmatpush1.msra.mxu0 0.0
  %275 = vmatprep.mubr.f32.mxu0 0.0
  %276 = vmatmul.mubr.f32.gmra.mrb[0].mxu0 %v206
  %v277 = vpop.f32.mrb[0].mxu0
  %v278 = vadd.f32 %v202, %v277
  %v279 = vpop.f32.mrb[0].mxu0
  %280 = vmatprep.mubr.f32.mxu0 0.0
  %281 = vmatmul.mubr.f32.gmra.mrb[0].mxu0 %v209
  %v282 = vpop.f32.mrb[0].mxu0
  %v283 = vadd.f32 %v202, %v282
  %v284 = vpop.f32.mrb[0].mxu0
  %285 = vdwg.mxu0
  %v286 = vld [vmem:[%s8] sm:$0x1]
  %v288 = vlaneseq
  %v289 = vshrl.u32 %v288, 7
  %v290 = vsub.s32 0, %v289
  %v291 = vrot.slane %v286, %v290
  %293 = vmatprep.subr.mxu0 0.0
  %294 = vmatpush1.msra.mxu0 %v173
  %295 = vmatprep.subr.mxu0 0.0
  %296 = vmatpush1.msra.mxu0 %v174
  %297 = vmatprep.subr.mxu0 0.0
  %298 = vmatpush1.msra.mxu0 %v175
  %299 = vmatprep.subr.mxu0 0.0
  %300 = vmatpush1.msra.mxu0 %v176
  %301 = vmatprep.subr.mxu0 0.0
  %302 = vmatpush1.msra.mxu0 %v177
  %303 = vmatprep.subr.mxu0 0.0
  %304 = vmatpush1.msra.mxu0 %v178
  %305 = vmatprep.subr.mxu0 0.0
  %306 = vmatpush1.msra.mxu0 %v179
  %307 = vmatprep.subr.mxu0 0.0
  %308 = vmatpush1.msra.mxu0 %v180
  %309 = vmatprep.subr.mxu0 0.0
  %310 = vmatpush1.msra.mxu0 0.0
  %311 = vmatprep.subr.mxu0 0.0
  %312 = vmatpush1.msra.mxu0 0.0
  %313 = vmatprep.subr.mxu0 0.0
  %314 = vmatpush1.msra.mxu0 0.0
  %315 = vmatprep.subr.mxu0 0.0
  %316 = vmatpush1.msra.mxu0 0.0
  %317 = vmatprep.subr.mxu0 0.0
  %318 = vmatpush1.msra.mxu0 0.0
  %319 = vmatprep.subr.mxu0 0.0
  %320 = vmatpush1.msra.mxu0 0.0
  %321 = vmatprep.subr.mxu0 0.0
  %322 = vmatpush1.msra.mxu0 0.0
  %323 = vmatprep.subr.mxu0 0.0
  %324 = vmatpush1.msra.mxu0 0.0
  %325 = vmatprep.subr.mxu0 0.0
  %326 = vmatpush1.msra.mxu0 0.0
  %327 = vmatprep.subr.mxu0 0.0
  %328 = vmatpush1.msra.mxu0 0.0
  %329 = vmatprep.subr.mxu0 0.0
  %330 = vmatpush1.msra.mxu0 0.0
  %331 = vmatprep.subr.mxu0 0.0
  %332 = vmatpush1.msra.mxu0 0.0
  %333 = vmatprep.subr.mxu0 0.0
  %334 = vmatpush1.msra.mxu0 0.0
  %335 = vmatprep.subr.mxu0 0.0
  %336 = vmatpush1.msra.mxu0 0.0
  %337 = vmatprep.subr.mxu0 0.0
  %338 = vmatpush1.msra.mxu0 0.0
  %339 = vmatprep.subr.mxu0 0.0
  %340 = vmatpush1.msra.mxu0 0.0
  %341 = vmatprep.subr.mxu0 0.0
  %342 = vmatpush1.msra.mxu0 0.0
  %343 = vmatprep.subr.mxu0 0.0
  %344 = vmatpush1.msra.mxu0 0.0
  %345 = vmatprep.subr.mxu0 0.0
  %346 = vmatpush1.msra.mxu0 0.0
  %347 = vmatprep.subr.mxu0 0.0
  %348 = vmatpush1.msra.mxu0 0.0
  %349 = vmatprep.subr.mxu0 0.0
  %350 = vmatpush1.msra.mxu0 0.0
  %351 = vmatprep.subr.mxu0 0.0
  %352 = vmatpush1.msra.mxu0 0.0
  %353 = vmatprep.subr.mxu0 0.0
  %354 = vmatpush1.msra.mxu0 0.0
  %355 = vmatprep.subr.mxu0 0.0
  %356 = vmatpush1.msra.mxu0 0.0
  %357 = vmatprep.mubr.f32.mxu0 0.0
  %358 = vmatmul.mubr.f32.gmra.mrb[0].mxu0 %v206
  %v359 = vpop.f32.mrb[0].mxu0
  %v360 = vadd.f32 %v291, %v359
  %v361 = vpop.f32.mrb[0].mxu0
  %362 = vmatprep.mubr.f32.mxu0 0.0
  %363 = vmatmul.mubr.f32.gmra.mrb[0].mxu0 %v209
  %v364 = vpop.f32.mrb[0].mxu0
  %v365 = vadd.f32 %v291, %v364
  %v366 = vpop.f32.mrb[0].mxu0
  %367 = vdwg.mxu0
  %v368 = vld [vmem:[%s9] sm:$0x1]
  %v370 = vlaneseq
  %v371 = vshrl.u32 %v370, 7
  %v372 = vsub.s32 0, %v371
  %v373 = vrot.slane %v368, %v372
  %375 = vmatprep.subr.mxu0 0.0
  %376 = vmatpush1.msra.mxu0 %v181
  %377 = vmatprep.subr.mxu0 0.0
  %378 = vmatpush1.msra.mxu0 %v182
  %379 = vmatprep.subr.mxu0 0.0
  %380 = vmatpush1.msra.mxu0 %v183
  %381 = vmatprep.subr.mxu0 0.0
  %382 = vmatpush1.msra.mxu0 %v184
  %383 = vmatprep.subr.mxu0 0.0
  %384 = vmatpush1.msra.mxu0 %v185
  %385 = vmatprep.subr.mxu0 0.0
  %386 = vmatpush1.msra.mxu0 %v186
  %387 = vmatprep.subr.mxu0 0.0
  %388 = vmatpush1.msra.mxu0 %v187
  %389 = vmatprep.subr.mxu0 0.0
  %390 = vmatpush1.msra.mxu0 %v188
  %391 = vmatprep.subr.mxu0 0.0
  %392 = vmatpush1.msra.mxu0 0.0
  %393 = vmatprep.subr.mxu0 0.0
  %394 = vmatpush1.msra.mxu0 0.0
  %395 = vmatprep.subr.mxu0 0.0
  %396 = vmatpush1.msra.mxu0 0.0
  %397 = vmatprep.subr.mxu0 0.0
  %398 = vmatpush1.msra.mxu0 0.0
  %399 = vmatprep.subr.mxu0 0.0
  %400 = vmatpush1.msra.mxu0 0.0
  %401 = vmatprep.subr.mxu0 0.0
  %402 = vmatpush1.msra.mxu0 0.0
  %403 = vmatprep.subr.mxu0 0.0
  %404 = vmatpush1.msra.mxu0 0.0
  %405 = vmatprep.subr.mxu0 0.0
  %406 = vmatpush1.msra.mxu0 0.0
  %407 = vmatprep.subr.mxu0 0.0
  %408 = vmatpush1.msra.mxu0 0.0
  %409 = vmatprep.subr.mxu0 0.0
  %410 = vmatpush1.msra.mxu0 0.0
  %411 = vmatprep.subr.mxu0 0.0
  %412 = vmatpush1.msra.mxu0 0.0
  %413 = vmatprep.subr.mxu0 0.0
  %414 = vmatpush1.msra.mxu0 0.0
  %415 = vmatprep.subr.mxu0 0.0
  %416 = vmatpush1.msra.mxu0 0.0
  %417 = vmatprep.subr.mxu0 0.0
  %418 = vmatpush1.msra.mxu0 0.0
  %419 = vmatprep.subr.mxu0 0.0
  %420 = vmatpush1.msra.mxu0 0.0
  %421 = vmatprep.subr.mxu0 0.0
  %422 = vmatpush1.msra.mxu0 0.0
  %423 = vmatprep.subr.mxu0 0.0
  %424 = vmatpush1.msra.mxu0 0.0
  %425 = vmatprep.subr.mxu0 0.0
  %426 = vmatpush1.msra.mxu0 0.0
  %427 = vmatprep.subr.mxu0 0.0
  %428 = vmatpush1.msra.mxu0 0.0
  %429 = vmatprep.subr.mxu0 0.0
  %430 = vmatpush1.msra.mxu0 0.0
  %431 = vmatprep.subr.mxu0 0.0
  %432 = vmatpush1.msra.mxu0 0.0
  %433 = vmatprep.subr.mxu0 0.0
  %434 = vmatpush1.msra.mxu0 0.0
  %435 = vmatprep.subr.mxu0 0.0
  %436 = vmatpush1.msra.mxu0 0.0
  %437 = vmatprep.subr.mxu0 0.0
  %438 = vmatpush1.msra.mxu0 0.0
  %439 = vmatprep.mubr.f32.mxu0 0.0
  %440 = vmatmul.mubr.f32.gmra.mrb[0].mxu0 %v206
  %v441 = vpop.f32.mrb[0].mxu0
  %v442 = vadd.f32 %v373, %v441
  %v443 = vpop.f32.mrb[0].mxu0
  %444 = vmatprep.mubr.f32.mxu0 0.0
  %445 = vmatmul.mubr.f32.gmra.mrb[0].mxu0 %v209
  %v446 = vpop.f32.mrb[0].mxu0
  %v447 = vadd.f32 %v373, %v446
  %v448 = vpop.f32.mrb[0].mxu0
  %449 = vdwg.mxu0
  %vm450 = vcmask 130048
  %v452 = vsel %vm450, %v278, 0
  %v455 = vsel %vm450, %v360, 0
  %457 = vmatprep.subr.mxu0 0.0
  %458 = vmatpush1.xpose.msra.mxu0 %v455
  %459 = vmatprep.subr.mxu0 0.0
  %460 = vmatpush1.xpose.msra.mxu0 0.0
  %461 = vmatprep.subr.mxu0 0.0
  %462 = vmatpush1.xpose.msra.mxu0 0.0
  %463 = vmatprep.subr.mxu0 0.0
  %464 = vmatpush1.xpose.msra.mxu0 0.0
  %465 = vmatprep.subr.mxu0 0.0
  %466 = vmatpush1.xpose.msra.mxu0 0.0
  %467 = vmatprep.subr.mxu0 0.0
  %468 = vmatpush1.xpose.msra.mxu0 0.0
  %469 = vmatprep.subr.mxu0 0.0
  %470 = vmatpush1.xpose.msra.mxu0 0.0
  %471 = vmatprep.subr.mxu0 0.0
  %472 = vmatpush1.xpose.msra.mxu0 0.0
  %473 = vmatprep.subr.mxu0 0.0
  %474 = vmatpush1.xpose.msra.mxu0 0.0
  %475 = vmatprep.subr.mxu0 0.0
  %476 = vmatpush1.xpose.msra.mxu0 0.0
  %477 = vmatprep.subr.mxu0 0.0
  %478 = vmatpush1.xpose.msra.mxu0 0.0
  %479 = vmatprep.subr.mxu0 0.0
  %480 = vmatpush1.xpose.msra.mxu0 0.0
  %481 = vmatprep.subr.mxu0 0.0
  %482 = vmatpush1.xpose.msra.mxu0 0.0
  %483 = vmatprep.subr.mxu0 0.0
  %484 = vmatpush1.xpose.msra.mxu0 0.0
  %485 = vmatprep.subr.mxu0 0.0
  %486 = vmatpush1.xpose.msra.mxu0 0.0
  %487 = vmatprep.subr.mxu0 0.0
  %488 = vmatpush1.xpose.msra.mxu0 0.0
  %489 = vmatprep.subr.mxu0 0.0
  %490 = vmatpush1.xpose.msra.mxu0 0.0
  %491 = vmatprep.subr.mxu0 0.0
  %492 = vmatpush1.xpose.msra.mxu0 0.0
  %493 = vmatprep.subr.mxu0 0.0
  %494 = vmatpush1.xpose.msra.mxu0 0.0
  %495 = vmatprep.subr.mxu0 0.0
  %496 = vmatpush1.xpose.msra.mxu0 0.0
  %497 = vmatprep.subr.mxu0 0.0
  %498 = vmatpush1.xpose.msra.mxu0 0.0
  %499 = vmatprep.subr.mxu0 0.0
  %500 = vmatpush1.xpose.msra.mxu0 0.0
  %501 = vmatprep.subr.mxu0 0.0
  %502 = vmatpush1.xpose.msra.mxu0 0.0
  %503 = vmatprep.subr.mxu0 0.0
  %504 = vmatpush1.xpose.msra.mxu0 0.0
  %505 = vmatprep.subr.mxu0 0.0
  %506 = vmatpush1.xpose.msra.mxu0 0.0
  %507 = vmatprep.subr.mxu0 0.0
  %508 = vmatpush1.xpose.msra.mxu0 0.0
  %509 = vmatprep.subr.mxu0 0.0
  %510 = vmatpush1.xpose.msra.mxu0 0.0
  %511 = vmatprep.subr.mxu0 0.0
  %512 = vmatpush1.xpose.msra.mxu0 0.0
  %513 = vmatprep.subr.mxu0 0.0
  %514 = vmatpush1.xpose.msra.mxu0 0.0
  %515 = vmatprep.subr.mxu0 0.0
  %516 = vmatpush1.xpose.msra.mxu0 0.0
  %517 = vmatprep.subr.mxu0 0.0
  %518 = vmatpush1.xpose.msra.mxu0 0.0
  %519 = vmatprep.subr.mxu0 0.0
  %520 = vmatpush1.xpose.msra.mxu0 0.0
  %521 = vmatprep.mubr.f32.mxu0 0.0
  %522 = vmatmul.mubr.f32.gmra.mrb[0].mxu0 %v452
  %v523 = vpop.f32.mrb[0].mxu0
  %v524 = vadd.f32 0.0, %v523
  %v525 = vpop.f32.mrb[0].mxu0
  %526 = vdwg.mxu0
  %527 = vrot.lane.b32.xlu0 %v278, 112
  %v528 = vpop.permute.xlu0 %527
  %529 = vrot.lane.b32.xlu0 %v360, 112
  %v530 = vpop.permute.xlu0 %529
  %v531 = vsel %vm450, %v528, 0
  %v533 = vsel %vm450, %v530, 0
  %535 = vmatprep.subr.mxu0 0.0
  %536 = vmatpush1.xpose.msra.mxu0 %v533
  %537 = vmatprep.subr.mxu0 0.0
  %538 = vmatpush1.xpose.msra.mxu0 0.0
  %539 = vmatprep.subr.mxu0 0.0
  %540 = vmatpush1.xpose.msra.mxu0 0.0
  %541 = vmatprep.subr.mxu0 0.0
  %542 = vmatpush1.xpose.msra.mxu0 0.0
  %543 = vmatprep.subr.mxu0 0.0
  %544 = vmatpush1.xpose.msra.mxu0 0.0
  %545 = vmatprep.subr.mxu0 0.0
  %546 = vmatpush1.xpose.msra.mxu0 0.0
  %547 = vmatprep.subr.mxu0 0.0
  %548 = vmatpush1.xpose.msra.mxu0 0.0
  %549 = vmatprep.subr.mxu0 0.0
  %550 = vmatpush1.xpose.msra.mxu0 0.0
  %551 = vmatprep.subr.mxu0 0.0
  %552 = vmatpush1.xpose.msra.mxu0 0.0
  %553 = vmatprep.subr.mxu0 0.0
  %554 = vmatpush1.xpose.msra.mxu0 0.0
  %555 = vmatprep.subr.mxu0 0.0
  %556 = vmatpush1.xpose.msra.mxu0 0.0
  %557 = vmatprep.subr.mxu0 0.0
  %558 = vmatpush1.xpose.msra.mxu0 0.0
  %559 = vmatprep.subr.mxu0 0.0
  %560 = vmatpush1.xpose.msra.mxu0 0.0
  %561 = vmatprep.subr.mxu0 0.0
  %562 = vmatpush1.xpose.msra.mxu0 0.0
  %563 = vmatprep.subr.mxu0 0.0
  %564 = vmatpush1.xpose.msra.mxu0 0.0
  %565 = vmatprep.subr.mxu0 0.0
  %566 = vmatpush1.xpose.msra.mxu0 0.0
  %567 = vmatprep.subr.mxu0 0.0
  %568 = vmatpush1.xpose.msra.mxu0 0.0
  %569 = vmatprep.subr.mxu0 0.0
  %570 = vmatpush1.xpose.msra.mxu0 0.0
  %571 = vmatprep.subr.mxu0 0.0
  %572 = vmatpush1.xpose.msra.mxu0 0.0
  %573 = vmatprep.subr.mxu0 0.0
  %574 = vmatpush1.xpose.msra.mxu0 0.0
  %575 = vmatprep.subr.mxu0 0.0
  %576 = vmatpush1.xpose.msra.mxu0 0.0
  %577 = vmatprep.subr.mxu0 0.0
  %578 = vmatpush1.xpose.msra.mxu0 0.0
  %579 = vmatprep.subr.mxu0 0.0
  %580 = vmatpush1.xpose.msra.mxu0 0.0
  %581 = vmatprep.subr.mxu0 0.0
  %582 = vmatpush1.xpose.msra.mxu0 0.0
  %583 = vmatprep.subr.mxu0 0.0
  %584 = vmatpush1.xpose.msra.mxu0 0.0
  %585 = vmatprep.subr.mxu0 0.0
  %586 = vmatpush1.xpose.msra.mxu0 0.0
  %587 = vmatprep.subr.mxu0 0.0
  %588 = vmatpush1.xpose.msra.mxu0 0.0
  %589 = vmatprep.subr.mxu0 0.0
  %590 = vmatpush1.xpose.msra.mxu0 0.0
  %591 = vmatprep.subr.mxu0 0.0
  %592 = vmatpush1.xpose.msra.mxu0 0.0
  %593 = vmatprep.subr.mxu0 0.0
  %594 = vmatpush1.xpose.msra.mxu0 0.0
  %595 = vmatprep.subr.mxu0 0.0
  %596 = vmatpush1.xpose.msra.mxu0 0.0
  %597 = vmatprep.subr.mxu0 0.0
  %598 = vmatpush1.xpose.msra.mxu0 0.0
  %599 = vmatprep.mubr.f32.mxu0 0.0
  %600 = vmatmul.mubr.f32.gmra.mrb[0].mxu0 %v531
  %v601 = vpop.f32.mrb[0].mxu0
  %v602 = vadd.f32 0.0, %v601
  %v603 = vpop.f32.mrb[0].mxu0
  %604 = vdwg.mxu0
  %605 = vrot.lane.b32.xlu0 %v278, 96
  %v606 = vpop.permute.xlu0 %605
  %607 = vrot.lane.b32.xlu0 %v360, 96
  %v608 = vpop.permute.xlu0 %607
  %v609 = vsel %vm450, %v606, 0
  %v611 = vsel %vm450, %v608, 0
  %613 = vmatprep.subr.mxu0 0.0
  %614 = vmatpush1.xpose.msra.mxu0 %v611
  %615 = vmatprep.subr.mxu0 0.0
  %616 = vmatpush1.xpose.msra.mxu0 0.0
  %617 = vmatprep.subr.mxu0 0.0
  %618 = vmatpush1.xpose.msra.mxu0 0.0
  %619 = vmatprep.subr.mxu0 0.0
  %620 = vmatpush1.xpose.msra.mxu0 0.0
  %621 = vmatprep.subr.mxu0 0.0
  %622 = vmatpush1.xpose.msra.mxu0 0.0
  %623 = vmatprep.subr.mxu0 0.0
  %624 = vmatpush1.xpose.msra.mxu0 0.0
  %625 = vmatprep.subr.mxu0 0.0
  %626 = vmatpush1.xpose.msra.mxu0 0.0
  %627 = vmatprep.subr.mxu0 0.0
  %628 = vmatpush1.xpose.msra.mxu0 0.0
  %629 = vmatprep.subr.mxu0 0.0
  %630 = vmatpush1.xpose.msra.mxu0 0.0
  %631 = vmatprep.subr.mxu0 0.0
  %632 = vmatpush1.xpose.msra.mxu0 0.0
  %633 = vmatprep.subr.mxu0 0.0
  %634 = vmatpush1.xpose.msra.mxu0 0.0
  %635 = vmatprep.subr.mxu0 0.0
  %636 = vmatpush1.xpose.msra.mxu0 0.0
  %637 = vmatprep.subr.mxu0 0.0
  %638 = vmatpush1.xpose.msra.mxu0 0.0
  %639 = vmatprep.subr.mxu0 0.0
  %640 = vmatpush1.xpose.msra.mxu0 0.0
  %641 = vmatprep.subr.mxu0 0.0
  %642 = vmatpush1.xpose.msra.mxu0 0.0
  %643 = vmatprep.subr.mxu0 0.0
  %644 = vmatpush1.xpose.msra.mxu0 0.0
  %645 = vmatprep.subr.mxu0 0.0
  %646 = vmatpush1.xpose.msra.mxu0 0.0
  %647 = vmatprep.subr.mxu0 0.0
  %648 = vmatpush1.xpose.msra.mxu0 0.0
  %649 = vmatprep.subr.mxu0 0.0
  %650 = vmatpush1.xpose.msra.mxu0 0.0
  %651 = vmatprep.subr.mxu0 0.0
  %652 = vmatpush1.xpose.msra.mxu0 0.0
  %653 = vmatprep.subr.mxu0 0.0
  %654 = vmatpush1.xpose.msra.mxu0 0.0
  %655 = vmatprep.subr.mxu0 0.0
  %656 = vmatpush1.xpose.msra.mxu0 0.0
  %657 = vmatprep.subr.mxu0 0.0
  %658 = vmatpush1.xpose.msra.mxu0 0.0
  %659 = vmatprep.subr.mxu0 0.0
  %660 = vmatpush1.xpose.msra.mxu0 0.0
  %661 = vmatprep.subr.mxu0 0.0
  %662 = vmatpush1.xpose.msra.mxu0 0.0
  %663 = vmatprep.subr.mxu0 0.0
  %664 = vmatpush1.xpose.msra.mxu0 0.0
  %665 = vmatprep.subr.mxu0 0.0
  %666 = vmatpush1.xpose.msra.mxu0 0.0
  %667 = vmatprep.subr.mxu0 0.0
  %668 = vmatpush1.xpose.msra.mxu0 0.0
  %669 = vmatprep.subr.mxu0 0.0
  %670 = vmatpush1.xpose.msra.mxu0 0.0
  %671 = vmatprep.subr.mxu0 0.0
  %672 = vmatpush1.xpose.msra.mxu0 0.0
  %673 = vmatprep.subr.mxu0 0.0
  %674 = vmatpush1.xpose.msra.mxu0 0.0
  %675 = vmatprep.subr.mxu0 0.0
  %676 = vmatpush1.xpose.msra.mxu0 0.0
  %677 = vmatprep.mubr.f32.mxu0 0.0
  %678 = vmatmul.mubr.f32.gmra.mrb[0].mxu0 %v609
  %v679 = vpop.f32.mrb[0].mxu0
  %v680 = vadd.f32 0.0, %v679
  %v681 = vpop.f32.mrb[0].mxu0
  %682 = vdwg.mxu0
  %683 = vrot.lane.b32.xlu0 %v278, 80
  %v684 = vpop.permute.xlu0 %683
  %685 = vrot.lane.b32.xlu0 %v360, 80
  %v686 = vpop.permute.xlu0 %685
  %v687 = vsel %vm450, %v684, 0
  %v689 = vsel %vm450, %v686, 0
  %691 = vmatprep.subr.mxu0 0.0
  %692 = vmatpush1.xpose.msra.mxu0 %v689
  %693 = vmatprep.subr.mxu0 0.0
  %694 = vmatpush1.xpose.msra.mxu0 0.0
  %695 = vmatprep.subr.mxu0 0.0
  %696 = vmatpush1.xpose.msra.mxu0 0.0
  %697 = vmatprep.subr.mxu0 0.0
  %698 = vmatpush1.xpose.msra.mxu0 0.0
  %699 = vmatprep.subr.mxu0 0.0
  %700 = vmatpush1.xpose.msra.mxu0 0.0
  %701 = vmatprep.subr.mxu0 0.0
  %702 = vmatpush1.xpose.msra.mxu0 0.0
  %703 = vmatprep.subr.mxu0 0.0
  %704 = vmatpush1.xpose.msra.mxu0 0.0
  %705 = vmatprep.subr.mxu0 0.0
  %706 = vmatpush1.xpose.msra.mxu0 0.0
  %707 = vmatprep.subr.mxu0 0.0
  %708 = vmatpush1.xpose.msra.mxu0 0.0
  %709 = vmatprep.subr.mxu0 0.0
  %710 = vmatpush1.xpose.msra.mxu0 0.0
  %711 = vmatprep.subr.mxu0 0.0
  %712 = vmatpush1.xpose.msra.mxu0 0.0
  %713 = vmatprep.subr.mxu0 0.0
  %714 = vmatpush1.xpose.msra.mxu0 0.0
  %715 = vmatprep.subr.mxu0 0.0
  %716 = vmatpush1.xpose.msra.mxu0 0.0
  %717 = vmatprep.subr.mxu0 0.0
  %718 = vmatpush1.xpose.msra.mxu0 0.0
  %719 = vmatprep.subr.mxu0 0.0
  %720 = vmatpush1.xpose.msra.mxu0 0.0
  %721 = vmatprep.subr.mxu0 0.0
  %722 = vmatpush1.xpose.msra.mxu0 0.0
  %723 = vmatprep.subr.mxu0 0.0
  %724 = vmatpush1.xpose.msra.mxu0 0.0
  %725 = vmatprep.subr.mxu0 0.0
  %726 = vmatpush1.xpose.msra.mxu0 0.0
  %727 = vmatprep.subr.mxu0 0.0
  %728 = vmatpush1.xpose.msra.mxu0 0.0
  %729 = vmatprep.subr.mxu0 0.0
  %730 = vmatpush1.xpose.msra.mxu0 0.0
  %731 = vmatprep.subr.mxu0 0.0
  %732 = vmatpush1.xpose.msra.mxu0 0.0
  %733 = vmatprep.subr.mxu0 0.0
  %734 = vmatpush1.xpose.msra.mxu0 0.0
  %735 = vmatprep.subr.mxu0 0.0
  %736 = vmatpush1.xpose.msra.mxu0 0.0
  %737 = vmatprep.subr.mxu0 0.0
  %738 = vmatpush1.xpose.msra.mxu0 0.0
  %739 = vmatprep.subr.mxu0 0.0
  %740 = vmatpush1.xpose.msra.mxu0 0.0
  %741 = vmatprep.subr.mxu0 0.0
  %742 = vmatpush1.xpose.msra.mxu0 0.0
  %743 = vmatprep.subr.mxu0 0.0
  %744 = vmatpush1.xpose.msra.mxu0 0.0
  %745 = vmatprep.subr.mxu0 0.0
  %746 = vmatpush1.xpose.msra.mxu0 0.0
  %747 = vmatprep.subr.mxu0 0.0
  %748 = vmatpush1.xpose.msra.mxu0 0.0
  %749 = vmatprep.subr.mxu0 0.0
  %750 = vmatpush1.xpose.msra.mxu0 0.0
  %751 = vmatprep.subr.mxu0 0.0
  %752 = vmatpush1.xpose.msra.mxu0 0.0
  %753 = vmatprep.subr.mxu0 0.0
  %754 = vmatpush1.xpose.msra.mxu0 0.0
  %755 = vmatprep.mubr.f32.mxu0 0.0
  %756 = vmatmul.mubr.f32.gmra.mrb[0].mxu0 %v687
  %v757 = vpop.f32.mrb[0].mxu0
  %v758 = vadd.f32 0.0, %v757
  %v759 = vpop.f32.mrb[0].mxu0
  %760 = vdwg.mxu0
  %v762 = vsel %vm450, %v283, 0
  %v765 = vsel %vm450, %v365, 0
  %767 = vmatprep.subr.mxu0 0.0
  %768 = vmatpush1.xpose.msra.mxu0 %v765
  %769 = vmatprep.subr.mxu0 0.0
  %770 = vmatpush1.xpose.msra.mxu0 0.0
  %771 = vmatprep.subr.mxu0 0.0
  %772 = vmatpush1.xpose.msra.mxu0 0.0
  %773 = vmatprep.subr.mxu0 0.0
  %774 = vmatpush1.xpose.msra.mxu0 0.0
  %775 = vmatprep.subr.mxu0 0.0
  %776 = vmatpush1.xpose.msra.mxu0 0.0
  %777 = vmatprep.subr.mxu0 0.0
  %778 = vmatpush1.xpose.msra.mxu0 0.0
  %779 = vmatprep.subr.mxu0 0.0
  %780 = vmatpush1.xpose.msra.mxu0 0.0
  %781 = vmatprep.subr.mxu0 0.0
  %782 = vmatpush1.xpose.msra.mxu0 0.0
  %783 = vmatprep.subr.mxu0 0.0
  %784 = vmatpush1.xpose.msra.mxu0 0.0
  %785 = vmatprep.subr.mxu0 0.0
  %786 = vmatpush1.xpose.msra.mxu0 0.0
  %787 = vmatprep.subr.mxu0 0.0
  %788 = vmatpush1.xpose.msra.mxu0 0.0
  %789 = vmatprep.subr.mxu0 0.0
  %790 = vmatpush1.xpose.msra.mxu0 0.0
  %791 = vmatprep.subr.mxu0 0.0
  %792 = vmatpush1.xpose.msra.mxu0 0.0
  %793 = vmatprep.subr.mxu0 0.0
  %794 = vmatpush1.xpose.msra.mxu0 0.0
  %795 = vmatprep.subr.mxu0 0.0
  %796 = vmatpush1.xpose.msra.mxu0 0.0
  %797 = vmatprep.subr.mxu0 0.0
  %798 = vmatpush1.xpose.msra.mxu0 0.0
  %799 = vmatprep.subr.mxu0 0.0
  %800 = vmatpush1.xpose.msra.mxu0 0.0
  %801 = vmatprep.subr.mxu0 0.0
  %802 = vmatpush1.xpose.msra.mxu0 0.0
  %803 = vmatprep.subr.mxu0 0.0
  %804 = vmatpush1.xpose.msra.mxu0 0.0
  %805 = vmatprep.subr.mxu0 0.0
  %806 = vmatpush1.xpose.msra.mxu0 0.0
  %807 = vmatprep.subr.mxu0 0.0
  %808 = vmatpush1.xpose.msra.mxu0 0.0
  %809 = vmatprep.subr.mxu0 0.0
  %810 = vmatpush1.xpose.msra.mxu0 0.0
  %811 = vmatprep.subr.mxu0 0.0
  %812 = vmatpush1.xpose.msra.mxu0 0.0
  %813 = vmatprep.subr.mxu0 0.0
  %814 = vmatpush1.xpose.msra.mxu0 0.0
  %815 = vmatprep.subr.mxu0 0.0
  %816 = vmatpush1.xpose.msra.mxu0 0.0
  %817 = vmatprep.subr.mxu0 0.0
  %818 = vmatpush1.xpose.msra.mxu0 0.0
  %819 = vmatprep.subr.mxu0 0.0
  %820 = vmatpush1.xpose.msra.mxu0 0.0
  %821 = vmatprep.subr.mxu0 0.0
  %822 = vmatpush1.xpose.msra.mxu0 0.0
  %823 = vmatprep.subr.mxu0 0.0
  %824 = vmatpush1.xpose.msra.mxu0 0.0
  %825 = vmatprep.subr.mxu0 0.0
  %826 = vmatpush1.xpose.msra.mxu0 0.0
  %827 = vmatprep.subr.mxu0 0.0
  %828 = vmatpush1.xpose.msra.mxu0 0.0
  %829 = vmatprep.subr.mxu0 0.0
  %830 = vmatpush1.xpose.msra.mxu0 0.0
  %831 = vmatprep.mubr.f32.mxu0 0.0
  %832 = vmatmul.mubr.f32.gmra.mrb[0].mxu0 %v762
  %v833 = vpop.f32.mrb[0].mxu0
  %v834 = vadd.f32 0.0, %v833
  %v835 = vpop.f32.mrb[0].mxu0
  %836 = vdwg.mxu0
  %837 = vrot.lane.b32.xlu0 %v283, 112
  %v838 = vpop.permute.xlu0 %837
  %839 = vrot.lane.b32.xlu0 %v365, 112
  %v840 = vpop.permute.xlu0 %839
  %v841 = vsel %vm450, %v838, 0
  %v843 = vsel %vm450, %v840, 0
  %845 = vmatprep.subr.mxu0 0.0
  %846 = vmatpush1.xpose.msra.mxu0 %v843
  %847 = vmatprep.subr.mxu0 0.0
  %848 = vmatpush1.xpose.msra.mxu0 0.0
  %849 = vmatprep.subr.mxu0 0.0
  %850 = vmatpush1.xpose.msra.mxu0 0.0
  %851 = vmatprep.subr.mxu0 0.0
  %852 = vmatpush1.xpose.msra.mxu0 0.0
  %853 = vmatprep.subr.mxu0 0.0
  %854 = vmatpush1.xpose.msra.mxu0 0.0
  %855 = vmatprep.subr.mxu0 0.0
  %856 = vmatpush1.xpose.msra.mxu0 0.0
  %857 = vmatprep.subr.mxu0 0.0
  %858 = vmatpush1.xpose.msra.mxu0 0.0
  %859 = vmatprep.subr.mxu0 0.0
  %860 = vmatpush1.xpose.msra.mxu0 0.0
  %861 = vmatprep.subr.mxu0 0.0
  %862 = vmatpush1.xpose.msra.mxu0 0.0
  %863 = vmatprep.subr.mxu0 0.0
  %864 = vmatpush1.xpose.msra.mxu0 0.0
  %865 = vmatprep.subr.mxu0 0.0
  %866 = vmatpush1.xpose.msra.mxu0 0.0
  %867 = vmatprep.subr.mxu0 0.0
  %868 = vmatpush1.xpose.msra.mxu0 0.0
  %869 = vmatprep.subr.mxu0 0.0
  %870 = vmatpush1.xpose.msra.mxu0 0.0
  %871 = vmatprep.subr.mxu0 0.0
  %872 = vmatpush1.xpose.msra.mxu0 0.0
  %873 = vmatprep.subr.mxu0 0.0
  %874 = vmatpush1.xpose.msra.mxu0 0.0
  %875 = vmatprep.subr.mxu0 0.0
  %876 = vmatpush1.xpose.msra.mxu0 0.0
  %877 = vmatprep.subr.mxu0 0.0
  %878 = vmatpush1.xpose.msra.mxu0 0.0
  %879 = vmatprep.subr.mxu0 0.0
  %880 = vmatpush1.xpose.msra.mxu0 0.0
  %881 = vmatprep.subr.mxu0 0.0
  %882 = vmatpush1.xpose.msra.mxu0 0.0
  %883 = vmatprep.subr.mxu0 0.0
  %884 = vmatpush1.xpose.msra.mxu0 0.0
  %885 = vmatprep.subr.mxu0 0.0
  %886 = vmatpush1.xpose.msra.mxu0 0.0
  %887 = vmatprep.subr.mxu0 0.0
  %888 = vmatpush1.xpose.msra.mxu0 0.0
  %889 = vmatprep.subr.mxu0 0.0
  %890 = vmatpush1.xpose.msra.mxu0 0.0
  %891 = vmatprep.subr.mxu0 0.0
  %892 = vmatpush1.xpose.msra.mxu0 0.0
  %893 = vmatprep.subr.mxu0 0.0
  %894 = vmatpush1.xpose.msra.mxu0 0.0
  %895 = vmatprep.subr.mxu0 0.0
  %896 = vmatpush1.xpose.msra.mxu0 0.0
  %897 = vmatprep.subr.mxu0 0.0
  %898 = vmatpush1.xpose.msra.mxu0 0.0
  %899 = vmatprep.subr.mxu0 0.0
  %900 = vmatpush1.xpose.msra.mxu0 0.0
  %901 = vmatprep.subr.mxu0 0.0
  %902 = vmatpush1.xpose.msra.mxu0 0.0
  %903 = vmatprep.subr.mxu0 0.0
  %904 = vmatpush1.xpose.msra.mxu0 0.0
  %905 = vmatprep.subr.mxu0 0.0
  %906 = vmatpush1.xpose.msra.mxu0 0.0
  %907 = vmatprep.subr.mxu0 0.0
  %908 = vmatpush1.xpose.msra.mxu0 0.0
  %909 = vmatprep.mubr.f32.mxu0 0.0
  %910 = vmatmul.mubr.f32.gmra.mrb[0].mxu0 %v841
  %v911 = vpop.f32.mrb[0].mxu0
  %v912 = vadd.f32 0.0, %v911
  %v913 = vpop.f32.mrb[0].mxu0
  %914 = vdwg.mxu0
  %915 = vrot.lane.b32.xlu0 %v283, 96
  %v916 = vpop.permute.xlu0 %915
  %917 = vrot.lane.b32.xlu0 %v365, 96
  %v918 = vpop.permute.xlu0 %917
  %v919 = vsel %vm450, %v916, 0
  %v921 = vsel %vm450, %v918, 0
  %923 = vmatprep.subr.mxu0 0.0
  %924 = vmatpush1.xpose.msra.mxu0 %v921
  %925 = vmatprep.subr.mxu0 0.0
  %926 = vmatpush1.xpose.msra.mxu0 0.0
  %927 = vmatprep.subr.mxu0 0.0
  %928 = vmatpush1.xpose.msra.mxu0 0.0
  %929 = vmatprep.subr.mxu0 0.0
  %930 = vmatpush1.xpose.msra.mxu0 0.0
  %931 = vmatprep.subr.mxu0 0.0
  %932 = vmatpush1.xpose.msra.mxu0 0.0
  %933 = vmatprep.subr.mxu0 0.0
  %934 = vmatpush1.xpose.msra.mxu0 0.0
  %935 = vmatprep.subr.mxu0 0.0
  %936 = vmatpush1.xpose.msra.mxu0 0.0
  %937 = vmatprep.subr.mxu0 0.0
  %938 = vmatpush1.xpose.msra.mxu0 0.0
  %939 = vmatprep.subr.mxu0 0.0
  %940 = vmatpush1.xpose.msra.mxu0 0.0
  %941 = vmatprep.subr.mxu0 0.0
  %942 = vmatpush1.xpose.msra.mxu0 0.0
  %943 = vmatprep.subr.mxu0 0.0
  %944 = vmatpush1.xpose.msra.mxu0 0.0
  %945 = vmatprep.subr.mxu0 0.0
  %946 = vmatpush1.xpose.msra.mxu0 0.0
  %947 = vmatprep.subr.mxu0 0.0
  %948 = vmatpush1.xpose.msra.mxu0 0.0
  %949 = vmatprep.subr.mxu0 0.0
  %950 = vmatpush1.xpose.msra.mxu0 0.0
  %951 = vmatprep.subr.mxu0 0.0
  %952 = vmatpush1.xpose.msra.mxu0 0.0
  %953 = vmatprep.subr.mxu0 0.0
  %954 = vmatpush1.xpose.msra.mxu0 0.0
  %955 = vmatprep.subr.mxu0 0.0
  %956 = vmatpush1.xpose.msra.mxu0 0.0
  %957 = vmatprep.subr.mxu0 0.0
  %958 = vmatpush1.xpose.msra.mxu0 0.0
  %959 = vmatprep.subr.mxu0 0.0
  %960 = vmatpush1.xpose.msra.mxu0 0.0
  %961 = vmatprep.subr.mxu0 0.0
  %962 = vmatpush1.xpose.msra.mxu0 0.0
  %963 = vmatprep.subr.mxu0 0.0
  %964 = vmatpush1.xpose.msra.mxu0 0.0
  %965 = vmatprep.subr.mxu0 0.0
  %966 = vmatpush1.xpose.msra.mxu0 0.0
  %967 = vmatprep.subr.mxu0 0.0
  %968 = vmatpush1.xpose.msra.mxu0 0.0
  %969 = vmatprep.subr.mxu0 0.0
  %970 = vmatpush1.xpose.msra.mxu0 0.0
  %971 = vmatprep.subr.mxu0 0.0
  %972 = vmatpush1.xpose.msra.mxu0 0.0
  %973 = vmatprep.subr.mxu0 0.0
  %974 = vmatpush1.xpose.msra.mxu0 0.0
  %975 = vmatprep.subr.mxu0 0.0
  %976 = vmatpush1.xpose.msra.mxu0 0.0
  %977 = vmatprep.subr.mxu0 0.0
  %978 = vmatpush1.xpose.msra.mxu0 0.0
  %979 = vmatprep.subr.mxu0 0.0
  %980 = vmatpush1.xpose.msra.mxu0 0.0
  %981 = vmatprep.subr.mxu0 0.0
  %982 = vmatpush1.xpose.msra.mxu0 0.0
  %983 = vmatprep.subr.mxu0 0.0
  %984 = vmatpush1.xpose.msra.mxu0 0.0
  %985 = vmatprep.subr.mxu0 0.0
  %986 = vmatpush1.xpose.msra.mxu0 0.0
  %987 = vmatprep.mubr.f32.mxu0 0.0
  %988 = vmatmul.mubr.f32.gmra.mrb[0].mxu0 %v919
  %v989 = vpop.f32.mrb[0].mxu0
  %v990 = vadd.f32 0.0, %v989
  %v991 = vpop.f32.mrb[0].mxu0
  %992 = vdwg.mxu0
  %993 = vrot.lane.b32.xlu0 %v283, 80
  %v994 = vpop.permute.xlu0 %993
  %995 = vrot.lane.b32.xlu0 %v365, 80
  %v996 = vpop.permute.xlu0 %995
  %v997 = vsel %vm450, %v994, 0
  %v999 = vsel %vm450, %v996, 0
  %1001 = vmatprep.subr.mxu0 0.0
  %1002 = vmatpush1.xpose.msra.mxu0 %v999
  %1003 = vmatprep.subr.mxu0 0.0
  %1004 = vmatpush1.xpose.msra.mxu0 0.0
  %1005 = vmatprep.subr.mxu0 0.0
  %1006 = vmatpush1.xpose.msra.mxu0 0.0
  %1007 = vmatprep.subr.mxu0 0.0
  %1008 = vmatpush1.xpose.msra.mxu0 0.0
  %1009 = vmatprep.subr.mxu0 0.0
  %1010 = vmatpush1.xpose.msra.mxu0 0.0
  %1011 = vmatprep.subr.mxu0 0.0
  %1012 = vmatpush1.xpose.msra.mxu0 0.0
  %1013 = vmatprep.subr.mxu0 0.0
  %1014 = vmatpush1.xpose.msra.mxu0 0.0
  %1015 = vmatprep.subr.mxu0 0.0
  %1016 = vmatpush1.xpose.msra.mxu0 0.0
  %1017 = vmatprep.subr.mxu0 0.0
  %1018 = vmatpush1.xpose.msra.mxu0 0.0
  %1019 = vmatprep.subr.mxu0 0.0
  %1020 = vmatpush1.xpose.msra.mxu0 0.0
  %1021 = vmatprep.subr.mxu0 0.0
  %1022 = vmatpush1.xpose.msra.mxu0 0.0
  %1023 = vmatprep.subr.mxu0 0.0
  %1024 = vmatpush1.xpose.msra.mxu0 0.0
  %1025 = vmatprep.subr.mxu0 0.0
  %1026 = vmatpush1.xpose.msra.mxu0 0.0
  %1027 = vmatprep.subr.mxu0 0.0
  %1028 = vmatpush1.xpose.msra.mxu0 0.0
  %1029 = vmatprep.subr.mxu0 0.0
  %1030 = vmatpush1.xpose.msra.mxu0 0.0
  %1031 = vmatprep.subr.mxu0 0.0
  %1032 = vmatpush1.xpose.msra.mxu0 0.0
  %1033 = vmatprep.subr.mxu0 0.0
  %1034 = vmatpush1.xpose.msra.mxu0 0.0
  %1035 = vmatprep.subr.mxu0 0.0
  %1036 = vmatpush1.xpose.msra.mxu0 0.0
  %1037 = vmatprep.subr.mxu0 0.0
  %1038 = vmatpush1.xpose.msra.mxu0 0.0
  %1039 = vmatprep.subr.mxu0 0.0
  %1040 = vmatpush1.xpose.msra.mxu0 0.0
  %1041 = vmatprep.subr.mxu0 0.0
  %1042 = vmatpush1.xpose.msra.mxu0 0.0
  %1043 = vmatprep.subr.mxu0 0.0
  %1044 = vmatpush1.xpose.msra.mxu0 0.0
  %1045 = vmatprep.subr.mxu0 0.0
  %1046 = vmatpush1.xpose.msra.mxu0 0.0
  %1047 = vmatprep.subr.mxu0 0.0
  %1048 = vmatpush1.xpose.msra.mxu0 0.0
  %1049 = vmatprep.subr.mxu0 0.0
  %1050 = vmatpush1.xpose.msra.mxu0 0.0
  %1051 = vmatprep.subr.mxu0 0.0
  %1052 = vmatpush1.xpose.msra.mxu0 0.0
  %1053 = vmatprep.subr.mxu0 0.0
  %1054 = vmatpush1.xpose.msra.mxu0 0.0
  %1055 = vmatprep.subr.mxu0 0.0
  %1056 = vmatpush1.xpose.msra.mxu0 0.0
  %1057 = vmatprep.subr.mxu0 0.0
  %1058 = vmatpush1.xpose.msra.mxu0 0.0
  %1059 = vmatprep.subr.mxu0 0.0
  %1060 = vmatpush1.xpose.msra.mxu0 0.0
  %1061 = vmatprep.subr.mxu0 0.0
  %1062 = vmatpush1.xpose.msra.mxu0 0.0
  %1063 = vmatprep.subr.mxu0 0.0
  %1064 = vmatpush1.xpose.msra.mxu0 0.0
  %1065 = vmatprep.mubr.f32.mxu0 0.0
  %1066 = vmatmul.mubr.f32.gmra.mrb[0].mxu0 %v997
  %v1067 = vpop.f32.mrb[0].mxu0
  %v1068 = vadd.f32 0.0, %v1067
  %v1069 = vpop.f32.mrb[0].mxu0
  %1070 = vdwg.mxu0
  %v1071 = vmul.f32 %v524, 0.25
  %v1072 = vmul.f32 %v602, 0.25
  %v1073 = vmul.f32 %v680, 0.25
  %v1074 = vmul.f32 %v758, 0.25
  %v1075 = vmul.f32 %v834, 0.25
  %v1076 = vmul.f32 %v912, 0.25
  %v1077 = vmul.f32 %v990, 0.25
  %v1078 = vmul.f32 %v1068, 0.25
  %vm1079 = vcmask 64512
  %v1080 = vsel %vm1079, %v1071, -inf
  %1081 = vmax.xlane.f32.xlu0 %v1080
  %v1082 = vpop.xlane.xlu0 %1081
  %v1083 = vsel %vm1079, %v1072, -inf
  %1084 = vmax.xlane.f32.xlu0 %v1083
  %v1085 = vpop.xlane.xlu0 %1084
  %v1086 = vsel %vm1079, %v1073, -inf
  %1087 = vmax.xlane.f32.xlu0 %v1086
  %v1088 = vpop.xlane.xlu0 %1087
  %v1089 = vsel %vm1079, %v1074, -inf
  %1090 = vmax.xlane.f32.xlu0 %v1089
  %v1091 = vpop.xlane.xlu0 %1090
  %v1092 = vsel %vm1079, %v1075, -inf
  %1093 = vmax.xlane.f32.xlu0 %v1092
  %v1094 = vpop.xlane.xlu0 %1093
  %v1095 = vsel %vm1079, %v1076, -inf
  %1096 = vmax.xlane.f32.xlu0 %v1095
  %v1097 = vpop.xlane.xlu0 %1096
  %v1098 = vsel %vm1079, %v1077, -inf
  %1099 = vmax.xlane.f32.xlu0 %v1098
  %v1100 = vpop.xlane.xlu0 %1099
  %v1101 = vsel %vm1079, %v1078, -inf
  %1102 = vmax.xlane.f32.xlu0 %v1101
  %v1103 = vpop.xlane.xlu0 %1102
  %v1104 = vsub.f32 %v1071, %v1082
  %v1105 = vsub.f32 %v1072, %v1085
  %v1106 = vsub.f32 %v1073, %v1088
  %v1107 = vsub.f32 %v1074, %v1091
  %v1108 = vsub.f32 %v1075, %v1094
  %v1109 = vsub.f32 %v1076, %v1097
  %v1110 = vsub.f32 %v1077, %v1100
  %v1111 = vsub.f32 %v1078, %v1103
  %v1112 = vmul.f32 %v1104, 1.442695
  %v1113 = vpow.pop %v1112
  %v1114 = vmul.f32 %v1105, 1.442695
  %v1115 = vpow.pop %v1114
  %v1116 = vmul.f32 %v1106, 1.442695
  %v1117 = vpow.pop %v1116
  %v1118 = vmul.f32 %v1107, 1.442695
  %v1119 = vpow.pop %v1118
  %v1120 = vmul.f32 %v1108, 1.442695
  %v1121 = vpow.pop %v1120
  %v1122 = vmul.f32 %v1109, 1.442695
  %v1123 = vpow.pop %v1122
  %v1124 = vmul.f32 %v1110, 1.442695
  %v1125 = vpow.pop %v1124
  %v1126 = vmul.f32 %v1111, 1.442695
  %v1127 = vpow.pop %v1126
  %v1128 = vsel %vm1079, %v1113, 0.0
  %1129 = vadd.xlane.f32.xlu0 %v1128
  %v1130 = vpop.xlane.xlu0 %1129
  %v1131 = vsel %vm1079, %v1115, 0.0
  %1132 = vadd.xlane.f32.xlu0 %v1131
  %v1133 = vpop.xlane.xlu0 %1132
  %v1134 = vsel %vm1079, %v1117, 0.0
  %1135 = vadd.xlane.f32.xlu0 %v1134
  %v1136 = vpop.xlane.xlu0 %1135
  %v1137 = vsel %vm1079, %v1119, 0.0
  %1138 = vadd.xlane.f32.xlu0 %v1137
  %v1139 = vpop.xlane.xlu0 %1138
  %v1140 = vsel %vm1079, %v1121, 0.0
  %1141 = vadd.xlane.f32.xlu0 %v1140
  %v1142 = vpop.xlane.xlu0 %1141
  %v1143 = vsel %vm1079, %v1123, 0.0
  %1144 = vadd.xlane.f32.xlu0 %v1143
  %v1145 = vpop.xlane.xlu0 %1144
  %v1146 = vsel %vm1079, %v1125, 0.0
  %1147 = vadd.xlane.f32.xlu0 %v1146
  %v1148 = vpop.xlane.xlu0 %1147
  %v1149 = vsel %vm1079, %v1127, 0.0
  %1150 = vadd.xlane.f32.xlu0 %v1149
  %v1151 = vpop.xlane.xlu0 %1150
  %v1152 = vrcp.pop %v1130
  %v1153 = vrcp.pop %v1133
  %v1154 = vrcp.pop %v1136
  %v1155 = vrcp.pop %v1139
  %v1156 = vrcp.pop %v1142
  %v1157 = vrcp.pop %v1145
  %v1158 = vrcp.pop %v1148
  %v1159 = vrcp.pop %v1151
  %v1160 = vmul.f32 %v1113, %v1152
  %v1161 = vmul.f32 %v1115, %v1153
  %v1162 = vmul.f32 %v1117, %v1154
  %v1163 = vmul.f32 %v1119, %v1155
  %v1164 = vmul.f32 %v1121, %v1156
  %v1165 = vmul.f32 %v1123, %v1157
  %v1166 = vmul.f32 %v1125, %v1158
  %v1167 = vmul.f32 %v1127, %v1159
  %v1169 = vsel %vm1079, %v1160, 0
  %1171 = vmatprep.subr.mxu0 0.0
  %1172 = vmatpush1.msra.mxu0 %v442
  %1173 = vmatprep.subr.mxu0 0.0
  %1174 = vmatpush1.msra.mxu0 0.0
  %1175 = vmatprep.subr.mxu0 0.0
  %1176 = vmatpush1.msra.mxu0 0.0
  %1177 = vmatprep.subr.mxu0 0.0
  %1178 = vmatpush1.msra.mxu0 0.0
  %1179 = vmatprep.subr.mxu0 0.0
  %1180 = vmatpush1.msra.mxu0 0.0
  %1181 = vmatprep.subr.mxu0 0.0
  %1182 = vmatpush1.msra.mxu0 0.0
  %1183 = vmatprep.subr.mxu0 0.0
  %1184 = vmatpush1.msra.mxu0 0.0
  %1185 = vmatprep.subr.mxu0 0.0
  %1186 = vmatpush1.msra.mxu0 0.0
  %1187 = vmatprep.subr.mxu0 0.0
  %1188 = vmatpush1.msra.mxu0 0.0
  %1189 = vmatprep.subr.mxu0 0.0
  %1190 = vmatpush1.msra.mxu0 0.0
  %1191 = vmatprep.subr.mxu0 0.0
  %1192 = vmatpush1.msra.mxu0 0.0
  %1193 = vmatprep.subr.mxu0 0.0
  %1194 = vmatpush1.msra.mxu0 0.0
  %1195 = vmatprep.subr.mxu0 0.0
  %1196 = vmatpush1.msra.mxu0 0.0
  %1197 = vmatprep.subr.mxu0 0.0
  %1198 = vmatpush1.msra.mxu0 0.0
  %1199 = vmatprep.subr.mxu0 0.0
  %1200 = vmatpush1.msra.mxu0 0.0
  %1201 = vmatprep.subr.mxu0 0.0
  %1202 = vmatpush1.msra.mxu0 0.0
  %1203 = vmatprep.subr.mxu0 0.0
  %1204 = vmatpush1.msra.mxu0 0.0
  %1205 = vmatprep.subr.mxu0 0.0
  %1206 = vmatpush1.msra.mxu0 0.0
  %1207 = vmatprep.subr.mxu0 0.0
  %1208 = vmatpush1.msra.mxu0 0.0
  %1209 = vmatprep.subr.mxu0 0.0
  %1210 = vmatpush1.msra.mxu0 0.0
  %1211 = vmatprep.subr.mxu0 0.0
  %1212 = vmatpush1.msra.mxu0 0.0
  %1213 = vmatprep.subr.mxu0 0.0
  %1214 = vmatpush1.msra.mxu0 0.0
  %1215 = vmatprep.subr.mxu0 0.0
  %1216 = vmatpush1.msra.mxu0 0.0
  %1217 = vmatprep.subr.mxu0 0.0
  %1218 = vmatpush1.msra.mxu0 0.0
  %1219 = vmatprep.subr.mxu0 0.0
  %1220 = vmatpush1.msra.mxu0 0.0
  %1221 = vmatprep.subr.mxu0 0.0
  %1222 = vmatpush1.msra.mxu0 0.0
  %1223 = vmatprep.subr.mxu0 0.0
  %1224 = vmatpush1.msra.mxu0 0.0
  %1225 = vmatprep.subr.mxu0 0.0
  %1226 = vmatpush1.msra.mxu0 0.0
  %1227 = vmatprep.subr.mxu0 0.0
  %1228 = vmatpush1.msra.mxu0 0.0
  %1229 = vmatprep.subr.mxu0 0.0
  %1230 = vmatpush1.msra.mxu0 0.0
  %1231 = vmatprep.subr.mxu0 0.0
  %1232 = vmatpush1.msra.mxu0 0.0
  %1233 = vmatprep.subr.mxu0 0.0
  %1234 = vmatpush1.msra.mxu0 0.0
  %1235 = vmatprep.mubr.f32.mxu0 0.0
  %1236 = vmatmul.mubr.f32.gmra.mrb[0].mxu0 %v1169
  %v1237 = vpop.f32.mrb[0].mxu0
  %v1238 = vadd.f32 0.0, %v1237
  %v1239 = vpop.f32.mrb[0].mxu0
  %1240 = vdwg.mxu0
  %1242 = vrot.lane.b32.xlu0 %v442, 112
  %v1243 = vpop.permute.xlu0 %1242
  %v1246 = vsel %vm1079, %v1161, 0
  %1248 = vmatprep.subr.mxu0 0.0
  %1249 = vmatpush1.msra.mxu0 %v1243
  %1250 = vmatprep.subr.mxu0 0.0
  %1251 = vmatpush1.msra.mxu0 0.0
  %1252 = vmatprep.subr.mxu0 0.0
  %1253 = vmatpush1.msra.mxu0 0.0
  %1254 = vmatprep.subr.mxu0 0.0
  %1255 = vmatpush1.msra.mxu0 0.0
  %1256 = vmatprep.subr.mxu0 0.0
  %1257 = vmatpush1.msra.mxu0 0.0
  %1258 = vmatprep.subr.mxu0 0.0
  %1259 = vmatpush1.msra.mxu0 0.0
  %1260 = vmatprep.subr.mxu0 0.0
  %1261 = vmatpush1.msra.mxu0 0.0
  %1262 = vmatprep.subr.mxu0 0.0
  %1263 = vmatpush1.msra.mxu0 0.0
  %1264 = vmatprep.subr.mxu0 0.0
  %1265 = vmatpush1.msra.mxu0 0.0
  %1266 = vmatprep.subr.mxu0 0.0
  %1267 = vmatpush1.msra.mxu0 0.0
  %1268 = vmatprep.subr.mxu0 0.0
  %1269 = vmatpush1.msra.mxu0 0.0
  %1270 = vmatprep.subr.mxu0 0.0
  %1271 = vmatpush1.msra.mxu0 0.0
  %1272 = vmatprep.subr.mxu0 0.0
  %1273 = vmatpush1.msra.mxu0 0.0
  %1274 = vmatprep.subr.mxu0 0.0
  %1275 = vmatpush1.msra.mxu0 0.0
  %1276 = vmatprep.subr.mxu0 0.0
  %1277 = vmatpush1.msra.mxu0 0.0
  %1278 = vmatprep.subr.mxu0 0.0
  %1279 = vmatpush1.msra.mxu0 0.0
  %1280 = vmatprep.subr.mxu0 0.0
  %1281 = vmatpush1.msra.mxu0 0.0
  %1282 = vmatprep.subr.mxu0 0.0
  %1283 = vmatpush1.msra.mxu0 0.0
  %1284 = vmatprep.subr.mxu0 0.0
  %1285 = vmatpush1.msra.mxu0 0.0
  %1286 = vmatprep.subr.mxu0 0.0
  %1287 = vmatpush1.msra.mxu0 0.0
  %1288 = vmatprep.subr.mxu0 0.0
  %1289 = vmatpush1.msra.mxu0 0.0
  %1290 = vmatprep.subr.mxu0 0.0
  %1291 = vmatpush1.msra.mxu0 0.0
  %1292 = vmatprep.subr.mxu0 0.0
  %1293 = vmatpush1.msra.mxu0 0.0
  %1294 = vmatprep.subr.mxu0 0.0
  %1295 = vmatpush1.msra.mxu0 0.0
  %1296 = vmatprep.subr.mxu0 0.0
  %1297 = vmatpush1.msra.mxu0 0.0
  %1298 = vmatprep.subr.mxu0 0.0
  %1299 = vmatpush1.msra.mxu0 0.0
  %1300 = vmatprep.subr.mxu0 0.0
  %1301 = vmatpush1.msra.mxu0 0.0
  %1302 = vmatprep.subr.mxu0 0.0
  %1303 = vmatpush1.msra.mxu0 0.0
  %1304 = vmatprep.subr.mxu0 0.0
  %1305 = vmatpush1.msra.mxu0 0.0
  %1306 = vmatprep.subr.mxu0 0.0
  %1307 = vmatpush1.msra.mxu0 0.0
  %1308 = vmatprep.subr.mxu0 0.0
  %1309 = vmatpush1.msra.mxu0 0.0
  %1310 = vmatprep.subr.mxu0 0.0
  %1311 = vmatpush1.msra.mxu0 0.0
  %1312 = vmatprep.mubr.f32.mxu0 0.0
  %1313 = vmatmul.mubr.f32.gmra.mrb[0].mxu0 %v1246
  %v1314 = vpop.f32.mrb[0].mxu0
  %v1315 = vadd.f32 0.0, %v1314
  %v1316 = vpop.f32.mrb[0].mxu0
  %1317 = vdwg.mxu0
  %v1319 = vsel %vm450, %v1315, 0
  %1321 = vmatprep.subr.mxu0 0.0
  %1322 = vmatpush1.msra.mxu0 %v191
  %1323 = vmatprep.subr.mxu0 0.0
  %1324 = vmatpush1.msra.mxu0 %v192
  %1325 = vmatprep.subr.mxu0 0.0
  %1326 = vmatpush1.msra.mxu0 0.0
  %1327 = vmatprep.subr.mxu0 0.0
  %1328 = vmatpush1.msra.mxu0 0.0
  %1329 = vmatprep.subr.mxu0 0.0
  %1330 = vmatpush1.msra.mxu0 0.0
  %1331 = vmatprep.subr.mxu0 0.0
  %1332 = vmatpush1.msra.mxu0 0.0
  %1333 = vmatprep.subr.mxu0 0.0
  %1334 = vmatpush1.msra.mxu0 0.0
  %1335 = vmatprep.subr.mxu0 0.0
  %1336 = vmatpush1.msra.mxu0 0.0
  %1337 = vmatprep.subr.mxu0 0.0
  %1338 = vmatpush1.msra.mxu0 0.0
  %1339 = vmatprep.subr.mxu0 0.0
  %1340 = vmatpush1.msra.mxu0 0.0
  %1341 = vmatprep.subr.mxu0 0.0
  %1342 = vmatpush1.msra.mxu0 0.0
  %1343 = vmatprep.subr.mxu0 0.0
  %1344 = vmatpush1.msra.mxu0 0.0
  %1345 = vmatprep.subr.mxu0 0.0
  %1346 = vmatpush1.msra.mxu0 0.0
  %1347 = vmatprep.subr.mxu0 0.0
  %1348 = vmatpush1.msra.mxu0 0.0
  %1349 = vmatprep.subr.mxu0 0.0
  %1350 = vmatpush1.msra.mxu0 0.0
  %1351 = vmatprep.subr.mxu0 0.0
  %1352 = vmatpush1.msra.mxu0 0.0
  %1353 = vmatprep.subr.mxu0 0.0
  %1354 = vmatpush1.msra.mxu0 0.0
  %1355 = vmatprep.subr.mxu0 0.0
  %1356 = vmatpush1.msra.mxu0 0.0
  %1357 = vmatprep.subr.mxu0 0.0
  %1358 = vmatpush1.msra.mxu0 0.0
  %1359 = vmatprep.subr.mxu0 0.0
  %1360 = vmatpush1.msra.mxu0 0.0
  %1361 = vmatprep.subr.mxu0 0.0
  %1362 = vmatpush1.msra.mxu0 0.0
  %1363 = vmatprep.subr.mxu0 0.0
  %1364 = vmatpush1.msra.mxu0 0.0
  %1365 = vmatprep.subr.mxu0 0.0
  %1366 = vmatpush1.msra.mxu0 0.0
  %1367 = vmatprep.subr.mxu0 0.0
  %1368 = vmatpush1.msra.mxu0 0.0
  %1369 = vmatprep.subr.mxu0 0.0
  %1370 = vmatpush1.msra.mxu0 0.0
  %1371 = vmatprep.subr.mxu0 0.0
  %1372 = vmatpush1.msra.mxu0 0.0
  %1373 = vmatprep.subr.mxu0 0.0
  %1374 = vmatpush1.msra.mxu0 0.0
  %1375 = vmatprep.subr.mxu0 0.0
  %1376 = vmatpush1.msra.mxu0 0.0
  %1377 = vmatprep.subr.mxu0 0.0
  %1378 = vmatpush1.msra.mxu0 0.0
  %1379 = vmatprep.subr.mxu0 0.0
  %1380 = vmatpush1.msra.mxu0 0.0
  %1381 = vmatprep.subr.mxu0 0.0
  %1382 = vmatpush1.msra.mxu0 0.0
  %1383 = vmatprep.subr.mxu0 0.0
  %1384 = vmatpush1.msra.mxu0 0.0
  %1385 = vmatprep.mubr.f32.mxu0 0.0
  %1386 = vmatmul.mubr.f32.gmra.mrb[0].mxu0 %v1319
  %v1387 = vpop.f32.mrb[0].mxu0
  %v1388 = vadd.f32 0.0, %v1387
  %v1389 = vpop.f32.mrb[0].mxu0
  %1390 = vdwg.mxu0
  %v1392 = vsel %vm450, %v1238, 0
  %1394 = vmatprep.subr.mxu0 0.0
  %1395 = vmatpush1.msra.mxu0 %v189
  %1396 = vmatprep.subr.mxu0 0.0
  %1397 = vmatpush1.msra.mxu0 %v190
  %1398 = vmatprep.subr.mxu0 0.0
  %1399 = vmatpush1.msra.mxu0 0.0
  %1400 = vmatprep.subr.mxu0 0.0
  %1401 = vmatpush1.msra.mxu0 0.0
  %1402 = vmatprep.subr.mxu0 0.0
  %1403 = vmatpush1.msra.mxu0 0.0
  %1404 = vmatprep.subr.mxu0 0.0
  %1405 = vmatpush1.msra.mxu0 0.0
  %1406 = vmatprep.subr.mxu0 0.0
  %1407 = vmatpush1.msra.mxu0 0.0
  %1408 = vmatprep.subr.mxu0 0.0
  %1409 = vmatpush1.msra.mxu0 0.0
  %1410 = vmatprep.subr.mxu0 0.0
  %1411 = vmatpush1.msra.mxu0 0.0
  %1412 = vmatprep.subr.mxu0 0.0
  %1413 = vmatpush1.msra.mxu0 0.0
  %1414 = vmatprep.subr.mxu0 0.0
  %1415 = vmatpush1.msra.mxu0 0.0
  %1416 = vmatprep.subr.mxu0 0.0
  %1417 = vmatpush1.msra.mxu0 0.0
  %1418 = vmatprep.subr.mxu0 0.0
  %1419 = vmatpush1.msra.mxu0 0.0
  %1420 = vmatprep.subr.mxu0 0.0
  %1421 = vmatpush1.msra.mxu0 0.0
  %1422 = vmatprep.subr.mxu0 0.0
  %1423 = vmatpush1.msra.mxu0 0.0
  %1424 = vmatprep.subr.mxu0 0.0
  %1425 = vmatpush1.msra.mxu0 0.0
  %1426 = vmatprep.subr.mxu0 0.0
  %1427 = vmatpush1.msra.mxu0 0.0
  %1428 = vmatprep.subr.mxu0 0.0
  %1429 = vmatpush1.msra.mxu0 0.0
  %1430 = vmatprep.subr.mxu0 0.0
  %1431 = vmatpush1.msra.mxu0 0.0
  %1432 = vmatprep.subr.mxu0 0.0
  %1433 = vmatpush1.msra.mxu0 0.0
  %1434 = vmatprep.subr.mxu0 0.0
  %1435 = vmatpush1.msra.mxu0 0.0
  %1436 = vmatprep.subr.mxu0 0.0
  %1437 = vmatpush1.msra.mxu0 0.0
  %1438 = vmatprep.subr.mxu0 0.0
  %1439 = vmatpush1.msra.mxu0 0.0
  %1440 = vmatprep.subr.mxu0 0.0
  %1441 = vmatpush1.msra.mxu0 0.0
  %1442 = vmatprep.subr.mxu0 0.0
  %1443 = vmatpush1.msra.mxu0 0.0
  %1444 = vmatprep.subr.mxu0 0.0
  %1445 = vmatpush1.msra.mxu0 0.0
  %1446 = vmatprep.subr.mxu0 0.0
  %1447 = vmatpush1.msra.mxu0 0.0
  %1448 = vmatprep.subr.mxu0 0.0
  %1449 = vmatpush1.msra.mxu0 0.0
  %1450 = vmatprep.subr.mxu0 0.0
  %1451 = vmatpush1.msra.mxu0 0.0
  %1452 = vmatprep.subr.mxu0 0.0
  %1453 = vmatpush1.msra.mxu0 0.0
  %1454 = vmatprep.subr.mxu0 0.0
  %1455 = vmatpush1.msra.mxu0 0.0
  %1456 = vmatprep.subr.mxu0 0.0
  %1457 = vmatpush1.msra.mxu0 0.0
  %1458 = vmatprep.mubr.f32.mxu0 0.0
  %1459 = vmatmul.mubr.f32.gmra.mrb[0].mxu0 %v1392
  %v1460 = vpop.f32.mrb[0].mxu0
  %v1461 = vadd.f32 %v1388, %v1460
  %v1462 = vpop.f32.mrb[0].mxu0
  %1463 = vdwg.mxu0
  %1464 = vrot.lane.b32.xlu0 %v442, 96
  %v1465 = vpop.permute.xlu0 %1464
  %v1468 = vsel %vm1079, %v1162, 0
  %1470 = vmatprep.subr.mxu0 0.0
  %1471 = vmatpush1.msra.mxu0 %v1465
  %1472 = vmatprep.subr.mxu0 0.0
  %1473 = vmatpush1.msra.mxu0 0.0
  %1474 = vmatprep.subr.mxu0 0.0
  %1475 = vmatpush1.msra.mxu0 0.0
  %1476 = vmatprep.subr.mxu0 0.0
  %1477 = vmatpush1.msra.mxu0 0.0
  %1478 = vmatprep.subr.mxu0 0.0
  %1479 = vmatpush1.msra.mxu0 0.0
  %1480 = vmatprep.subr.mxu0 0.0
  %1481 = vmatpush1.msra.mxu0 0.0
  %1482 = vmatprep.subr.mxu0 0.0
  %1483 = vmatpush1.msra.mxu0 0.0
  %1484 = vmatprep.subr.mxu0 0.0
  %1485 = vmatpush1.msra.mxu0 0.0
  %1486 = vmatprep.subr.mxu0 0.0
  %1487 = vmatpush1.msra.mxu0 0.0
  %1488 = vmatprep.subr.mxu0 0.0
  %1489 = vmatpush1.msra.mxu0 0.0
  %1490 = vmatprep.subr.mxu0 0.0
  %1491 = vmatpush1.msra.mxu0 0.0
  %1492 = vmatprep.subr.mxu0 0.0
  %1493 = vmatpush1.msra.mxu0 0.0
  %1494 = vmatprep.subr.mxu0 0.0
  %1495 = vmatpush1.msra.mxu0 0.0
  %1496 = vmatprep.subr.mxu0 0.0
  %1497 = vmatpush1.msra.mxu0 0.0
  %1498 = vmatprep.subr.mxu0 0.0
  %1499 = vmatpush1.msra.mxu0 0.0
  %1500 = vmatprep.subr.mxu0 0.0
  %1501 = vmatpush1.msra.mxu0 0.0
  %1502 = vmatprep.subr.mxu0 0.0
  %1503 = vmatpush1.msra.mxu0 0.0
  %1504 = vmatprep.subr.mxu0 0.0
  %1505 = vmatpush1.msra.mxu0 0.0
  %1506 = vmatprep.subr.mxu0 0.0
  %1507 = vmatpush1.msra.mxu0 0.0
  %1508 = vmatprep.subr.mxu0 0.0
  %1509 = vmatpush1.msra.mxu0 0.0
  %1510 = vmatprep.subr.mxu0 0.0
  %1511 = vmatpush1.msra.mxu0 0.0
  %1512 = vmatprep.subr.mxu0 0.0
  %1513 = vmatpush1.msra.mxu0 0.0
  %1514 = vmatprep.subr.mxu0 0.0
  %1515 = vmatpush1.msra.mxu0 0.0
  %1516 = vmatprep.subr.mxu0 0.0
  %1517 = vmatpush1.msra.mxu0 0.0
  %1518 = vmatprep.subr.mxu0 0.0
  %1519 = vmatpush1.msra.mxu0 0.0
  %1520 = vmatprep.subr.mxu0 0.0
  %1521 = vmatpush1.msra.mxu0 0.0
  %1522 = vmatprep.subr.mxu0 0.0
  %1523 = vmatpush1.msra.mxu0 0.0
  %1524 = vmatprep.subr.mxu0 0.0
  %1525 = vmatpush1.msra.mxu0 0.0
  %1526 = vmatprep.subr.mxu0 0.0
  %1527 = vmatpush1.msra.mxu0 0.0
  %1528 = vmatprep.subr.mxu0 0.0
  %1529 = vmatpush1.msra.mxu0 0.0
  %1530 = vmatprep.subr.mxu0 0.0
  %1531 = vmatpush1.msra.mxu0 0.0
  %1532 = vmatprep.subr.mxu0 0.0
  %1533 = vmatpush1.msra.mxu0 0.0
  %1534 = vmatprep.mubr.f32.mxu0 0.0
  %1535 = vmatmul.mubr.f32.gmra.mrb[0].mxu0 %v1468
  %v1536 = vpop.f32.mrb[0].mxu0
  %v1537 = vadd.f32 0.0, %v1536
  %v1538 = vpop.f32.mrb[0].mxu0
  %1539 = vdwg.mxu0
  %v1541 = vsel %vm450, %v1537, 0
  %1543 = vmatprep.subr.mxu0 0.0
  %1544 = vmatpush1.msra.mxu0 %v193
  %1545 = vmatprep.subr.mxu0 0.0
  %1546 = vmatpush1.msra.mxu0 %v194
  %1547 = vmatprep.subr.mxu0 0.0
  %1548 = vmatpush1.msra.mxu0 0.0
  %1549 = vmatprep.subr.mxu0 0.0
  %1550 = vmatpush1.msra.mxu0 0.0
  %1551 = vmatprep.subr.mxu0 0.0
  %1552 = vmatpush1.msra.mxu0 0.0
  %1553 = vmatprep.subr.mxu0 0.0
  %1554 = vmatpush1.msra.mxu0 0.0
  %1555 = vmatprep.subr.mxu0 0.0
  %1556 = vmatpush1.msra.mxu0 0.0
  %1557 = vmatprep.subr.mxu0 0.0
  %1558 = vmatpush1.msra.mxu0 0.0
  %1559 = vmatprep.subr.mxu0 0.0
  %1560 = vmatpush1.msra.mxu0 0.0
  %1561 = vmatprep.subr.mxu0 0.0
  %1562 = vmatpush1.msra.mxu0 0.0
  %1563 = vmatprep.subr.mxu0 0.0
  %1564 = vmatpush1.msra.mxu0 0.0
  %1565 = vmatprep.subr.mxu0 0.0
  %1566 = vmatpush1.msra.mxu0 0.0
  %1567 = vmatprep.subr.mxu0 0.0
  %1568 = vmatpush1.msra.mxu0 0.0
  %1569 = vmatprep.subr.mxu0 0.0
  %1570 = vmatpush1.msra.mxu0 0.0
  %1571 = vmatprep.subr.mxu0 0.0
  %1572 = vmatpush1.msra.mxu0 0.0
  %1573 = vmatprep.subr.mxu0 0.0
  %1574 = vmatpush1.msra.mxu0 0.0
  %1575 = vmatprep.subr.mxu0 0.0
  %1576 = vmatpush1.msra.mxu0 0.0
  %1577 = vmatprep.subr.mxu0 0.0
  %1578 = vmatpush1.msra.mxu0 0.0
  %1579 = vmatprep.subr.mxu0 0.0
  %1580 = vmatpush1.msra.mxu0 0.0
  %1581 = vmatprep.subr.mxu0 0.0
  %1582 = vmatpush1.msra.mxu0 0.0
  %1583 = vmatprep.subr.mxu0 0.0
  %1584 = vmatpush1.msra.mxu0 0.0
  %1585 = vmatprep.subr.mxu0 0.0
  %1586 = vmatpush1.msra.mxu0 0.0
  %1587 = vmatprep.subr.mxu0 0.0
  %1588 = vmatpush1.msra.mxu0 0.0
  %1589 = vmatprep.subr.mxu0 0.0
  %1590 = vmatpush1.msra.mxu0 0.0
  %1591 = vmatprep.subr.mxu0 0.0
  %1592 = vmatpush1.msra.mxu0 0.0
  %1593 = vmatprep.subr.mxu0 0.0
  %1594 = vmatpush1.msra.mxu0 0.0
  %1595 = vmatprep.subr.mxu0 0.0
  %1596 = vmatpush1.msra.mxu0 0.0
  %1597 = vmatprep.subr.mxu0 0.0
  %1598 = vmatpush1.msra.mxu0 0.0
  %1599 = vmatprep.subr.mxu0 0.0
  %1600 = vmatpush1.msra.mxu0 0.0
  %1601 = vmatprep.subr.mxu0 0.0
  %1602 = vmatpush1.msra.mxu0 0.0
  %1603 = vmatprep.subr.mxu0 0.0
  %1604 = vmatpush1.msra.mxu0 0.0
  %1605 = vmatprep.subr.mxu0 0.0
  %1606 = vmatpush1.msra.mxu0 0.0
  %1607 = vmatprep.mubr.f32.mxu0 0.0
  %1608 = vmatmul.mubr.f32.gmra.mrb[0].mxu0 %v1541
  %v1609 = vpop.f32.mrb[0].mxu0
  %v1610 = vadd.f32 0.0, %v1609
  %v1611 = vpop.f32.mrb[0].mxu0
  %1612 = vdwg.mxu0
  %v1613 = vadd.f32 %v1461, %v1610
  %1614 = vrot.lane.b32.xlu0 %v442, 80
  %v1615 = vpop.permute.xlu0 %1614
  %v1618 = vsel %vm1079, %v1163, 0
  %1620 = vmatprep.subr.mxu0 0.0
  %1621 = vmatpush1.msra.mxu0 %v1615
  %1622 = vmatprep.subr.mxu0 0.0
  %1623 = vmatpush1.msra.mxu0 0.0
  %1624 = vmatprep.subr.mxu0 0.0
  %1625 = vmatpush1.msra.mxu0 0.0
  %1626 = vmatprep.subr.mxu0 0.0
  %1627 = vmatpush1.msra.mxu0 0.0
  %1628 = vmatprep.subr.mxu0 0.0
  %1629 = vmatpush1.msra.mxu0 0.0
  %1630 = vmatprep.subr.mxu0 0.0
  %1631 = vmatpush1.msra.mxu0 0.0
  %1632 = vmatprep.subr.mxu0 0.0
  %1633 = vmatpush1.msra.mxu0 0.0
  %1634 = vmatprep.subr.mxu0 0.0
  %1635 = vmatpush1.msra.mxu0 0.0
  %1636 = vmatprep.subr.mxu0 0.0
  %1637 = vmatpush1.msra.mxu0 0.0
  %1638 = vmatprep.subr.mxu0 0.0
  %1639 = vmatpush1.msra.mxu0 0.0
  %1640 = vmatprep.subr.mxu0 0.0
  %1641 = vmatpush1.msra.mxu0 0.0
  %1642 = vmatprep.subr.mxu0 0.0
  %1643 = vmatpush1.msra.mxu0 0.0
  %1644 = vmatprep.subr.mxu0 0.0
  %1645 = vmatpush1.msra.mxu0 0.0
  %1646 = vmatprep.subr.mxu0 0.0
  %1647 = vmatpush1.msra.mxu0 0.0
  %1648 = vmatprep.subr.mxu0 0.0
  %1649 = vmatpush1.msra.mxu0 0.0
  %1650 = vmatprep.subr.mxu0 0.0
  %1651 = vmatpush1.msra.mxu0 0.0
  %1652 = vmatprep.subr.mxu0 0.0
  %1653 = vmatpush1.msra.mxu0 0.0
  %1654 = vmatprep.subr.mxu0 0.0
  %1655 = vmatpush1.msra.mxu0 0.0
  %1656 = vmatprep.subr.mxu0 0.0
  %1657 = vmatpush1.msra.mxu0 0.0
  %1658 = vmatprep.subr.mxu0 0.0
  %1659 = vmatpush1.msra.mxu0 0.0
  %1660 = vmatprep.subr.mxu0 0.0
  %1661 = vmatpush1.msra.mxu0 0.0
  %1662 = vmatprep.subr.mxu0 0.0
  %1663 = vmatpush1.msra.mxu0 0.0
  %1664 = vmatprep.subr.mxu0 0.0
  %1665 = vmatpush1.msra.mxu0 0.0
  %1666 = vmatprep.subr.mxu0 0.0
  %1667 = vmatpush1.msra.mxu0 0.0
  %1668 = vmatprep.subr.mxu0 0.0
  %1669 = vmatpush1.msra.mxu0 0.0
  %1670 = vmatprep.subr.mxu0 0.0
  %1671 = vmatpush1.msra.mxu0 0.0
  %1672 = vmatprep.subr.mxu0 0.0
  %1673 = vmatpush1.msra.mxu0 0.0
  %1674 = vmatprep.subr.mxu0 0.0
  %1675 = vmatpush1.msra.mxu0 0.0
  %1676 = vmatprep.subr.mxu0 0.0
  %1677 = vmatpush1.msra.mxu0 0.0
  %1678 = vmatprep.subr.mxu0 0.0
  %1679 = vmatpush1.msra.mxu0 0.0
  %1680 = vmatprep.subr.mxu0 0.0
  %1681 = vmatpush1.msra.mxu0 0.0
  %1682 = vmatprep.subr.mxu0 0.0
  %1683 = vmatpush1.msra.mxu0 0.0
  %1684 = vmatprep.mubr.f32.mxu0 0.0
  %1685 = vmatmul.mubr.f32.gmra.mrb[0].mxu0 %v1618
  %v1686 = vpop.f32.mrb[0].mxu0
  %v1687 = vadd.f32 0.0, %v1686
  %v1688 = vpop.f32.mrb[0].mxu0
  %1689 = vdwg.mxu0
  %v1691 = vsel %vm450, %v1687, 0
  %1693 = vmatprep.subr.mxu0 0.0
  %1694 = vmatpush1.msra.mxu0 %v195
  %1695 = vmatprep.subr.mxu0 0.0
  %1696 = vmatpush1.msra.mxu0 %v196
  %1697 = vmatprep.subr.mxu0 0.0
  %1698 = vmatpush1.msra.mxu0 0.0
  %1699 = vmatprep.subr.mxu0 0.0
  %1700 = vmatpush1.msra.mxu0 0.0
  %1701 = vmatprep.subr.mxu0 0.0
  %1702 = vmatpush1.msra.mxu0 0.0
  %1703 = vmatprep.subr.mxu0 0.0
  %1704 = vmatpush1.msra.mxu0 0.0
  %1705 = vmatprep.subr.mxu0 0.0
  %1706 = vmatpush1.msra.mxu0 0.0
  %1707 = vmatprep.subr.mxu0 0.0
  %1708 = vmatpush1.msra.mxu0 0.0
  %1709 = vmatprep.subr.mxu0 0.0
  %1710 = vmatpush1.msra.mxu0 0.0
  %1711 = vmatprep.subr.mxu0 0.0
  %1712 = vmatpush1.msra.mxu0 0.0
  %1713 = vmatprep.subr.mxu0 0.0
  %1714 = vmatpush1.msra.mxu0 0.0
  %1715 = vmatprep.subr.mxu0 0.0
  %1716 = vmatpush1.msra.mxu0 0.0
  %1717 = vmatprep.subr.mxu0 0.0
  %1718 = vmatpush1.msra.mxu0 0.0
  %1719 = vmatprep.subr.mxu0 0.0
  %1720 = vmatpush1.msra.mxu0 0.0
  %1721 = vmatprep.subr.mxu0 0.0
  %1722 = vmatpush1.msra.mxu0 0.0
  %1723 = vmatprep.subr.mxu0 0.0
  %1724 = vmatpush1.msra.mxu0 0.0
  %1725 = vmatprep.subr.mxu0 0.0
  %1726 = vmatpush1.msra.mxu0 0.0
  %1727 = vmatprep.subr.mxu0 0.0
  %1728 = vmatpush1.msra.mxu0 0.0
  %1729 = vmatprep.subr.mxu0 0.0
  %1730 = vmatpush1.msra.mxu0 0.0
  %1731 = vmatprep.subr.mxu0 0.0
  %1732 = vmatpush1.msra.mxu0 0.0
  %1733 = vmatprep.subr.mxu0 0.0
  %1734 = vmatpush1.msra.mxu0 0.0
  %1735 = vmatprep.subr.mxu0 0.0
  %1736 = vmatpush1.msra.mxu0 0.0
  %1737 = vmatprep.subr.mxu0 0.0
  %1738 = vmatpush1.msra.mxu0 0.0
  %1739 = vmatprep.subr.mxu0 0.0
  %1740 = vmatpush1.msra.mxu0 0.0
  %1741 = vmatprep.subr.mxu0 0.0
  %1742 = vmatpush1.msra.mxu0 0.0
  %1743 = vmatprep.subr.mxu0 0.0
  %1744 = vmatpush1.msra.mxu0 0.0
  %1745 = vmatprep.subr.mxu0 0.0
  %1746 = vmatpush1.msra.mxu0 0.0
  %1747 = vmatprep.subr.mxu0 0.0
  %1748 = vmatpush1.msra.mxu0 0.0
  %1749 = vmatprep.subr.mxu0 0.0
  %1750 = vmatpush1.msra.mxu0 0.0
  %1751 = vmatprep.subr.mxu0 0.0
  %1752 = vmatpush1.msra.mxu0 0.0
  %1753 = vmatprep.subr.mxu0 0.0
  %1754 = vmatpush1.msra.mxu0 0.0
  %1755 = vmatprep.subr.mxu0 0.0
  %1756 = vmatpush1.msra.mxu0 0.0
  %1757 = vmatprep.mubr.f32.mxu0 0.0
  %1758 = vmatmul.mubr.f32.gmra.mrb[0].mxu0 %v1691
  %v1759 = vpop.f32.mrb[0].mxu0
  %v1760 = vadd.f32 0.0, %v1759
  %v1761 = vpop.f32.mrb[0].mxu0
  %1762 = vdwg.mxu0
  %v1763 = vadd.f32 %v1613, %v1760
  %v1765 = vsel %vm1079, %v1164, 0
  %1767 = vmatprep.subr.mxu0 0.0
  %1768 = vmatpush1.msra.mxu0 %v447
  %1769 = vmatprep.subr.mxu0 0.0
  %1770 = vmatpush1.msra.mxu0 0.0
  %1771 = vmatprep.subr.mxu0 0.0
  %1772 = vmatpush1.msra.mxu0 0.0
  %1773 = vmatprep.subr.mxu0 0.0
  %1774 = vmatpush1.msra.mxu0 0.0
  %1775 = vmatprep.subr.mxu0 0.0
  %1776 = vmatpush1.msra.mxu0 0.0
  %1777 = vmatprep.subr.mxu0 0.0
  %1778 = vmatpush1.msra.mxu0 0.0
  %1779 = vmatprep.subr.mxu0 0.0
  %1780 = vmatpush1.msra.mxu0 0.0
  %1781 = vmatprep.subr.mxu0 0.0
  %1782 = vmatpush1.msra.mxu0 0.0
  %1783 = vmatprep.subr.mxu0 0.0
  %1784 = vmatpush1.msra.mxu0 0.0
  %1785 = vmatprep.subr.mxu0 0.0
  %1786 = vmatpush1.msra.mxu0 0.0
  %1787 = vmatprep.subr.mxu0 0.0
  %1788 = vmatpush1.msra.mxu0 0.0
  %1789 = vmatprep.subr.mxu0 0.0
  %1790 = vmatpush1.msra.mxu0 0.0
  %1791 = vmatprep.subr.mxu0 0.0
  %1792 = vmatpush1.msra.mxu0 0.0
  %1793 = vmatprep.subr.mxu0 0.0
  %1794 = vmatpush1.msra.mxu0 0.0
  %1795 = vmatprep.subr.mxu0 0.0
  %1796 = vmatpush1.msra.mxu0 0.0
  %1797 = vmatprep.subr.mxu0 0.0
  %1798 = vmatpush1.msra.mxu0 0.0
  %1799 = vmatprep.subr.mxu0 0.0
  %1800 = vmatpush1.msra.mxu0 0.0
  %1801 = vmatprep.subr.mxu0 0.0
  %1802 = vmatpush1.msra.mxu0 0.0
  %1803 = vmatprep.subr.mxu0 0.0
  %1804 = vmatpush1.msra.mxu0 0.0
  %1805 = vmatprep.subr.mxu0 0.0
  %1806 = vmatpush1.msra.mxu0 0.0
  %1807 = vmatprep.subr.mxu0 0.0
  %1808 = vmatpush1.msra.mxu0 0.0
  %1809 = vmatprep.subr.mxu0 0.0
  %1810 = vmatpush1.msra.mxu0 0.0
  %1811 = vmatprep.subr.mxu0 0.0
  %1812 = vmatpush1.msra.mxu0 0.0
  %1813 = vmatprep.subr.mxu0 0.0
  %1814 = vmatpush1.msra.mxu0 0.0
  %1815 = vmatprep.subr.mxu0 0.0
  %1816 = vmatpush1.msra.mxu0 0.0
  %1817 = vmatprep.subr.mxu0 0.0
  %1818 = vmatpush1.msra.mxu0 0.0
  %1819 = vmatprep.subr.mxu0 0.0
  %1820 = vmatpush1.msra.mxu0 0.0
  %1821 = vmatprep.subr.mxu0 0.0
  %1822 = vmatpush1.msra.mxu0 0.0
  %1823 = vmatprep.subr.mxu0 0.0
  %1824 = vmatpush1.msra.mxu0 0.0
  %1825 = vmatprep.subr.mxu0 0.0
  %1826 = vmatpush1.msra.mxu0 0.0
  %1827 = vmatprep.subr.mxu0 0.0
  %1828 = vmatpush1.msra.mxu0 0.0
  %1829 = vmatprep.subr.mxu0 0.0
  %1830 = vmatpush1.msra.mxu0 0.0
  %1831 = vmatprep.mubr.f32.mxu0 0.0
  %1832 = vmatmul.mubr.f32.gmra.mrb[0].mxu0 %v1765
  %v1833 = vpop.f32.mrb[0].mxu0
  %v1834 = vadd.f32 0.0, %v1833
  %v1835 = vpop.f32.mrb[0].mxu0
  %1836 = vdwg.mxu0
  %1838 = vrot.lane.b32.xlu0 %v447, 112
  %v1839 = vpop.permute.xlu0 %1838
  %v1842 = vsel %vm1079, %v1165, 0
  %1844 = vmatprep.subr.mxu0 0.0
  %1845 = vmatpush1.msra.mxu0 %v1839
  %1846 = vmatprep.subr.mxu0 0.0
  %1847 = vmatpush1.msra.mxu0 0.0
  %1848 = vmatprep.subr.mxu0 0.0
  %1849 = vmatpush1.msra.mxu0 0.0
  %1850 = vmatprep.subr.mxu0 0.0
  %1851 = vmatpush1.msra.mxu0 0.0
  %1852 = vmatprep.subr.mxu0 0.0
  %1853 = vmatpush1.msra.mxu0 0.0
  %1854 = vmatprep.subr.mxu0 0.0
  %1855 = vmatpush1.msra.mxu0 0.0
  %1856 = vmatprep.subr.mxu0 0.0
  %1857 = vmatpush1.msra.mxu0 0.0
  %1858 = vmatprep.subr.mxu0 0.0
  %1859 = vmatpush1.msra.mxu0 0.0
  %1860 = vmatprep.subr.mxu0 0.0
  %1861 = vmatpush1.msra.mxu0 0.0
  %1862 = vmatprep.subr.mxu0 0.0
  %1863 = vmatpush1.msra.mxu0 0.0
  %1864 = vmatprep.subr.mxu0 0.0
  %1865 = vmatpush1.msra.mxu0 0.0
  %1866 = vmatprep.subr.mxu0 0.0
  %1867 = vmatpush1.msra.mxu0 0.0
  %1868 = vmatprep.subr.mxu0 0.0
  %1869 = vmatpush1.msra.mxu0 0.0
  %1870 = vmatprep.subr.mxu0 0.0
  %1871 = vmatpush1.msra.mxu0 0.0
  %1872 = vmatprep.subr.mxu0 0.0
  %1873 = vmatpush1.msra.mxu0 0.0
  %1874 = vmatprep.subr.mxu0 0.0
  %1875 = vmatpush1.msra.mxu0 0.0
  %1876 = vmatprep.subr.mxu0 0.0
  %1877 = vmatpush1.msra.mxu0 0.0
  %1878 = vmatprep.subr.mxu0 0.0
  %1879 = vmatpush1.msra.mxu0 0.0
  %1880 = vmatprep.subr.mxu0 0.0
  %1881 = vmatpush1.msra.mxu0 0.0
  %1882 = vmatprep.subr.mxu0 0.0
  %1883 = vmatpush1.msra.mxu0 0.0
  %1884 = vmatprep.subr.mxu0 0.0
  %1885 = vmatpush1.msra.mxu0 0.0
  %1886 = vmatprep.subr.mxu0 0.0
  %1887 = vmatpush1.msra.mxu0 0.0
  %1888 = vmatprep.subr.mxu0 0.0
  %1889 = vmatpush1.msra.mxu0 0.0
  %1890 = vmatprep.subr.mxu0 0.0
  %1891 = vmatpush1.msra.mxu0 0.0
  %1892 = vmatprep.subr.mxu0 0.0
  %1893 = vmatpush1.msra.mxu0 0.0
  %1894 = vmatprep.subr.mxu0 0.0
  %1895 = vmatpush1.msra.mxu0 0.0
  %1896 = vmatprep.subr.mxu0 0.0
  %1897 = vmatpush1.msra.mxu0 0.0
  %1898 = vmatprep.subr.mxu0 0.0
  %1899 = vmatpush1.msra.mxu0 0.0
  %1900 = vmatprep.subr.mxu0 0.0
  %1901 = vmatpush1.msra.mxu0 0.0
  %1902 = vmatprep.subr.mxu0 0.0
  %1903 = vmatpush1.msra.mxu0 0.0
  %1904 = vmatprep.subr.mxu0 0.0
  %1905 = vmatpush1.msra.mxu0 0.0
  %1906 = vmatprep.subr.mxu0 0.0
  %1907 = vmatpush1.msra.mxu0 0.0
  %1908 = vmatprep.mubr.f32.mxu0 0.0
  %1909 = vmatmul.mubr.f32.gmra.mrb[0].mxu0 %v1842
  %v1910 = vpop.f32.mrb[0].mxu0
  %v1911 = vadd.f32 0.0, %v1910
  %v1912 = vpop.f32.mrb[0].mxu0
  %1913 = vdwg.mxu0
  %v1915 = vsel %vm450, %v1911, 0
  %1917 = vmatprep.subr.mxu0 0.0
  %1918 = vmatpush1.msra.mxu0 %v191
  %1919 = vmatprep.subr.mxu0 0.0
  %1920 = vmatpush1.msra.mxu0 %v192
  %1921 = vmatprep.subr.mxu0 0.0
  %1922 = vmatpush1.msra.mxu0 0.0
  %1923 = vmatprep.subr.mxu0 0.0
  %1924 = vmatpush1.msra.mxu0 0.0
  %1925 = vmatprep.subr.mxu0 0.0
  %1926 = vmatpush1.msra.mxu0 0.0
  %1927 = vmatprep.subr.mxu0 0.0
  %1928 = vmatpush1.msra.mxu0 0.0
  %1929 = vmatprep.subr.mxu0 0.0
  %1930 = vmatpush1.msra.mxu0 0.0
  %1931 = vmatprep.subr.mxu0 0.0
  %1932 = vmatpush1.msra.mxu0 0.0
  %1933 = vmatprep.subr.mxu0 0.0
  %1934 = vmatpush1.msra.mxu0 0.0
  %1935 = vmatprep.subr.mxu0 0.0
  %1936 = vmatpush1.msra.mxu0 0.0
  %1937 = vmatprep.subr.mxu0 0.0
  %1938 = vmatpush1.msra.mxu0 0.0
  %1939 = vmatprep.subr.mxu0 0.0
  %1940 = vmatpush1.msra.mxu0 0.0
  %1941 = vmatprep.subr.mxu0 0.0
  %1942 = vmatpush1.msra.mxu0 0.0
  %1943 = vmatprep.subr.mxu0 0.0
  %1944 = vmatpush1.msra.mxu0 0.0
  %1945 = vmatprep.subr.mxu0 0.0
  %1946 = vmatpush1.msra.mxu0 0.0
  %1947 = vmatprep.subr.mxu0 0.0
  %1948 = vmatpush1.msra.mxu0 0.0
  %1949 = vmatprep.subr.mxu0 0.0
  %1950 = vmatpush1.msra.mxu0 0.0
  %1951 = vmatprep.subr.mxu0 0.0
  %1952 = vmatpush1.msra.mxu0 0.0
  %1953 = vmatprep.subr.mxu0 0.0
  %1954 = vmatpush1.msra.mxu0 0.0
  %1955 = vmatprep.subr.mxu0 0.0
  %1956 = vmatpush1.msra.mxu0 0.0
  %1957 = vmatprep.subr.mxu0 0.0
  %1958 = vmatpush1.msra.mxu0 0.0
  %1959 = vmatprep.subr.mxu0 0.0
  %1960 = vmatpush1.msra.mxu0 0.0
  %1961 = vmatprep.subr.mxu0 0.0
  %1962 = vmatpush1.msra.mxu0 0.0
  %1963 = vmatprep.subr.mxu0 0.0
  %1964 = vmatpush1.msra.mxu0 0.0
  %1965 = vmatprep.subr.mxu0 0.0
  %1966 = vmatpush1.msra.mxu0 0.0
  %1967 = vmatprep.subr.mxu0 0.0
  %1968 = vmatpush1.msra.mxu0 0.0
  %1969 = vmatprep.subr.mxu0 0.0
  %1970 = vmatpush1.msra.mxu0 0.0
  %1971 = vmatprep.subr.mxu0 0.0
  %1972 = vmatpush1.msra.mxu0 0.0
  %1973 = vmatprep.subr.mxu0 0.0
  %1974 = vmatpush1.msra.mxu0 0.0
  %1975 = vmatprep.subr.mxu0 0.0
  %1976 = vmatpush1.msra.mxu0 0.0
  %1977 = vmatprep.subr.mxu0 0.0
  %1978 = vmatpush1.msra.mxu0 0.0
  %1979 = vmatprep.subr.mxu0 0.0
  %1980 = vmatpush1.msra.mxu0 0.0
  %1981 = vmatprep.mubr.f32.mxu0 0.0
  %1982 = vmatmul.mubr.f32.gmra.mrb[0].mxu0 %v1915
  %v1983 = vpop.f32.mrb[0].mxu0
  %v1984 = vadd.f32 0.0, %v1983
  %v1985 = vpop.f32.mrb[0].mxu0
  %1986 = vdwg.mxu0
  %v1988 = vsel %vm450, %v1834, 0
  %1990 = vmatprep.subr.mxu0 0.0
  %1991 = vmatpush1.msra.mxu0 %v189
  %1992 = vmatprep.subr.mxu0 0.0
  %1993 = vmatpush1.msra.mxu0 %v190
  %1994 = vmatprep.subr.mxu0 0.0
  %1995 = vmatpush1.msra.mxu0 0.0
  %1996 = vmatprep.subr.mxu0 0.0
  %1997 = vmatpush1.msra.mxu0 0.0
  %1998 = vmatprep.subr.mxu0 0.0
  %1999 = vmatpush1.msra.mxu0 0.0
  %2000 = vmatprep.subr.mxu0 0.0
  %2001 = vmatpush1.msra.mxu0 0.0
  %2002 = vmatprep.subr.mxu0 0.0
  %2003 = vmatpush1.msra.mxu0 0.0
  %2004 = vmatprep.subr.mxu0 0.0
  %2005 = vmatpush1.msra.mxu0 0.0
  %2006 = vmatprep.subr.mxu0 0.0
  %2007 = vmatpush1.msra.mxu0 0.0
  %2008 = vmatprep.subr.mxu0 0.0
  %2009 = vmatpush1.msra.mxu0 0.0
  %2010 = vmatprep.subr.mxu0 0.0
  %2011 = vmatpush1.msra.mxu0 0.0
  %2012 = vmatprep.subr.mxu0 0.0
  %2013 = vmatpush1.msra.mxu0 0.0
  %2014 = vmatprep.subr.mxu0 0.0
  %2015 = vmatpush1.msra.mxu0 0.0
  %2016 = vmatprep.subr.mxu0 0.0
  %2017 = vmatpush1.msra.mxu0 0.0
  %2018 = vmatprep.subr.mxu0 0.0
  %2019 = vmatpush1.msra.mxu0 0.0
  %2020 = vmatprep.subr.mxu0 0.0
  %2021 = vmatpush1.msra.mxu0 0.0
  %2022 = vmatprep.subr.mxu0 0.0
  %2023 = vmatpush1.msra.mxu0 0.0
  %2024 = vmatprep.subr.mxu0 0.0
  %2025 = vmatpush1.msra.mxu0 0.0
  %2026 = vmatprep.subr.mxu0 0.0
  %2027 = vmatpush1.msra.mxu0 0.0
  %2028 = vmatprep.subr.mxu0 0.0
  %2029 = vmatpush1.msra.mxu0 0.0
  %2030 = vmatprep.subr.mxu0 0.0
  %2031 = vmatpush1.msra.mxu0 0.0
  %2032 = vmatprep.subr.mxu0 0.0
  %2033 = vmatpush1.msra.mxu0 0.0
  %2034 = vmatprep.subr.mxu0 0.0
  %2035 = vmatpush1.msra.mxu0 0.0
  %2036 = vmatprep.subr.mxu0 0.0
  %2037 = vmatpush1.msra.mxu0 0.0
  %2038 = vmatprep.subr.mxu0 0.0
  %2039 = vmatpush1.msra.mxu0 0.0
  %2040 = vmatprep.subr.mxu0 0.0
  %2041 = vmatpush1.msra.mxu0 0.0
  %2042 = vmatprep.subr.mxu0 0.0
  %2043 = vmatpush1.msra.mxu0 0.0
  %2044 = vmatprep.subr.mxu0 0.0
  %2045 = vmatpush1.msra.mxu0 0.0
  %2046 = vmatprep.subr.mxu0 0.0
  %2047 = vmatpush1.msra.mxu0 0.0
  %2048 = vmatprep.subr.mxu0 0.0
  %2049 = vmatpush1.msra.mxu0 0.0
  %2050 = vmatprep.subr.mxu0 0.0
  %2051 = vmatpush1.msra.mxu0 0.0
  %2052 = vmatprep.subr.mxu0 0.0
  %2053 = vmatpush1.msra.mxu0 0.0
  %2054 = vmatprep.mubr.f32.mxu0 0.0
  %2055 = vmatmul.mubr.f32.gmra.mrb[0].mxu0 %v1988
  %v2056 = vpop.f32.mrb[0].mxu0
  %v2057 = vadd.f32 %v1984, %v2056
  %v2058 = vpop.f32.mrb[0].mxu0
  %2059 = vdwg.mxu0
  %2060 = vrot.lane.b32.xlu0 %v447, 96
  %v2061 = vpop.permute.xlu0 %2060
  %v2064 = vsel %vm1079, %v1166, 0
  %2066 = vmatprep.subr.mxu0 0.0
  %2067 = vmatpush1.msra.mxu0 %v2061
  %2068 = vmatprep.subr.mxu0 0.0
  %2069 = vmatpush1.msra.mxu0 0.0
  %2070 = vmatprep.subr.mxu0 0.0
  %2071 = vmatpush1.msra.mxu0 0.0
  %2072 = vmatprep.subr.mxu0 0.0
  %2073 = vmatpush1.msra.mxu0 0.0
  %2074 = vmatprep.subr.mxu0 0.0
  %2075 = vmatpush1.msra.mxu0 0.0
  %2076 = vmatprep.subr.mxu0 0.0
  %2077 = vmatpush1.msra.mxu0 0.0
  %2078 = vmatprep.subr.mxu0 0.0
  %2079 = vmatpush1.msra.mxu0 0.0
  %2080 = vmatprep.subr.mxu0 0.0
  %2081 = vmatpush1.msra.mxu0 0.0
  %2082 = vmatprep.subr.mxu0 0.0
  %2083 = vmatpush1.msra.mxu0 0.0
  %2084 = vmatprep.subr.mxu0 0.0
  %2085 = vmatpush1.msra.mxu0 0.0
  %2086 = vmatprep.subr.mxu0 0.0
  %2087 = vmatpush1.msra.mxu0 0.0
  %2088 = vmatprep.subr.mxu0 0.0
  %2089 = vmatpush1.msra.mxu0 0.0
  %2090 = vmatprep.subr.mxu0 0.0
  %2091 = vmatpush1.msra.mxu0 0.0
  %2092 = vmatprep.subr.mxu0 0.0
  %2093 = vmatpush1.msra.mxu0 0.0
  %2094 = vmatprep.subr.mxu0 0.0
  %2095 = vmatpush1.msra.mxu0 0.0
  %2096 = vmatprep.subr.mxu0 0.0
  %2097 = vmatpush1.msra.mxu0 0.0
  %2098 = vmatprep.subr.mxu0 0.0
  %2099 = vmatpush1.msra.mxu0 0.0
  %2100 = vmatprep.subr.mxu0 0.0
  %2101 = vmatpush1.msra.mxu0 0.0
  %2102 = vmatprep.subr.mxu0 0.0
  %2103 = vmatpush1.msra.mxu0 0.0
  %2104 = vmatprep.subr.mxu0 0.0
  %2105 = vmatpush1.msra.mxu0 0.0
  %2106 = vmatprep.subr.mxu0 0.0
  %2107 = vmatpush1.msra.mxu0 0.0
  %2108 = vmatprep.subr.mxu0 0.0
  %2109 = vmatpush1.msra.mxu0 0.0
  %2110 = vmatprep.subr.mxu0 0.0
  %2111 = vmatpush1.msra.mxu0 0.0
  %2112 = vmatprep.subr.mxu0 0.0
  %2113 = vmatpush1.msra.mxu0 0.0
  %2114 = vmatprep.subr.mxu0 0.0
  %2115 = vmatpush1.msra.mxu0 0.0
  %2116 = vmatprep.subr.mxu0 0.0
  %2117 = vmatpush1.msra.mxu0 0.0
  %2118 = vmatprep.subr.mxu0 0.0
  %2119 = vmatpush1.msra.mxu0 0.0
  %2120 = vmatprep.subr.mxu0 0.0
  %2121 = vmatpush1.msra.mxu0 0.0
  %2122 = vmatprep.subr.mxu0 0.0
  %2123 = vmatpush1.msra.mxu0 0.0
  %2124 = vmatprep.subr.mxu0 0.0
  %2125 = vmatpush1.msra.mxu0 0.0
  %2126 = vmatprep.subr.mxu0 0.0
  %2127 = vmatpush1.msra.mxu0 0.0
  %2128 = vmatprep.subr.mxu0 0.0
  %2129 = vmatpush1.msra.mxu0 0.0
  %2130 = vmatprep.mubr.f32.mxu0 0.0
  %2131 = vmatmul.mubr.f32.gmra.mrb[0].mxu0 %v2064
  %v2132 = vpop.f32.mrb[0].mxu0
  %v2133 = vadd.f32 0.0, %v2132
  %v2134 = vpop.f32.mrb[0].mxu0
  %2135 = vdwg.mxu0
  %v2137 = vsel %vm450, %v2133, 0
  %2139 = vmatprep.subr.mxu0 0.0
  %2140 = vmatpush1.msra.mxu0 %v193
  %2141 = vmatprep.subr.mxu0 0.0
  %2142 = vmatpush1.msra.mxu0 %v194
  %2143 = vmatprep.subr.mxu0 0.0
  %2144 = vmatpush1.msra.mxu0 0.0
  %2145 = vmatprep.subr.mxu0 0.0
  %2146 = vmatpush1.msra.mxu0 0.0
  %2147 = vmatprep.subr.mxu0 0.0
  %2148 = vmatpush1.msra.mxu0 0.0
  %2149 = vmatprep.subr.mxu0 0.0
  %2150 = vmatpush1.msra.mxu0 0.0
  %2151 = vmatprep.subr.mxu0 0.0
  %2152 = vmatpush1.msra.mxu0 0.0
  %2153 = vmatprep.subr.mxu0 0.0
  %2154 = vmatpush1.msra.mxu0 0.0
  %2155 = vmatprep.subr.mxu0 0.0
  %2156 = vmatpush1.msra.mxu0 0.0
  %2157 = vmatprep.subr.mxu0 0.0
  %2158 = vmatpush1.msra.mxu0 0.0
  %2159 = vmatprep.subr.mxu0 0.0
  %2160 = vmatpush1.msra.mxu0 0.0
  %2161 = vmatprep.subr.mxu0 0.0
  %2162 = vmatpush1.msra.mxu0 0.0
  %2163 = vmatprep.subr.mxu0 0.0
  %2164 = vmatpush1.msra.mxu0 0.0
  %2165 = vmatprep.subr.mxu0 0.0
  %2166 = vmatpush1.msra.mxu0 0.0
  %2167 = vmatprep.subr.mxu0 0.0
  %2168 = vmatpush1.msra.mxu0 0.0
  %2169 = vmatprep.subr.mxu0 0.0
  %2170 = vmatpush1.msra.mxu0 0.0
  %2171 = vmatprep.subr.mxu0 0.0
  %2172 = vmatpush1.msra.mxu0 0.0
  %2173 = vmatprep.subr.mxu0 0.0
  %2174 = vmatpush1.msra.mxu0 0.0
  %2175 = vmatprep.subr.mxu0 0.0
  %2176 = vmatpush1.msra.mxu0 0.0
  %2177 = vmatprep.subr.mxu0 0.0
  %2178 = vmatpush1.msra.mxu0 0.0
  %2179 = vmatprep.subr.mxu0 0.0
  %2180 = vmatpush1.msra.mxu0 0.0
  %2181 = vmatprep.subr.mxu0 0.0
  %2182 = vmatpush1.msra.mxu0 0.0
  %2183 = vmatprep.subr.mxu0 0.0
  %2184 = vmatpush1.msra.mxu0 0.0
  %2185 = vmatprep.subr.mxu0 0.0
  %2186 = vmatpush1.msra.mxu0 0.0
  %2187 = vmatprep.subr.mxu0 0.0
  %2188 = vmatpush1.msra.mxu0 0.0
  %2189 = vmatprep.subr.mxu0 0.0
  %2190 = vmatpush1.msra.mxu0 0.0
  %2191 = vmatprep.subr.mxu0 0.0
  %2192 = vmatpush1.msra.mxu0 0.0
  %2193 = vmatprep.subr.mxu0 0.0
  %2194 = vmatpush1.msra.mxu0 0.0
  %2195 = vmatprep.subr.mxu0 0.0
  %2196 = vmatpush1.msra.mxu0 0.0
  %2197 = vmatprep.subr.mxu0 0.0
  %2198 = vmatpush1.msra.mxu0 0.0
  %2199 = vmatprep.subr.mxu0 0.0
  %2200 = vmatpush1.msra.mxu0 0.0
  %2201 = vmatprep.subr.mxu0 0.0
  %2202 = vmatpush1.msra.mxu0 0.0
  %2203 = vmatprep.mubr.f32.mxu0 0.0
  %2204 = vmatmul.mubr.f32.gmra.mrb[0].mxu0 %v2137
  %v2205 = vpop.f32.mrb[0].mxu0
  %v2206 = vadd.f32 0.0, %v2205
  %v2207 = vpop.f32.mrb[0].mxu0
  %2208 = vdwg.mxu0
  %v2209 = vadd.f32 %v2057, %v2206
  %2210 = vrot.lane.b32.xlu0 %v447, 80
  %v2211 = vpop.permute.xlu0 %2210
  %v2214 = vsel %vm1079, %v1167, 0
  %2216 = vmatprep.subr.mxu0 0.0
  %2217 = vmatpush1.msra.mxu0 %v2211
  %2218 = vmatprep.subr.mxu0 0.0
  %2219 = vmatpush1.msra.mxu0 0.0
  %2220 = vmatprep.subr.mxu0 0.0
  %2221 = vmatpush1.msra.mxu0 0.0
  %2222 = vmatprep.subr.mxu0 0.0
  %2223 = vmatpush1.msra.mxu0 0.0
  %2224 = vmatprep.subr.mxu0 0.0
  %2225 = vmatpush1.msra.mxu0 0.0
  %2226 = vmatprep.subr.mxu0 0.0
  %2227 = vmatpush1.msra.mxu0 0.0
  %2228 = vmatprep.subr.mxu0 0.0
  %2229 = vmatpush1.msra.mxu0 0.0
  %2230 = vmatprep.subr.mxu0 0.0
  %2231 = vmatpush1.msra.mxu0 0.0
  %2232 = vmatprep.subr.mxu0 0.0
  %2233 = vmatpush1.msra.mxu0 0.0
  %2234 = vmatprep.subr.mxu0 0.0
  %2235 = vmatpush1.msra.mxu0 0.0
  %2236 = vmatprep.subr.mxu0 0.0
  %2237 = vmatpush1.msra.mxu0 0.0
  %2238 = vmatprep.subr.mxu0 0.0
  %2239 = vmatpush1.msra.mxu0 0.0
  %2240 = vmatprep.subr.mxu0 0.0
  %2241 = vmatpush1.msra.mxu0 0.0
  %2242 = vmatprep.subr.mxu0 0.0
  %2243 = vmatpush1.msra.mxu0 0.0
  %2244 = vmatprep.subr.mxu0 0.0
  %2245 = vmatpush1.msra.mxu0 0.0
  %2246 = vmatprep.subr.mxu0 0.0
  %2247 = vmatpush1.msra.mxu0 0.0
  %2248 = vmatprep.subr.mxu0 0.0
  %2249 = vmatpush1.msra.mxu0 0.0
  %2250 = vmatprep.subr.mxu0 0.0
  %2251 = vmatpush1.msra.mxu0 0.0
  %2252 = vmatprep.subr.mxu0 0.0
  %2253 = vmatpush1.msra.mxu0 0.0
  %2254 = vmatprep.subr.mxu0 0.0
  %2255 = vmatpush1.msra.mxu0 0.0
  %2256 = vmatprep.subr.mxu0 0.0
  %2257 = vmatpush1.msra.mxu0 0.0
  %2258 = vmatprep.subr.mxu0 0.0
  %2259 = vmatpush1.msra.mxu0 0.0
  %2260 = vmatprep.subr.mxu0 0.0
  %2261 = vmatpush1.msra.mxu0 0.0
  %2262 = vmatprep.subr.mxu0 0.0
  %2263 = vmatpush1.msra.mxu0 0.0
  %2264 = vmatprep.subr.mxu0 0.0
  %2265 = vmatpush1.msra.mxu0 0.0
  %2266 = vmatprep.subr.mxu0 0.0
  %2267 = vmatpush1.msra.mxu0 0.0
  %2268 = vmatprep.subr.mxu0 0.0
  %2269 = vmatpush1.msra.mxu0 0.0
  %2270 = vmatprep.subr.mxu0 0.0
  %2271 = vmatpush1.msra.mxu0 0.0
  %2272 = vmatprep.subr.mxu0 0.0
  %2273 = vmatpush1.msra.mxu0 0.0
  %2274 = vmatprep.subr.mxu0 0.0
  %2275 = vmatpush1.msra.mxu0 0.0
  %2276 = vmatprep.subr.mxu0 0.0
  %2277 = vmatpush1.msra.mxu0 0.0
  %2278 = vmatprep.subr.mxu0 0.0
  %2279 = vmatpush1.msra.mxu0 0.0
  %2280 = vmatprep.mubr.f32.mxu0 0.0
  %2281 = vmatmul.mubr.f32.gmra.mrb[0].mxu0 %v2214
  %v2282 = vpop.f32.mrb[0].mxu0
  %v2283 = vadd.f32 0.0, %v2282
  %v2284 = vpop.f32.mrb[0].mxu0
  %2285 = vdwg.mxu0
  %v2287 = vsel %vm450, %v2283, 0
  %2289 = vmatprep.subr.mxu0 0.0
  %2290 = vmatpush1.msra.mxu0 %v195
  %2291 = vmatprep.subr.mxu0 0.0
  %2292 = vmatpush1.msra.mxu0 %v196
  %2293 = vmatprep.subr.mxu0 0.0
  %2294 = vmatpush1.msra.mxu0 0.0
  %2295 = vmatprep.subr.mxu0 0.0
  %2296 = vmatpush1.msra.mxu0 0.0
  %2297 = vmatprep.subr.mxu0 0.0
  %2298 = vmatpush1.msra.mxu0 0.0
  %2299 = vmatprep.subr.mxu0 0.0
  %2300 = vmatpush1.msra.mxu0 0.0
  %2301 = vmatprep.subr.mxu0 0.0
  %2302 = vmatpush1.msra.mxu0 0.0
  %2303 = vmatprep.subr.mxu0 0.0
  %2304 = vmatpush1.msra.mxu0 0.0
  %2305 = vmatprep.subr.mxu0 0.0
  %2306 = vmatpush1.msra.mxu0 0.0
  %2307 = vmatprep.subr.mxu0 0.0
  %2308 = vmatpush1.msra.mxu0 0.0
  %2309 = vmatprep.subr.mxu0 0.0
  %2310 = vmatpush1.msra.mxu0 0.0
  %2311 = vmatprep.subr.mxu0 0.0
  %2312 = vmatpush1.msra.mxu0 0.0
  %2313 = vmatprep.subr.mxu0 0.0
  %2314 = vmatpush1.msra.mxu0 0.0
  %2315 = vmatprep.subr.mxu0 0.0
  %2316 = vmatpush1.msra.mxu0 0.0
  %2317 = vmatprep.subr.mxu0 0.0
  %2318 = vmatpush1.msra.mxu0 0.0
  %2319 = vmatprep.subr.mxu0 0.0
  %2320 = vmatpush1.msra.mxu0 0.0
  %2321 = vmatprep.subr.mxu0 0.0
  %2322 = vmatpush1.msra.mxu0 0.0
  %2323 = vmatprep.subr.mxu0 0.0
  %2324 = vmatpush1.msra.mxu0 0.0
  %2325 = vmatprep.subr.mxu0 0.0
  %2326 = vmatpush1.msra.mxu0 0.0
  %2327 = vmatprep.subr.mxu0 0.0
  %2328 = vmatpush1.msra.mxu0 0.0
  %2329 = vmatprep.subr.mxu0 0.0
  %2330 = vmatpush1.msra.mxu0 0.0
  %2331 = vmatprep.subr.mxu0 0.0
  %2332 = vmatpush1.msra.mxu0 0.0
  %2333 = vmatprep.subr.mxu0 0.0
  %2334 = vmatpush1.msra.mxu0 0.0
  %2335 = vmatprep.subr.mxu0 0.0
  %2336 = vmatpush1.msra.mxu0 0.0
  %2337 = vmatprep.subr.mxu0 0.0
  %2338 = vmatpush1.msra.mxu0 0.0
  %2339 = vmatprep.subr.mxu0 0.0
  %2340 = vmatpush1.msra.mxu0 0.0
  %2341 = vmatprep.subr.mxu0 0.0
  %2342 = vmatpush1.msra.mxu0 0.0
  %2343 = vmatprep.subr.mxu0 0.0
  %2344 = vmatpush1.msra.mxu0 0.0
  %2345 = vmatprep.subr.mxu0 0.0
  %2346 = vmatpush1.msra.mxu0 0.0
  %2347 = vmatprep.subr.mxu0 0.0
  %2348 = vmatpush1.msra.mxu0 0.0
  %2349 = vmatprep.subr.mxu0 0.0
  %2350 = vmatpush1.msra.mxu0 0.0
  %2351 = vmatprep.subr.mxu0 0.0
  %2352 = vmatpush1.msra.mxu0 0.0
  %2353 = vmatprep.mubr.f32.mxu0 0.0
  %2354 = vmatmul.mubr.f32.gmra.mrb[0].mxu0 %v2287
  %v2355 = vpop.f32.mrb[0].mxu0
  %v2356 = vadd.f32 0.0, %v2355
  %v2357 = vpop.f32.mrb[0].mxu0
  %2358 = vdwg.mxu0
  %v2359 = vadd.f32 %v2209, %v2356
  %v2360 = vld [vmem:[%s11] sm:$0x1]
  %v2362 = vlaneseq
  %v2363 = vshrl.u32 %v2362, 7
  %v2364 = vsub.s32 0, %v2363
  %v2365 = vrot.slane %v2360, %v2364
  %v2367 = vadd.f32 %v1763, %v2365
  %v2368 = vadd.f32 %v2359, %v2365
  %v2369 = vadd.f32 %v163, %v2367
  %v2370 = vadd.f32 %v164, %v2368
  %v2371 = vld [vmem:[%s12] sm:$0x1]
  %v2372 = vld [vmem:[%s13] sm:$0x1]
  %v2373 = vsel %vm204, %v2369, 0.0
  %2374 = vadd.xlane.f32.xlu0 %v2373
  %v2375 = vpop.xlane.xlu0 %2374
  %v2376 = vsel %vm204, %v2370, 0.0
  %2377 = vadd.xlane.f32.xlu0 %v2376
  %v2378 = vpop.xlane.xlu0 %2377
  %v2379 = vrcp.pop 64.0
  %v2380 = vmul.f32 %v2375, %v2379
  %v2381 = vmul.f32 %v2378, %v2379
  %v2382 = vsub.f32 %v2369, %v2380
  %v2383 = vsub.f32 %v2370, %v2381
  %v2384 = vmul.f32 %v2382, %v2382
  %v2385 = vmul.f32 %v2383, %v2383
  %v2386 = vsel %vm204, %v2384, 0.0
  %2387 = vadd.xlane.f32.xlu0 %v2386
  %v2388 = vpop.xlane.xlu0 %2387
  %v2389 = vsel %vm204, %v2385, 0.0
  %2390 = vadd.xlane.f32.xlu0 %v2389
  %v2391 = vpop.xlane.xlu0 %2390
  %v2392 = vmul.f32 %v2388, %v2379
  %v2393 = vmul.f32 %v2391, %v2379
  %v2394 = vadd.f32 %v2392, 1e-05
  %v2395 = vadd.f32 %v2393, 1e-05
  %v2396 = vrsqrt.pop %v2394
  %v2397 = vrsqrt.pop %v2395
  %v2398 = vmul.f32 %v2382, %v2396
  %v2399 = vmul.f32 %v2383, %v2397
  %v2401 = vlaneseq
  %v2402 = vshrl.u32 %v2401, 7
  %v2403 = vsub.s32 0, %v2402
  %v2404 = vrot.slane %v2371, %v2403
  %v2406 = vmul.f32 %v2398, %v2404
  %v2407 = vmul.f32 %v2399, %v2404
  %v2409 = vlaneseq
  %v2410 = vshrl.u32 %v2409, 7
  %v2411 = vsub.s32 0, %v2410
  %v2412 = vrot.slane %v2372, %v2411
  %v2414 = vadd.f32 %v2406, %v2412
  %v2415 = vadd.f32 %v2407, %v2412
  %v2416 = vld [vmem:[%s14] sm:$0xff]
  %v2417 = vld [vmem:[%s14 + $0x8] sm:$0xff]
  %v2418 = vld [vmem:[%s14 + $0x10] sm:$0xff]
  %v2419 = vld [vmem:[%s14 + $0x18] sm:$0xff]
  %v2420 = vld [vmem:[%s14 + $0x20] sm:$0xff]
  %v2421 = vld [vmem:[%s14 + $0x28] sm:$0xff]
  %v2422 = vld [vmem:[%s14 + $0x30] sm:$0xff]
  %v2423 = vld [vmem:[%s14 + $0x38] sm:$0xff]
  %v2424 = vld [vmem:[%s14 + $0x40] sm:$0xff]
  %v2425 = vld [vmem:[%s14 + $0x48] sm:$0xff]
  %v2426 = vld [vmem:[%s14 + $0x50] sm:$0xff]
  %v2427 = vld [vmem:[%s14 + $0x58] sm:$0xff]
  %v2428 = vld [vmem:[%s14 + $0x60] sm:$0xff]
  %v2429 = vld [vmem:[%s14 + $0x68] sm:$0xff]
  %v2430 = vld [vmem:[%s14 + $0x70] sm:$0xff]
  %v2431 = vld [vmem:[%s14 + $0x78] sm:$0xff]
  %v2432 = vld [vmem:[%s15] sm:$0x3]
  %v2434 = vlaneseq
  %v2435 = vshrl.u32 %v2434, 7
  %v2436 = vsub.s32 0, %v2435
  %v2437 = vrot.slane %v2432, %v2436
  %v2438 = vlaneseq
  %v2439 = vshrl.u32 %v2438, 7
  %v2440 = vsub.s32 1, %v2439
  %v2441 = vrot.slane %v2432, %v2440
  %v2445 = vsel %vm204, %v2414, 0
  %v2448 = vsel %vm204, %v2415, 0
  %2450 = vmatprep.subr.mxu0 %v2417
  %2451 = vmatpush1.msra.mxu0 %v2416
  %2452 = vmatprep.subr.mxu0 %v2419
  %2453 = vmatpush1.msra.mxu0 %v2418
  %2454 = vmatprep.subr.mxu0 %v2421
  %2455 = vmatpush1.msra.mxu0 %v2420
  %2456 = vmatprep.subr.mxu0 %v2423
  %2457 = vmatpush1.msra.mxu0 %v2422
  %2458 = vmatprep.subr.mxu0 %v2425
  %2459 = vmatpush1.msra.mxu0 %v2424
  %2460 = vmatprep.subr.mxu0 %v2427
  %2461 = vmatpush1.msra.mxu0 %v2426
  %2462 = vmatprep.subr.mxu0 %v2429
  %2463 = vmatpush1.msra.mxu0 %v2428
  %2464 = vmatprep.subr.mxu0 %v2431
  %2465 = vmatpush1.msra.mxu0 %v2430
  %2466 = vmatprep.subr.mxu0 0.0
  %2467 = vmatpush1.msra.mxu0 0.0
  %2468 = vmatprep.subr.mxu0 0.0
  %2469 = vmatpush1.msra.mxu0 0.0
  %2470 = vmatprep.subr.mxu0 0.0
  %2471 = vmatpush1.msra.mxu0 0.0
  %2472 = vmatprep.subr.mxu0 0.0
  %2473 = vmatpush1.msra.mxu0 0.0
  %2474 = vmatprep.subr.mxu0 0.0
  %2475 = vmatpush1.msra.mxu0 0.0
  %2476 = vmatprep.subr.mxu0 0.0
  %2477 = vmatpush1.msra.mxu0 0.0
  %2478 = vmatprep.subr.mxu0 0.0
  %2479 = vmatpush1.msra.mxu0 0.0
  %2480 = vmatprep.subr.mxu0 0.0
  %2481 = vmatpush1.msra.mxu0 0.0
  %2482 = vmatprep.subr.mxu0 0.0
  %2483 = vmatpush1.msra.mxu0 0.0
  %2484 = vmatprep.subr.mxu0 0.0
  %2485 = vmatpush1.msra.mxu0 0.0
  %2486 = vmatprep.subr.mxu0 0.0
  %2487 = vmatpush1.msra.mxu0 0.0
  %2488 = vmatprep.subr.mxu0 0.0
  %2489 = vmatpush1.msra.mxu0 0.0
  %2490 = vmatprep.subr.mxu0 0.0
  %2491 = vmatpush1.msra.mxu0 0.0
  %2492 = vmatprep.subr.mxu0 0.0
  %2493 = vmatpush1.msra.mxu0 0.0
  %2494 = vmatprep.subr.mxu0 0.0
  %2495 = vmatpush1.msra.mxu0 0.0
  %2496 = vmatprep.subr.mxu0 0.0
  %2497 = vmatpush1.msra.mxu0 0.0
  %2498 = vmatprep.subr.mxu0 0.0
  %2499 = vmatpush1.msra.mxu0 0.0
  %2500 = vmatprep.subr.mxu0 0.0
  %2501 = vmatpush1.msra.mxu0 0.0
  %2502 = vmatprep.subr.mxu0 0.0
  %2503 = vmatpush1.msra.mxu0 0.0
  %2504 = vmatprep.subr.mxu0 0.0
  %2505 = vmatpush1.msra.mxu0 0.0
  %2506 = vmatprep.subr.mxu0 0.0
  %2507 = vmatpush1.msra.mxu0 0.0
  %2508 = vmatprep.subr.mxu0 0.0
  %2509 = vmatpush1.msra.mxu0 0.0
  %2510 = vmatprep.subr.mxu0 0.0
  %2511 = vmatpush1.msra.mxu0 0.0
  %2512 = vmatprep.subr.mxu0 0.0
  %2513 = vmatpush1.msra.mxu0 0.0
  %2514 = vmatprep.mubr.f32.mxu0 0.0
  %2515 = vmatmul.mubr.f32.gmra.mrb[0].mxu0 %v2445
  %v2516 = vpop.f32.mrb[0].mxu0
  %v2517 = vadd.f32 %v2437, %v2516
  %v2518 = vpop.f32.mrb[0].mxu0
  %v2519 = vadd.f32 %v2441, %v2518
  %2520 = vmatprep.mubr.f32.mxu0 0.0
  %2521 = vmatmul.mubr.f32.gmra.mrb[0].mxu0 %v2448
  %v2522 = vpop.f32.mrb[0].mxu0
  %v2523 = vadd.f32 %v2437, %v2522
  %v2524 = vpop.f32.mrb[0].mxu0
  %v2525 = vadd.f32 %v2441, %v2524
  %2526 = vdwg.mxu0
  %v2527 = vmax.f32 %v2517, 0.0
  %v2528 = vmax.f32 %v2519, 0.0
  %v2529 = vmax.f32 %v2523, 0.0
  %v2530 = vmax.f32 %v2525, 0.0
  %v2531 = vld [vmem:[%s16] sm:$0xff]
  %v2532 = vld [vmem:[%s16 + $0x8] sm:$0xff]
  %v2533 = vld [vmem:[%s16 + $0x10] sm:$0xff]
  %v2534 = vld [vmem:[%s16 + $0x18] sm:$0xff]
  %v2535 = vld [vmem:[%s16 + $0x20] sm:$0xff]
  %v2536 = vld [vmem:[%s16 + $0x28] sm:$0xff]
  %v2537 = vld [vmem:[%s16 + $0x30] sm:$0xff]
  %v2538 = vld [vmem:[%s16 + $0x38] sm:$0xff]
  %v2539 = vld [vmem:[%s16 + $0x40] sm:$0xff]
  %v2540 = vld [vmem:[%s16 + $0x48] sm:$0xff]
  %v2541 = vld [vmem:[%s16 + $0x50] sm:$0xff]
  %v2542 = vld [vmem:[%s16 + $0x58] sm:$0xff]
  %v2543 = vld [vmem:[%s16 + $0x60] sm:$0xff]
  %v2544 = vld [vmem:[%s16 + $0x68] sm:$0xff]
  %v2545 = vld [vmem:[%s16 + $0x70] sm:$0xff]
  %v2546 = vld [vmem:[%s16 + $0x78] sm:$0xff]
  %v2547 = vld [vmem:[%s16 + $0x80] sm:$0xff]
  %v2548 = vld [vmem:[%s16 + $0x88] sm:$0xff]
  %v2549 = vld [vmem:[%s16 + $0x90] sm:$0xff]
  %v2550 = vld [vmem:[%s16 + $0x98] sm:$0xff]
  %v2551 = vld [vmem:[%s16 + $0xa0] sm:$0xff]
  %v2552 = vld [vmem:[%s16 + $0xa8] sm:$0xff]
  %v2553 = vld [vmem:[%s16 + $0xb0] sm:$0xff]
  %v2554 = vld [vmem:[%s16 + $0xb8] sm:$0xff]
  %v2555 = vld [vmem:[%s16 + $0xc0] sm:$0xff]
  %v2556 = vld [vmem:[%s16 + $0xc8] sm:$0xff]
  %v2557 = vld [vmem:[%s16 + $0xd0] sm:$0xff]
  %v2558 = vld [vmem:[%s16 + $0xd8] sm:$0xff]
  %v2559 = vld [vmem:[%s16 + $0xe0] sm:$0xff]
  %v2560 = vld [vmem:[%s16 + $0xe8] sm:$0xff]
  %v2561 = vld [vmem:[%s16 + $0xf0] sm:$0xff]
  %v2562 = vld [vmem:[%s16 + $0xf8] sm:$0xff]
  %v2563 = vld [vmem:[%s17] sm:$0x1]
  %v2565 = vlaneseq
  %v2566 = vshrl.u32 %v2565, 7
  %v2567 = vsub.s32 0, %v2566
  %v2568 = vrot.slane %v2563, %v2567
  %2570 = vmatprep.subr.mxu0 0.0
  %2571 = vmatpush1.msra.mxu0 %v2531
  %2572 = vmatprep.subr.mxu0 0.0
  %2573 = vmatpush1.msra.mxu0 %v2532
  %2574 = vmatprep.subr.mxu0 0.0
  %2575 = vmatpush1.msra.mxu0 %v2533
  %2576 = vmatprep.subr.mxu0 0.0
  %2577 = vmatpush1.msra.mxu0 %v2534
  %2578 = vmatprep.subr.mxu0 0.0
  %2579 = vmatpush1.msra.mxu0 %v2535
  %2580 = vmatprep.subr.mxu0 0.0
  %2581 = vmatpush1.msra.mxu0 %v2536
  %2582 = vmatprep.subr.mxu0 0.0
  %2583 = vmatpush1.msra.mxu0 %v2537
  %2584 = vmatprep.subr.mxu0 0.0
  %2585 = vmatpush1.msra.mxu0 %v2538
  %2586 = vmatprep.subr.mxu0 0.0
  %2587 = vmatpush1.msra.mxu0 %v2539
  %2588 = vmatprep.subr.mxu0 0.0
  %2589 = vmatpush1.msra.mxu0 %v2540
  %2590 = vmatprep.subr.mxu0 0.0
  %2591 = vmatpush1.msra.mxu0 %v2541
  %2592 = vmatprep.subr.mxu0 0.0
  %2593 = vmatpush1.msra.mxu0 %v2542
  %2594 = vmatprep.subr.mxu0 0.0
  %2595 = vmatpush1.msra.mxu0 %v2543
  %2596 = vmatprep.subr.mxu0 0.0
  %2597 = vmatpush1.msra.mxu0 %v2544
  %2598 = vmatprep.subr.mxu0 0.0
  %2599 = vmatpush1.msra.mxu0 %v2545
  %2600 = vmatprep.subr.mxu0 0.0
  %2601 = vmatpush1.msra.mxu0 %v2546
  %2602 = vmatprep.subr.mxu0 0.0
  %2603 = vmatpush1.msra.mxu0 %v2547
  %2604 = vmatprep.subr.mxu0 0.0
  %2605 = vmatpush1.msra.mxu0 %v2548
  %2606 = vmatprep.subr.mxu0 0.0
  %2607 = vmatpush1.msra.mxu0 %v2549
  %2608 = vmatprep.subr.mxu0 0.0
  %2609 = vmatpush1.msra.mxu0 %v2550
  %2610 = vmatprep.subr.mxu0 0.0
  %2611 = vmatpush1.msra.mxu0 %v2551
  %2612 = vmatprep.subr.mxu0 0.0
  %2613 = vmatpush1.msra.mxu0 %v2552
  %2614 = vmatprep.subr.mxu0 0.0
  %2615 = vmatpush1.msra.mxu0 %v2553
  %2616 = vmatprep.subr.mxu0 0.0
  %2617 = vmatpush1.msra.mxu0 %v2554
  %2618 = vmatprep.subr.mxu0 0.0
  %2619 = vmatpush1.msra.mxu0 %v2555
  %2620 = vmatprep.subr.mxu0 0.0
  %2621 = vmatpush1.msra.mxu0 %v2556
  %2622 = vmatprep.subr.mxu0 0.0
  %2623 = vmatpush1.msra.mxu0 %v2557
  %2624 = vmatprep.subr.mxu0 0.0
  %2625 = vmatpush1.msra.mxu0 %v2558
  %2626 = vmatprep.subr.mxu0 0.0
  %2627 = vmatpush1.msra.mxu0 %v2559
  %2628 = vmatprep.subr.mxu0 0.0
  %2629 = vmatpush1.msra.mxu0 %v2560
  %2630 = vmatprep.subr.mxu0 0.0
  %2631 = vmatpush1.msra.mxu0 %v2561
  %2632 = vmatprep.subr.mxu0 0.0
  %2633 = vmatpush1.msra.mxu0 %v2562
  %2634 = vmatprep.mubr.f32.mxu0 %v2528
  %2635 = vmatmul.mubr.f32.gmra.mrb[0].mxu0 %v2527
  %v2636 = vpop.f32.mrb[0].mxu0
  %v2637 = vadd.f32 %v2568, %v2636
  %v2638 = vpop.f32.mrb[0].mxu0
  %2639 = vmatprep.mubr.f32.mxu0 %v2530
  %2640 = vmatmul.mubr.f32.gmra.mrb[0].mxu0 %v2529
  %v2641 = vpop.f32.mrb[0].mxu0
  %v2642 = vadd.f32 %v2568, %v2641
  %v2643 = vpop.f32.mrb[0].mxu0
  %2644 = vdwg.mxu0
  %v2645 = vadd.f32 %v2414, %v2637
  %v2646 = vadd.f32 %v2415, %v2642
  %v2647 = vld [vmem:[%s18] sm:$0x1]
  %v2648 = vld [vmem:[%s19] sm:$0x1]
  %v2649 = vsel %vm204, %v2645, 0.0
  %2650 = vadd.xlane.f32.xlu0 %v2649
  %v2651 = vpop.xlane.xlu0 %2650
  %v2652 = vsel %vm204, %v2646, 0.0
  %2653 = vadd.xlane.f32.xlu0 %v2652
  %v2654 = vpop.xlane.xlu0 %2653
  %v2655 = vmul.f32 %v2651, %v2379
  %v2656 = vmul.f32 %v2654, %v2379
  %v2657 = vsub.f32 %v2645, %v2655
  %v2658 = vsub.f32 %v2646, %v2656
  %v2659 = vmul.f32 %v2657, %v2657
  %v2660 = vmul.f32 %v2658, %v2658
  %v2661 = vsel %vm204, %v2659, 0.0
  %2662 = vadd.xlane.f32.xlu0 %v2661
  %v2663 = vpop.xlane.xlu0 %2662
  %v2664 = vsel %vm204, %v2660, 0.0
  %2665 = vadd.xlane.f32.xlu0 %v2664
  %v2666 = vpop.xlane.xlu0 %2665
  %v2667 = vmul.f32 %v2663, %v2379
  %v2668 = vmul.f32 %v2666, %v2379
  %v2669 = vadd.f32 %v2667, 1e-05
  %v2670 = vadd.f32 %v2668, 1e-05
  %v2671 = vrsqrt.pop %v2669
  %v2672 = vrsqrt.pop %v2670
  %v2673 = vmul.f32 %v2657, %v2671
  %v2674 = vmul.f32 %v2658, %v2672
  %v2676 = vlaneseq
  %v2677 = vshrl.u32 %v2676, 7
  %v2678 = vsub.s32 0, %v2677
  %v2679 = vrot.slane %v2647, %v2678
  %v2681 = vmul.f32 %v2673, %v2679
  %v2682 = vmul.f32 %v2674, %v2679
  %v2684 = vlaneseq
  %v2685 = vshrl.u32 %v2684, 7
  %v2686 = vsub.s32 0, %v2685
  %v2687 = vrot.slane %v2648, %v2686
  %v2689 = vadd.f32 %v2681, %v2687
  %v2690 = vadd.f32 %v2682, %v2687
  %s2691 = scalar_lea.vmem %s4, 64
  %v2692 = vld [vmem:[%s2691] sm:$0xff]
  %v2693 = vld [vmem:[%s2691 + $0x8] sm:$0xff]
  %v2694 = vld [vmem:[%s2691 + $0x10] sm:$0xff]
  %v2695 = vld [vmem:[%s2691 + $0x18] sm:$0xff]
  %v2696 = vld [vmem:[%s2691 + $0x20] sm:$0xff]
  %v2697 = vld [vmem:[%s2691 + $0x28] sm:$0xff]
  %v2698 = vld [vmem:[%s2691 + $0x30] sm:$0xff]
  %v2699 = vld [vmem:[%s2691 + $0x38] sm:$0xff]
  %s2700 = scalar_lea.vmem %s5, 64
  %v2701 = vld [vmem:[%s2700] sm:$0xff]
  %v2702 = vld [vmem:[%s2700 + $0x8] sm:$0xff]
  %v2703 = vld [vmem:[%s2700 + $0x10] sm:$0xff]
  %v2704 = vld [vmem:[%s2700 + $0x18] sm:$0xff]
  %v2705 = vld [vmem:[%s2700 + $0x20] sm:$0xff]
  %v2706 = vld [vmem:[%s2700 + $0x28] sm:$0xff]
  %v2707 = vld [vmem:[%s2700 + $0x30] sm:$0xff]
  %v2708 = vld [vmem:[%s2700 + $0x38] sm:$0xff]
  %s2709 = scalar_lea.vmem %s6, 64
  %v2710 = vld [vmem:[%s2709] sm:$0xff]
  %v2711 = vld [vmem:[%s2709 + $0x8] sm:$0xff]
  %v2712 = vld [vmem:[%s2709 + $0x10] sm:$0xff]
  %v2713 = vld [vmem:[%s2709 + $0x18] sm:$0xff]
  %v2714 = vld [vmem:[%s2709 + $0x20] sm:$0xff]
  %v2715 = vld [vmem:[%s2709 + $0x28] sm:$0xff]
  %v2716 = vld [vmem:[%s2709 + $0x30] sm:$0xff]
  %v2717 = vld [vmem:[%s2709 + $0x38] sm:$0xff]
  %s2718 = scalar_lea.vmem %s10, 64
  %v2719 = vld [vmem:[%s2718] sm:$0xff]
  %v2720 = vld [vmem:[%s2718 + $0x8] sm:$0xff]
  %v2721 = vld [vmem:[%s2718 + $0x10] sm:$0xff]
  %v2722 = vld [vmem:[%s2718 + $0x18] sm:$0xff]
  %v2723 = vld [vmem:[%s2718 + $0x20] sm:$0xff]
  %v2724 = vld [vmem:[%s2718 + $0x28] sm:$0xff]
  %v2725 = vld [vmem:[%s2718 + $0x30] sm:$0xff]
  %v2726 = vld [vmem:[%s2718 + $0x38] sm:$0xff]
  %s2727 = scalar_lea.vmem %s7, 1
  %v2728 = vld [vmem:[%s2727] sm:$0x1]
  %v2730 = vlaneseq
  %v2731 = vshrl.u32 %v2730, 7
  %v2732 = vsub.s32 0, %v2731
  %v2733 = vrot.slane %v2728, %v2732
  %v2736 = vsel %vm204, %v2689, 0
  %v2739 = vsel %vm204, %v2690, 0
  %2741 = vmatprep.subr.mxu0 0.0
  %2742 = vmatpush1.msra.mxu0 %v2692
  %2743 = vmatprep.subr.mxu0 0.0
  %2744 = vmatpush1.msra.mxu0 %v2693
  %2745 = vmatprep.subr.mxu0 0.0
  %2746 = vmatpush1.msra.mxu0 %v2694
  %2747 = vmatprep.subr.mxu0 0.0
  %2748 = vmatpush1.msra.mxu0 %v2695
  %2749 = vmatprep.subr.mxu0 0.0
  %2750 = vmatpush1.msra.mxu0 %v2696
  %2751 = vmatprep.subr.mxu0 0.0
  %2752 = vmatpush1.msra.mxu0 %v2697
  %2753 = vmatprep.subr.mxu0 0.0
  %2754 = vmatpush1.msra.mxu0 %v2698
  %2755 = vmatprep.subr.mxu0 0.0
  %2756 = vmatpush1.msra.mxu0 %v2699
  %2757 = vmatprep.subr.mxu0 0.0
  %2758 = vmatpush1.msra.mxu0 0.0
  %2759 = vmatprep.subr.mxu0 0.0
  %2760 = vmatpush1.msra.mxu0 0.0
  %2761 = vmatprep.subr.mxu0 0.0
  %2762 = vmatpush1.msra.mxu0 0.0
  %2763 = vmatprep.subr.mxu0 0.0
  %2764 = vmatpush1.msra.mxu0 0.0
  %2765 = vmatprep.subr.mxu0 0.0
  %2766 = vmatpush1.msra.mxu0 0.0
  %2767 = vmatprep.subr.mxu0 0.0
  %2768 = vmatpush1.msra.mxu0 0.0
  %2769 = vmatprep.subr.mxu0 0.0
  %2770 = vmatpush1.msra.mxu0 0.0
  %2771 = vmatprep.subr.mxu0 0.0
  %2772 = vmatpush1.msra.mxu0 0.0
  %2773 = vmatprep.subr.mxu0 0.0
  %2774 = vmatpush1.msra.mxu0 0.0
  %2775 = vmatprep.subr.mxu0 0.0
  %2776 = vmatpush1.msra.mxu0 0.0
  %2777 = vmatprep.subr.mxu0 0.0
  %2778 = vmatpush1.msra.mxu0 0.0
  %2779 = vmatprep.subr.mxu0 0.0
  %2780 = vmatpush1.msra.mxu0 0.0
  %2781 = vmatprep.subr.mxu0 0.0
  %2782 = vmatpush1.msra.mxu0 0.0
  %2783 = vmatprep.subr.mxu0 0.0
  %2784 = vmatpush1.msra.mxu0 0.0
  %2785 = vmatprep.subr.mxu0 0.0
  %2786 = vmatpush1.msra.mxu0 0.0
  %2787 = vmatprep.subr.mxu0 0.0
  %2788 = vmatpush1.msra.mxu0 0.0
  %2789 = vmatprep.subr.mxu0 0.0
  %2790 = vmatpush1.msra.mxu0 0.0
  %2791 = vmatprep.subr.mxu0 0.0
  %2792 = vmatpush1.msra.mxu0 0.0
  %2793 = vmatprep.subr.mxu0 0.0
  %2794 = vmatpush1.msra.mxu0 0.0
  %2795 = vmatprep.subr.mxu0 0.0
  %2796 = vmatpush1.msra.mxu0 0.0
  %2797 = vmatprep.subr.mxu0 0.0
  %2798 = vmatpush1.msra.mxu0 0.0
  %2799 = vmatprep.subr.mxu0 0.0
  %2800 = vmatpush1.msra.mxu0 0.0
  %2801 = vmatprep.subr.mxu0 0.0
  %2802 = vmatpush1.msra.mxu0 0.0
  %2803 = vmatprep.subr.mxu0 0.0
  %2804 = vmatpush1.msra.mxu0 0.0
  %2805 = vmatprep.mubr.f32.mxu0 0.0
  %2806 = vmatmul.mubr.f32.gmra.mrb[0].mxu0 %v2736
  %v2807 = vpop.f32.mrb[0].mxu0
  %v2808 = vadd.f32 %v2733, %v2807
  %v2809 = vpop.f32.mrb[0].mxu0
  %2810 = vmatprep.mubr.f32.mxu0 0.0
  %2811 = vmatmul.mubr.f32.gmra.mrb[0].mxu0 %v2739
  %v2812 = vpop.f32.mrb[0].mxu0
  %v2813 = vadd.f32 %v2733, %v2812
  %v2814 = vpop.f32.mrb[0].mxu0
  %2815 = vdwg.mxu0
  %s2816 = scalar_lea.vmem %s8, 1
  %v2817 = vld [vmem:[%s2816] sm:$0x1]
  %v2819 = vlaneseq
  %v2820 = vshrl.u32 %v2819, 7
  %v2821 = vsub.s32 0, %v2820
  %v2822 = vrot.slane %v2817, %v2821
  %2824 = vmatprep.subr.mxu0 0.0
  %2825 = vmatpush1.msra.mxu0 %v2701
  %2826 = vmatprep.subr.mxu0 0.0
  %2827 = vmatpush1.msra.mxu0 %v2702
  %2828 = vmatprep.subr.mxu0 0.0
  %2829 = vmatpush1.msra.mxu0 %v2703
  %2830 = vmatprep.subr.mxu0 0.0
  %2831 = vmatpush1.msra.mxu0 %v2704
  %2832 = vmatprep.subr.mxu0 0.0
  %2833 = vmatpush1.msra.mxu0 %v2705
  %2834 = vmatprep.subr.mxu0 0.0
  %2835 = vmatpush1.msra.mxu0 %v2706
  %2836 = vmatprep.subr.mxu0 0.0
  %2837 = vmatpush1.msra.mxu0 %v2707
  %2838 = vmatprep.subr.mxu0 0.0
  %2839 = vmatpush1.msra.mxu0 %v2708
  %2840 = vmatprep.subr.mxu0 0.0
  %2841 = vmatpush1.msra.mxu0 0.0
  %2842 = vmatprep.subr.mxu0 0.0
  %2843 = vmatpush1.msra.mxu0 0.0
  %2844 = vmatprep.subr.mxu0 0.0
  %2845 = vmatpush1.msra.mxu0 0.0
  %2846 = vmatprep.subr.mxu0 0.0
  %2847 = vmatpush1.msra.mxu0 0.0
  %2848 = vmatprep.subr.mxu0 0.0
  %2849 = vmatpush1.msra.mxu0 0.0
  %2850 = vmatprep.subr.mxu0 0.0
  %2851 = vmatpush1.msra.mxu0 0.0
  %2852 = vmatprep.subr.mxu0 0.0
  %2853 = vmatpush1.msra.mxu0 0.0
  %2854 = vmatprep.subr.mxu0 0.0
  %2855 = vmatpush1.msra.mxu0 0.0
  %2856 = vmatprep.subr.mxu0 0.0
  %2857 = vmatpush1.msra.mxu0 0.0
  %2858 = vmatprep.subr.mxu0 0.0
  %2859 = vmatpush1.msra.mxu0 0.0
  %2860 = vmatprep.subr.mxu0 0.0
  %2861 = vmatpush1.msra.mxu0 0.0
  %2862 = vmatprep.subr.mxu0 0.0
  %2863 = vmatpush1.msra.mxu0 0.0
  %2864 = vmatprep.subr.mxu0 0.0
  %2865 = vmatpush1.msra.mxu0 0.0
  %2866 = vmatprep.subr.mxu0 0.0
  %2867 = vmatpush1.msra.mxu0 0.0
  %2868 = vmatprep.subr.mxu0 0.0
  %2869 = vmatpush1.msra.mxu0 0.0
  %2870 = vmatprep.subr.mxu0 0.0
  %2871 = vmatpush1.msra.mxu0 0.0
  %2872 = vmatprep.subr.mxu0 0.0
  %2873 = vmatpush1.msra.mxu0 0.0
  %2874 = vmatprep.subr.mxu0 0.0
  %2875 = vmatpush1.msra.mxu0 0.0
  %2876 = vmatprep.subr.mxu0 0.0
  %2877 = vmatpush1.msra.mxu0 0.0
  %2878 = vmatprep.subr.mxu0 0.0
  %2879 = vmatpush1.msra.mxu0 0.0
  %2880 = vmatprep.subr.mxu0 0.0
  %2881 = vmatpush1.msra.mxu0 0.0
  %2882 = vmatprep.subr.mxu0 0.0
  %2883 = vmatpush1.msra.mxu0 0.0
  %2884 = vmatprep.subr.mxu0 0.0
  %2885 = vmatpush1.msra.mxu0 0.0
  %2886 = vmatprep.subr.mxu0 0.0
  %2887 = vmatpush1.msra.mxu0 0.0
  %2888 = vmatprep.mubr.f32.mxu0 0.0
  %2889 = vmatmul.mubr.f32.gmra.mrb[0].mxu0 %v2736
  %v2890 = vpop.f32.mrb[0].mxu0
  %v2891 = vadd.f32 %v2822, %v2890
  %v2892 = vpop.f32.mrb[0].mxu0
  %2893 = vmatprep.mubr.f32.mxu0 0.0
  %2894 = vmatmul.mubr.f32.gmra.mrb[0].mxu0 %v2739
  %v2895 = vpop.f32.mrb[0].mxu0
  %v2896 = vadd.f32 %v2822, %v2895
  %v2897 = vpop.f32.mrb[0].mxu0
  %2898 = vdwg.mxu0
  %s2899 = scalar_lea.vmem %s9, 1
  %v2900 = vld [vmem:[%s2899] sm:$0x1]
  %v2902 = vlaneseq
  %v2903 = vshrl.u32 %v2902, 7
  %v2904 = vsub.s32 0, %v2903
  %v2905 = vrot.slane %v2900, %v2904
  %2907 = vmatprep.subr.mxu0 0.0
  %2908 = vmatpush1.msra.mxu0 %v2710
  %2909 = vmatprep.subr.mxu0 0.0
  %2910 = vmatpush1.msra.mxu0 %v2711
  %2911 = vmatprep.subr.mxu0 0.0
  %2912 = vmatpush1.msra.mxu0 %v2712
  %2913 = vmatprep.subr.mxu0 0.0
  %2914 = vmatpush1.msra.mxu0 %v2713
  %2915 = vmatprep.subr.mxu0 0.0
  %2916 = vmatpush1.msra.mxu0 %v2714
  %2917 = vmatprep.subr.mxu0 0.0
  %2918 = vmatpush1.msra.mxu0 %v2715
  %2919 = vmatprep.subr.mxu0 0.0
  %2920 = vmatpush1.msra.mxu0 %v2716
  %2921 = vmatprep.subr.mxu0 0.0
  %2922 = vmatpush1.msra.mxu0 %v2717
  %2923 = vmatprep.subr.mxu0 0.0
  %2924 = vmatpush1.msra.mxu0 0.0
  %2925 = vmatprep.subr.mxu0 0.0
  %2926 = vmatpush1.msra.mxu0 0.0
  %2927 = vmatprep.subr.mxu0 0.0
  %2928 = vmatpush1.msra.mxu0 0.0
  %2929 = vmatprep.subr.mxu0 0.0
  %2930 = vmatpush1.msra.mxu0 0.0
  %2931 = vmatprep.subr.mxu0 0.0
  %2932 = vmatpush1.msra.mxu0 0.0
  %2933 = vmatprep.subr.mxu0 0.0
  %2934 = vmatpush1.msra.mxu0 0.0
  %2935 = vmatprep.subr.mxu0 0.0
  %2936 = vmatpush1.msra.mxu0 0.0
  %2937 = vmatprep.subr.mxu0 0.0
  %2938 = vmatpush1.msra.mxu0 0.0
  %2939 = vmatprep.subr.mxu0 0.0
  %2940 = vmatpush1.msra.mxu0 0.0
  %2941 = vmatprep.subr.mxu0 0.0
  %2942 = vmatpush1.msra.mxu0 0.0
  %2943 = vmatprep.subr.mxu0 0.0
  %2944 = vmatpush1.msra.mxu0 0.0
  %2945 = vmatprep.subr.mxu0 0.0
  %2946 = vmatpush1.msra.mxu0 0.0
  %2947 = vmatprep.subr.mxu0 0.0
  %2948 = vmatpush1.msra.mxu0 0.0
  %2949 = vmatprep.subr.mxu0 0.0
  %2950 = vmatpush1.msra.mxu0 0.0
  %2951 = vmatprep.subr.mxu0 0.0
  %2952 = vmatpush1.msra.mxu0 0.0
  %2953 = vmatprep.subr.mxu0 0.0
  %2954 = vmatpush1.msra.mxu0 0.0
  %2955 = vmatprep.subr.mxu0 0.0
  %2956 = vmatpush1.msra.mxu0 0.0
  %2957 = vmatprep.subr.mxu0 0.0
  %2958 = vmatpush1.msra.mxu0 0.0
  %2959 = vmatprep.subr.mxu0 0.0
  %2960 = vmatpush1.msra.mxu0 0.0
  %2961 = vmatprep.subr.mxu0 0.0
  %2962 = vmatpush1.msra.mxu0 0.0
  %2963 = vmatprep.subr.mxu0 0.0
  %2964 = vmatpush1.msra.mxu0 0.0
  %2965 = vmatprep.subr.mxu0 0.0
  %2966 = vmatpush1.msra.mxu0 0.0
  %2967 = vmatprep.subr.mxu0 0.0
  %2968 = vmatpush1.msra.mxu0 0.0
  %2969 = vmatprep.subr.mxu0 0.0
  %2970 = vmatpush1.msra.mxu0 0.0
  %2971 = vmatprep.mubr.f32.mxu0 0.0
  %2972 = vmatmul.mubr.f32.gmra.mrb[0].mxu0 %v2736
  %v2973 = vpop.f32.mrb[0].mxu0
  %v2974 = vadd.f32 %v2905, %v2973
  %v2975 = vpop.f32.mrb[0].mxu0
  %2976 = vmatprep.mubr.f32.mxu0 0.0
  %2977 = vmatmul.mubr.f32.gmra.mrb[0].mxu0 %v2739
  %v2978 = vpop.f32.mrb[0].mxu0
  %v2979 = vadd.f32 %v2905, %v2978
  %v2980 = vpop.f32.mrb[0].mxu0
  %2981 = vdwg.mxu0
  %v2983 = vsel %vm450, %v2808, 0
  %v2986 = vsel %vm450, %v2891, 0
  %2988 = vmatprep.subr.mxu0 0.0
  %2989 = vmatpush1.xpose.msra.mxu0 %v2986
  %2990 = vmatprep.subr.mxu0 0.0
  %2991 = vmatpush1.xpose.msra.mxu0 0.0
  %2992 = vmatprep.subr.mxu0 0.0
  %2993 = vmatpush1.xpose.msra.mxu0 0.0
  %2994 = vmatprep.subr.mxu0 0.0
  %2995 = vmatpush1.xpose.msra.mxu0 0.0
  %2996 = vmatprep.subr.mxu0 0.0
  %2997 = vmatpush1.xpose.msra.mxu0 0.0
  %2998 = vmatprep.subr.mxu0 0.0
  %2999 = vmatpush1.xpose.msra.mxu0 0.0
  %3000 = vmatprep.subr.mxu0 0.0
  %3001 = vmatpush1.xpose.msra.mxu0 0.0
  %3002 = vmatprep.subr.mxu0 0.0
  %3003 = vmatpush1.xpose.msra.mxu0 0.0
  %3004 = vmatprep.subr.mxu0 0.0
  %3005 = vmatpush1.xpose.msra.mxu0 0.0
  %3006 = vmatprep.subr.mxu0 0.0
  %3007 = vmatpush1.xpose.msra.mxu0 0.0
  %3008 = vmatprep.subr.mxu0 0.0
  %3009 = vmatpush1.xpose.msra.mxu0 0.0
  %3010 = vmatprep.subr.mxu0 0.0
  %3011 = vmatpush1.xpose.msra.mxu0 0.0
  %3012 = vmatprep.subr.mxu0 0.0
  %3013 = vmatpush1.xpose.msra.mxu0 0.0
  %3014 = vmatprep.subr.mxu0 0.0
  %3015 = vmatpush1.xpose.msra.mxu0 0.0
  %3016 = vmatprep.subr.mxu0 0.0
  %3017 = vmatpush1.xpose.msra.mxu0 0.0
  %3018 = vmatprep.subr.mxu0 0.0
  %3019 = vmatpush1.xpose.msra.mxu0 0.0
  %3020 = vmatprep.subr.mxu0 0.0
  %3021 = vmatpush1.xpose.msra.mxu0 0.0
  %3022 = vmatprep.subr.mxu0 0.0
  %3023 = vmatpush1.xpose.msra.mxu0 0.0
  %3024 = vmatprep.subr.mxu0 0.0
  %3025 = vmatpush1.xpose.msra.mxu0 0.0
  %3026 = vmatprep.subr.mxu0 0.0
  %3027 = vmatpush1.xpose.msra.mxu0 0.0
  %3028 = vmatprep.subr.mxu0 0.0
  %3029 = vmatpush1.xpose.msra.mxu0 0.0
  %3030 = vmatprep.subr.mxu0 0.0
  %3031 = vmatpush1.xpose.msra.mxu0 0.0
  %3032 = vmatprep.subr.mxu0 0.0
  %3033 = vmatpush1.xpose.msra.mxu0 0.0
  %3034 = vmatprep.subr.mxu0 0.0
  %3035 = vmatpush1.xpose.msra.mxu0 0.0
  %3036 = vmatprep.subr.mxu0 0.0
  %3037 = vmatpush1.xpose.msra.mxu0 0.0
  %3038 = vmatprep.subr.mxu0 0.0
  %3039 = vmatpush1.xpose.msra.mxu0 0.0
  %3040 = vmatprep.subr.mxu0 0.0
  %3041 = vmatpush1.xpose.msra.mxu0 0.0
  %3042 = vmatprep.subr.mxu0 0.0
  %3043 = vmatpush1.xpose.msra.mxu0 0.0
  %3044 = vmatprep.subr.mxu0 0.0
  %3045 = vmatpush1.xpose.msra.mxu0 0.0
  %3046 = vmatprep.subr.mxu0 0.0
  %3047 = vmatpush1.xpose.msra.mxu0 0.0
  %3048 = vmatprep.subr.mxu0 0.0
  %3049 = vmatpush1.xpose.msra.mxu0 0.0
  %3050 = vmatprep.subr.mxu0 0.0
  %3051 = vmatpush1.xpose.msra.mxu0 0.0
  %3052 = vmatprep.mubr.f32.mxu0 0.0
  %3053 = vmatmul.mubr.f32.gmra.mrb[0].mxu0 %v2983
  %v3054 = vpop.f32.mrb[0].mxu0
  %v3055 = vadd.f32 0.0, %v3054
  %v3056 = vpop.f32.mrb[0].mxu0
  %3057 = vdwg.mxu0
  %3058 = vrot.lane.b32.xlu0 %v2808, 112
  %v3059 = vpop.permute.xlu0 %3058
  %3060 = vrot.lane.b32.xlu0 %v2891, 112
  %v3061 = vpop.permute.xlu0 %3060
  %v3062 = vsel %vm450, %v3059, 0
  %v3064 = vsel %vm450, %v3061, 0
  %3066 = vmatprep.subr.mxu0 0.0
  %3067 = vmatpush1.xpose.msra.mxu0 %v3064
  %3068 = vmatprep.subr.mxu0 0.0
  %3069 = vmatpush1.xpose.msra.mxu0 0.0
  %3070 = vmatprep.subr.mxu0 0.0
  %3071 = vmatpush1.xpose.msra.mxu0 0.0
  %3072 = vmatprep.subr.mxu0 0.0
  %3073 = vmatpush1.xpose.msra.mxu0 0.0
  %3074 = vmatprep.subr.mxu0 0.0
  %3075 = vmatpush1.xpose.msra.mxu0 0.0
  %3076 = vmatprep.subr.mxu0 0.0
  %3077 = vmatpush1.xpose.msra.mxu0 0.0
  %3078 = vmatprep.subr.mxu0 0.0
  %3079 = vmatpush1.xpose.msra.mxu0 0.0
  %3080 = vmatprep.subr.mxu0 0.0
  %3081 = vmatpush1.xpose.msra.mxu0 0.0
  %3082 = vmatprep.subr.mxu0 0.0
  %3083 = vmatpush1.xpose.msra.mxu0 0.0
  %3084 = vmatprep.subr.mxu0 0.0
  %3085 = vmatpush1.xpose.msra.mxu0 0.0
  %3086 = vmatprep.subr.mxu0 0.0
  %3087 = vmatpush1.xpose.msra.mxu0 0.0
  %3088 = vmatprep.subr.mxu0 0.0
  %3089 = vmatpush1.xpose.msra.mxu0 0.0
  %3090 = vmatprep.subr.mxu0 0.0
  %3091 = vmatpush1.xpose.msra.mxu0 0.0
  %3092 = vmatprep.subr.mxu0 0.0
  %3093 = vmatpush1.xpose.msra.mxu0 0.0
  %3094 = vmatprep.subr.mxu0 0.0
  %3095 = vmatpush1.xpose.msra.mxu0 0.0
  %3096 = vmatprep.subr.mxu0 0.0
  %3097 = vmatpush1.xpose.msra.mxu0 0.0
  %3098 = vmatprep.subr.mxu0 0.0
  %3099 = vmatpush1.xpose.msra.mxu0 0.0
  %3100 = vmatprep.subr.mxu0 0.0
  %3101 = vmatpush1.xpose.msra.mxu0 0.0
  %3102 = vmatprep.subr.mxu0 0.0
  %3103 = vmatpush1.xpose.msra.mxu0 0.0
  %3104 = vmatprep.subr.mxu0 0.0
  %3105 = vmatpush1.xpose.msra.mxu0 0.0
  %3106 = vmatprep.subr.mxu0 0.0
  %3107 = vmatpush1.xpose.msra.mxu0 0.0
  %3108 = vmatprep.subr.mxu0 0.0
  %3109 = vmatpush1.xpose.msra.mxu0 0.0
  %3110 = vmatprep.subr.mxu0 0.0
  %3111 = vmatpush1.xpose.msra.mxu0 0.0
  %3112 = vmatprep.subr.mxu0 0.0
  %3113 = vmatpush1.xpose.msra.mxu0 0.0
  %3114 = vmatprep.subr.mxu0 0.0
  %3115 = vmatpush1.xpose.msra.mxu0 0.0
  %3116 = vmatprep.subr.mxu0 0.0
  %3117 = vmatpush1.xpose.msra.mxu0 0.0
  %3118 = vmatprep.subr.mxu0 0.0
  %3119 = vmatpush1.xpose.msra.mxu0 0.0
  %3120 = vmatprep.subr.mxu0 0.0
  %3121 = vmatpush1.xpose.msra.mxu0 0.0
  %3122 = vmatprep.subr.mxu0 0.0
  %3123 = vmatpush1.xpose.msra.mxu0 0.0
  %3124 = vmatprep.subr.mxu0 0.0
  %3125 = vmatpush1.xpose.msra.mxu0 0.0
  %3126 = vmatprep.subr.mxu0 0.0
  %3127 = vmatpush1.xpose.msra.mxu0 0.0
  %3128 = vmatprep.subr.mxu0 0.0
  %3129 = vmatpush1.xpose.msra.mxu0 0.0
  %3130 = vmatprep.mubr.f32.mxu0 0.0
  %3131 = vmatmul.mubr.f32.gmra.mrb[0].mxu0 %v3062
  %v3132 = vpop.f32.mrb[0].mxu0
  %v3133 = vadd.f32 0.0, %v3132
  %v3134 = vpop.f32.mrb[0].mxu0
  %3135 = vdwg.mxu0
  %3136 = vrot.lane.b32.xlu0 %v2808, 96
  %v3137 = vpop.permute.xlu0 %3136
  %3138 = vrot.lane.b32.xlu0 %v2891, 96
  %v3139 = vpop.permute.xlu0 %3138
  %v3140 = vsel %vm450, %v3137, 0
  %v3142 = vsel %vm450, %v3139, 0
  %3144 = vmatprep.subr.mxu0 0.0
  %3145 = vmatpush1.xpose.msra.mxu0 %v3142
  %3146 = vmatprep.subr.mxu0 0.0
  %3147 = vmatpush1.xpose.msra.mxu0 0.0
  %3148 = vmatprep.subr.mxu0 0.0
  %3149 = vmatpush1.xpose.msra.mxu0 0.0
  %3150 = vmatprep.subr.mxu0 0.0
  %3151 = vmatpush1.xpose.msra.mxu0 0.0
  %3152 = vmatprep.subr.mxu0 0.0
  %3153 = vmatpush1.xpose.msra.mxu0 0.0
  %3154 = vmatprep.subr.mxu0 0.0
  %3155 = vmatpush1.xpose.msra.mxu0 0.0
  %3156 = vmatprep.subr.mxu0 0.0
  %3157 = vmatpush1.xpose.msra.mxu0 0.0
  %3158 = vmatprep.subr.mxu0 0.0
  %3159 = vmatpush1.xpose.msra.mxu0 0.0
  %3160 = vmatprep.subr.mxu0 0.0
  %3161 = vmatpush1.xpose.msra.mxu0 0.0
  %3162 = vmatprep.subr.mxu0 0.0
  %3163 = vmatpush1.xpose.msra.mxu0 0.0
  %3164 = vmatprep.subr.mxu0 0.0
  %3165 = vmatpush1.xpose.msra.mxu0 0.0
  %3166 = vmatprep.subr.mxu0 0.0
  %3167 = vmatpush1.xpose.msra.mxu0 0.0
  %3168 = vmatprep.subr.mxu0 0.0
  %3169 = vmatpush1.xpose.msra.mxu0 0.0
  %3170 = vmatprep.subr.mxu0 0.0
  %3171 = vmatpush1.xpose.msra.mxu0 0.0
  %3172 = vmatprep.subr.mxu0 0.0
  %3173 = vmatpush1.xpose.msra.mxu0 0.0
  %3174 = vmatprep.subr.mxu0 0.0
  %3175 = vmatpush1.xpose.msra.mxu0 0.0
  %3176 = vmatprep.subr.mxu0 0.0
  %3177 = vmatpush1.xpose.msra.mxu0 0.0
  %3178 = vmatprep.subr.mxu0 0.0
  %3179 = vmatpush1.xpose.msra.mxu0 0.0
  %3180 = vmatprep.subr.mxu0 0.0
  %3181 = vmatpush1.xpose.msra.mxu0 0.0
  %3182 = vmatprep.subr.mxu0 0.0
  %3183 = vmatpush1.xpose.msra.mxu0 0.0
  %3184 = vmatprep.subr.mxu0 0.0
  %3185 = vmatpush1.xpose.msra.mxu0 0.0
  %3186 = vmatprep.subr.mxu0 0.0
  %3187 = vmatpush1.xpose.msra.mxu0 0.0
  %3188 = vmatprep.subr.mxu0 0.0
  %3189 = vmatpush1.xpose.msra.mxu0 0.0
  %3190 = vmatprep.subr.mxu0 0.0
  %3191 = vmatpush1.xpose.msra.mxu0 0.0
  %3192 = vmatprep.subr.mxu0 0.0
  %3193 = vmatpush1.xpose.msra.mxu0 0.0
  %3194 = vmatprep.subr.mxu0 0.0
  %3195 = vmatpush1.xpose.msra.mxu0 0.0
  %3196 = vmatprep.subr.mxu0 0.0
  %3197 = vmatpush1.xpose.msra.mxu0 0.0
  %3198 = vmatprep.subr.mxu0 0.0
  %3199 = vmatpush1.xpose.msra.mxu0 0.0
  %3200 = vmatprep.subr.mxu0 0.0
  %3201 = vmatpush1.xpose.msra.mxu0 0.0
  %3202 = vmatprep.subr.mxu0 0.0
  %3203 = vmatpush1.xpose.msra.mxu0 0.0
  %3204 = vmatprep.subr.mxu0 0.0
  %3205 = vmatpush1.xpose.msra.mxu0 0.0
  %3206 = vmatprep.subr.mxu0 0.0
  %3207 = vmatpush1.xpose.msra.mxu0 0.0
  %3208 = vmatprep.mubr.f32.mxu0 0.0
  %3209 = vmatmul.mubr.f32.gmra.mrb[0].mxu0 %v3140
  %v3210 = vpop.f32.mrb[0].mxu0
  %v3211 = vadd.f32 0.0, %v3210
  %v3212 = vpop.f32.mrb[0].mxu0
  %3213 = vdwg.mxu0
  %3214 = vrot.lane.b32.xlu0 %v2808, 80
  %v3215 = vpop.permute.xlu0 %3214
  %3216 = vrot.lane.b32.xlu0 %v2891, 80
  %v3217 = vpop.permute.xlu0 %3216
  %v3218 = vsel %vm450, %v3215, 0
  %v3220 = vsel %vm450, %v3217, 0
  %3222 = vmatprep.subr.mxu0 0.0
  %3223 = vmatpush1.xpose.msra.mxu0 %v3220
  %3224 = vmatprep.subr.mxu0 0.0
  %3225 = vmatpush1.xpose.msra.mxu0 0.0
  %3226 = vmatprep.subr.mxu0 0.0
  %3227 = vmatpush1.xpose.msra.mxu0 0.0
  %3228 = vmatprep.subr.mxu0 0.0
  %3229 = vmatpush1.xpose.msra.mxu0 0.0
  %3230 = vmatprep.subr.mxu0 0.0
  %3231 = vmatpush1.xpose.msra.mxu0 0.0
  %3232 = vmatprep.subr.mxu0 0.0
  %3233 = vmatpush1.xpose.msra.mxu0 0.0
  %3234 = vmatprep.subr.mxu0 0.0
  %3235 = vmatpush1.xpose.msra.mxu0 0.0
  %3236 = vmatprep.subr.mxu0 0.0
  %3237 = vmatpush1.xpose.msra.mxu0 0.0
  %3238 = vmatprep.subr.mxu0 0.0
  %3239 = vmatpush1.xpose.msra.mxu0 0.0
  %3240 = vmatprep.subr.mxu0 0.0
  %3241 = vmatpush1.xpose.msra.mxu0 0.0
  %3242 = vmatprep.subr.mxu0 0.0
  %3243 = vmatpush1.xpose.msra.mxu0 0.0
  %3244 = vmatprep.subr.mxu0 0.0
  %3245 = vmatpush1.xpose.msra.mxu0 0.0
  %3246 = vmatprep.subr.mxu0 0.0
  %3247 = vmatpush1.xpose.msra.mxu0 0.0
  %3248 = vmatprep.subr.mxu0 0.0
  %3249 = vmatpush1.xpose.msra.mxu0 0.0
  %3250 = vmatprep.subr.mxu0 0.0
  %3251 = vmatpush1.xpose.msra.mxu0 0.0
  %3252 = vmatprep.subr.mxu0 0.0
  %3253 = vmatpush1.xpose.msra.mxu0 0.0
  %3254 = vmatprep.subr.mxu0 0.0
  %3255 = vmatpush1.xpose.msra.mxu0 0.0
  %3256 = vmatprep.subr.mxu0 0.0
  %3257 = vmatpush1.xpose.msra.mxu0 0.0
  %3258 = vmatprep.subr.mxu0 0.0
  %3259 = vmatpush1.xpose.msra.mxu0 0.0
  %3260 = vmatprep.subr.mxu0 0.0
  %3261 = vmatpush1.xpose.msra.mxu0 0.0
  %3262 = vmatprep.subr.mxu0 0.0
  %3263 = vmatpush1.xpose.msra.mxu0 0.0
  %3264 = vmatprep.subr.mxu0 0.0
  %3265 = vmatpush1.xpose.msra.mxu0 0.0
  %3266 = vmatprep.subr.mxu0 0.0
  %3267 = vmatpush1.xpose.msra.mxu0 0.0
  %3268 = vmatprep.subr.mxu0 0.0
  %3269 = vmatpush1.xpose.msra.mxu0 0.0
  %3270 = vmatprep.subr.mxu0 0.0
  %3271 = vmatpush1.xpose.msra.mxu0 0.0
  %3272 = vmatprep.subr.mxu0 0.0
  %3273 = vmatpush1.xpose.msra.mxu0 0.0
  %3274 = vmatprep.subr.mxu0 0.0
  %3275 = vmatpush1.xpose.msra.mxu0 0.0
  %3276 = vmatprep.subr.mxu0 0.0
  %3277 = vmatpush1.xpose.msra.mxu0 0.0
  %3278 = vmatprep.subr.mxu0 0.0
  %3279 = vmatpush1.xpose.msra.mxu0 0.0
  %3280 = vmatprep.subr.mxu0 0.0
  %3281 = vmatpush1.xpose.msra.mxu0 0.0
  %3282 = vmatprep.subr.mxu0 0.0
  %3283 = vmatpush1.xpose.msra.mxu0 0.0
  %3284 = vmatprep.subr.mxu0 0.0
  %3285 = vmatpush1.xpose.msra.mxu0 0.0
  %3286 = vmatprep.mubr.f32.mxu0 0.0
  %3287 = vmatmul.mubr.f32.gmra.mrb[0].mxu0 %v3218
  %v3288 = vpop.f32.mrb[0].mxu0
  %v3289 = vadd.f32 0.0, %v3288
  %v3290 = vpop.f32.mrb[0].mxu0
  %3291 = vdwg.mxu0
  %v3293 = vsel %vm450, %v2813, 0
  %v3296 = vsel %vm450, %v2896, 0
  %3298 = vmatprep.subr.mxu0 0.0
  %3299 = vmatpush1.xpose.msra.mxu0 %v3296
  %3300 = vmatprep.subr.mxu0 0.0
  %3301 = vmatpush1.xpose.msra.mxu0 0.0
  %3302 = vmatprep.subr.mxu0 0.0
  %3303 = vmatpush1.xpose.msra.mxu0 0.0
  %3304 = vmatprep.subr.mxu0 0.0
  %3305 = vmatpush1.xpose.msra.mxu0 0.0
  %3306 = vmatprep.subr.mxu0 0.0
  %3307 = vmatpush1.xpose.msra.mxu0 0.0
  %3308 = vmatprep.subr.mxu0 0.0
  %3309 = vmatpush1.xpose.msra.mxu0 0.0
  %3310 = vmatprep.subr.mxu0 0.0
  %3311 = vmatpush1.xpose.msra.mxu0 0.0
  %3312 = vmatprep.subr.mxu0 0.0
  %3313 = vmatpush1.xpose.msra.mxu0 0.0
  %3314 = vmatprep.subr.mxu0 0.0
  %3315 = vmatpush1.xpose.msra.mxu0 0.0
  %3316 = vmatprep.subr.mxu0 0.0
  %3317 = vmatpush1.xpose.msra.mxu0 0.0
  %3318 = vmatprep.subr.mxu0 0.0
  %3319 = vmatpush1.xpose.msra.mxu0 0.0
  %3320 = vmatprep.subr.mxu0 0.0
  %3321 = vmatpush1.xpose.msra.mxu0 0.0
  %3322 = vmatprep.subr.mxu0 0.0
  %3323 = vmatpush1.xpose.msra.mxu0 0.0
  %3324 = vmatprep.subr.mxu0 0.0
  %3325 = vmatpush1.xpose.msra.mxu0 0.0
  %3326 = vmatprep.subr.mxu0 0.0
  %3327 = vmatpush1.xpose.msra.mxu0 0.0
  %3328 = vmatprep.subr.mxu0 0.0
  %3329 = vmatpush1.xpose.msra.mxu0 0.0
  %3330 = vmatprep.subr.mxu0 0.0
  %3331 = vmatpush1.xpose.msra.mxu0 0.0
  %3332 = vmatprep.subr.mxu0 0.0
  %3333 = vmatpush1.xpose.msra.mxu0 0.0
  %3334 = vmatprep.subr.mxu0 0.0
  %3335 = vmatpush1.xpose.msra.mxu0 0.0
  %3336 = vmatprep.subr.mxu0 0.0
  %3337 = vmatpush1.xpose.msra.mxu0 0.0
  %3338 = vmatprep.subr.mxu0 0.0
  %3339 = vmatpush1.xpose.msra.mxu0 0.0
  %3340 = vmatprep.subr.mxu0 0.0
  %3341 = vmatpush1.xpose.msra.mxu0 0.0
  %3342 = vmatprep.subr.mxu0 0.0
  %3343 = vmatpush1.xpose.msra.mxu0 0.0
  %3344 = vmatprep.subr.mxu0 0.0
  %3345 = vmatpush1.xpose.msra.mxu0 0.0
  %3346 = vmatprep.subr.mxu0 0.0
  %3347 = vmatpush1.xpose.msra.mxu0 0.0
  %3348 = vmatprep.subr.mxu0 0.0
  %3349 = vmatpush1.xpose.msra.mxu0 0.0
  %3350 = vmatprep.subr.mxu0 0.0
  %3351 = vmatpush1.xpose.msra.mxu0 0.0
  %3352 = vmatprep.subr.mxu0 0.0
  %3353 = vmatpush1.xpose.msra.mxu0 0.0
  %3354 = vmatprep.subr.mxu0 0.0
  %3355 = vmatpush1.xpose.msra.mxu0 0.0
  %3356 = vmatprep.subr.mxu0 0.0
  %3357 = vmatpush1.xpose.msra.mxu0 0.0
  %3358 = vmatprep.subr.mxu0 0.0
  %3359 = vmatpush1.xpose.msra.mxu0 0.0
  %3360 = vmatprep.subr.mxu0 0.0
  %3361 = vmatpush1.xpose.msra.mxu0 0.0
  %3362 = vmatprep.mubr.f32.mxu0 0.0
  %3363 = vmatmul.mubr.f32.gmra.mrb[0].mxu0 %v3293
  %v3364 = vpop.f32.mrb[0].mxu0
  %v3365 = vadd.f32 0.0, %v3364
  %v3366 = vpop.f32.mrb[0].mxu0
  %3367 = vdwg.mxu0
  %3368 = vrot.lane.b32.xlu0 %v2813, 112
  %v3369 = vpop.permute.xlu0 %3368
  %3370 = vrot.lane.b32.xlu0 %v2896, 112
  %v3371 = vpop.permute.xlu0 %3370
  %v3372 = vsel %vm450, %v3369, 0
  %v3374 = vsel %vm450, %v3371, 0
  %3376 = vmatprep.subr.mxu0 0.0
  %3377 = vmatpush1.xpose.msra.mxu0 %v3374
  %3378 = vmatprep.subr.mxu0 0.0
  %3379 = vmatpush1.xpose.msra.mxu0 0.0
  %3380 = vmatprep.subr.mxu0 0.0
  %3381 = vmatpush1.xpose.msra.mxu0 0.0
  %3382 = vmatprep.subr.mxu0 0.0
  %3383 = vmatpush1.xpose.msra.mxu0 0.0
  %3384 = vmatprep.subr.mxu0 0.0
  %3385 = vmatpush1.xpose.msra.mxu0 0.0
  %3386 = vmatprep.subr.mxu0 0.0
  %3387 = vmatpush1.xpose.msra.mxu0 0.0
  %3388 = vmatprep.subr.mxu0 0.0
  %3389 = vmatpush1.xpose.msra.mxu0 0.0
  %3390 = vmatprep.subr.mxu0 0.0
  %3391 = vmatpush1.xpose.msra.mxu0 0.0
  %3392 = vmatprep.subr.mxu0 0.0
  %3393 = vmatpush1.xpose.msra.mxu0 0.0
  %3394 = vmatprep.subr.mxu0 0.0
  %3395 = vmatpush1.xpose.msra.mxu0 0.0
  %3396 = vmatprep.subr.mxu0 0.0
  %3397 = vmatpush1.xpose.msra.mxu0 0.0
  %3398 = vmatprep.subr.mxu0 0.0
  %3399 = vmatpush1.xpose.msra.mxu0 0.0
  %3400 = vmatprep.subr.mxu0 0.0
  %3401 = vmatpush1.xpose.msra.mxu0 0.0
  %3402 = vmatprep.subr.mxu0 0.0
  %3403 = vmatpush1.xpose.msra.mxu0 0.0
  %3404 = vmatprep.subr.mxu0 0.0
  %3405 = vmatpush1.xpose.msra.mxu0 0.0
  %3406 = vmatprep.subr.mxu0 0.0
  %3407 = vmatpush1.xpose.msra.mxu0 0.0
  %3408 = vmatprep.subr.mxu0 0.0
  %3409 = vmatpush1.xpose.msra.mxu0 0.0
  %3410 = vmatprep.subr.mxu0 0.0
  %3411 = vmatpush1.xpose.msra.mxu0 0.0
  %3412 = vmatprep.subr.mxu0 0.0
  %3413 = vmatpush1.xpose.msra.mxu0 0.0
  %3414 = vmatprep.subr.mxu0 0.0
  %3415 = vmatpush1.xpose.msra.mxu0 0.0
  %3416 = vmatprep.subr.mxu0 0.0
  %3417 = vmatpush1.xpose.msra.mxu0 0.0
  %3418 = vmatprep.subr.mxu0 0.0
  %3419 = vmatpush1.xpose.msra.mxu0 0.0
  %3420 = vmatprep.subr.mxu0 0.0
  %3421 = vmatpush1.xpose.msra.mxu0 0.0
  %3422 = vmatprep.subr.mxu0 0.0
  %3423 = vmatpush1.xpose.msra.mxu0 0.0
  %3424 = vmatprep.subr.mxu0 0.0
  %3425 = vmatpush1.xpose.msra.mxu0 0.0
  %3426 = vmatprep.subr.mxu0 0.0
  %3427 = vmatpush1.xpose.msra.mxu0 0.0
  %3428 = vmatprep.subr.mxu0 0.0
  %3429 = vmatpush1.xpose.msra.mxu0 0.0
  %3430 = vmatprep.subr.mxu0 0.0
  %3431 = vmatpush1.xpose.msra.mxu0 0.0
  %3432 = vmatprep.subr.mxu0 0.0
  %3433 = vmatpush1.xpose.msra.mxu0 0.0
  %3434 = vmatprep.subr.mxu0 0.0
  %3435 = vmatpush1.xpose.msra.mxu0 0.0
  %3436 = vmatprep.subr.mxu0 0.0
  %3437 = vmatpush1.xpose.msra.mxu0 0.0
  %3438 = vmatprep.subr.mxu0 0.0
  %3439 = vmatpush1.xpose.msra.mxu0 0.0
  %3440 = vmatprep.mubr.f32.mxu0 0.0
  %3441 = vmatmul.mubr.f32.gmra.mrb[0].mxu0 %v3372
  %v3442 = vpop.f32.mrb[0].mxu0
  %v3443 = vadd.f32 0.0, %v3442
  %v3444 = vpop.f32.mrb[0].mxu0
  %3445 = vdwg.mxu0
  %3446 = vrot.lane.b32.xlu0 %v2813, 96
  %v3447 = vpop.permute.xlu0 %3446
  %3448 = vrot.lane.b32.xlu0 %v2896, 96
  %v3449 = vpop.permute.xlu0 %3448
  %v3450 = vsel %vm450, %v3447, 0
  %v3452 = vsel %vm450, %v3449, 0
  %3454 = vmatprep.subr.mxu0 0.0
  %3455 = vmatpush1.xpose.msra.mxu0 %v3452
  %3456 = vmatprep.subr.mxu0 0.0
  %3457 = vmatpush1.xpose.msra.mxu0 0.0
  %3458 = vmatprep.subr.mxu0 0.0
  %3459 = vmatpush1.xpose.msra.mxu0 0.0
  %3460 = vmatprep.subr.mxu0 0.0
  %3461 = vmatpush1.xpose.msra.mxu0 0.0
  %3462 = vmatprep.subr.mxu0 0.0
  %3463 = vmatpush1.xpose.msra.mxu0 0.0
  %3464 = vmatprep.subr.mxu0 0.0
  %3465 = vmatpush1.xpose.msra.mxu0 0.0
  %3466 = vmatprep.subr.mxu0 0.0
  %3467 = vmatpush1.xpose.msra.mxu0 0.0
  %3468 = vmatprep.subr.mxu0 0.0
  %3469 = vmatpush1.xpose.msra.mxu0 0.0
  %3470 = vmatprep.subr.mxu0 0.0
  %3471 = vmatpush1.xpose.msra.mxu0 0.0
  %3472 = vmatprep.subr.mxu0 0.0
  %3473 = vmatpush1.xpose.msra.mxu0 0.0
  %3474 = vmatprep.subr.mxu0 0.0
  %3475 = vmatpush1.xpose.msra.mxu0 0.0
  %3476 = vmatprep.subr.mxu0 0.0
  %3477 = vmatpush1.xpose.msra.mxu0 0.0
  %3478 = vmatprep.subr.mxu0 0.0
  %3479 = vmatpush1.xpose.msra.mxu0 0.0
  %3480 = vmatprep.subr.mxu0 0.0
  %3481 = vmatpush1.xpose.msra.mxu0 0.0
  %3482 = vmatprep.subr.mxu0 0.0
  %3483 = vmatpush1.xpose.msra.mxu0 0.0
  %3484 = vmatprep.subr.mxu0 0.0
  %3485 = vmatpush1.xpose.msra.mxu0 0.0
  %3486 = vmatprep.subr.mxu0 0.0
  %3487 = vmatpush1.xpose.msra.mxu0 0.0
  %3488 = vmatprep.subr.mxu0 0.0
  %3489 = vmatpush1.xpose.msra.mxu0 0.0
  %3490 = vmatprep.subr.mxu0 0.0
  %3491 = vmatpush1.xpose.msra.mxu0 0.0
  %3492 = vmatprep.subr.mxu0 0.0
  %3493 = vmatpush1.xpose.msra.mxu0 0.0
  %3494 = vmatprep.subr.mxu0 0.0
  %3495 = vmatpush1.xpose.msra.mxu0 0.0
  %3496 = vmatprep.subr.mxu0 0.0
  %3497 = vmatpush1.xpose.msra.mxu0 0.0
  %3498 = vmatprep.subr.mxu0 0.0
  %3499 = vmatpush1.xpose.msra.mxu0 0.0
  %3500 = vmatprep.subr.mxu0 0.0
  %3501 = vmatpush1.xpose.msra.mxu0 0.0
  %3502 = vmatprep.subr.mxu0 0.0
  %3503 = vmatpush1.xpose.msra.mxu0 0.0
  %3504 = vmatprep.subr.mxu0 0.0
  %3505 = vmatpush1.xpose.msra.mxu0 0.0
  %3506 = vmatprep.subr.mxu0 0.0
  %3507 = vmatpush1.xpose.msra.mxu0 0.0
  %3508 = vmatprep.subr.mxu0 0.0
  %3509 = vmatpush1.xpose.msra.mxu0 0.0
  %3510 = vmatprep.subr.mxu0 0.0
  %3511 = vmatpush1.xpose.msra.mxu0 0.0
  %3512 = vmatprep.subr.mxu0 0.0
  %3513 = vmatpush1.xpose.msra.mxu0 0.0
  %3514 = vmatprep.subr.mxu0 0.0
  %3515 = vmatpush1.xpose.msra.mxu0 0.0
  %3516 = vmatprep.subr.mxu0 0.0
  %3517 = vmatpush1.xpose.msra.mxu0 0.0
  %3518 = vmatprep.mubr.f32.mxu0 0.0
  %3519 = vmatmul.mubr.f32.gmra.mrb[0].mxu0 %v3450
  %v3520 = vpop.f32.mrb[0].mxu0
  %v3521 = vadd.f32 0.0, %v3520
  %v3522 = vpop.f32.mrb[0].mxu0
  %3523 = vdwg.mxu0
  %3524 = vrot.lane.b32.xlu0 %v2813, 80
  %v3525 = vpop.permute.xlu0 %3524
  %3526 = vrot.lane.b32.xlu0 %v2896, 80
  %v3527 = vpop.permute.xlu0 %3526
  %v3528 = vsel %vm450, %v3525, 0
  %v3530 = vsel %vm450, %v3527, 0
  %3532 = vmatprep.subr.mxu0 0.0
  %3533 = vmatpush1.xpose.msra.mxu0 %v3530
  %3534 = vmatprep.subr.mxu0 0.0
  %3535 = vmatpush1.xpose.msra.mxu0 0.0
  %3536 = vmatprep.subr.mxu0 0.0
  %3537 = vmatpush1.xpose.msra.mxu0 0.0
  %3538 = vmatprep.subr.mxu0 0.0
  %3539 = vmatpush1.xpose.msra.mxu0 0.0
  %3540 = vmatprep.subr.mxu0 0.0
  %3541 = vmatpush1.xpose.msra.mxu0 0.0
  %3542 = vmatprep.subr.mxu0 0.0
  %3543 = vmatpush1.xpose.msra.mxu0 0.0
  %3544 = vmatprep.subr.mxu0 0.0
  %3545 = vmatpush1.xpose.msra.mxu0 0.0
  %3546 = vmatprep.subr.mxu0 0.0
  %3547 = vmatpush1.xpose.msra.mxu0 0.0
  %3548 = vmatprep.subr.mxu0 0.0
  %3549 = vmatpush1.xpose.msra.mxu0 0.0
  %3550 = vmatprep.subr.mxu0 0.0
  %3551 = vmatpush1.xpose.msra.mxu0 0.0
  %3552 = vmatprep.subr.mxu0 0.0
  %3553 = vmatpush1.xpose.msra.mxu0 0.0
  %3554 = vmatprep.subr.mxu0 0.0
  %3555 = vmatpush1.xpose.msra.mxu0 0.0
  %3556 = vmatprep.subr.mxu0 0.0
  %3557 = vmatpush1.xpose.msra.mxu0 0.0
  %3558 = vmatprep.subr.mxu0 0.0
  %3559 = vmatpush1.xpose.msra.mxu0 0.0
  %3560 = vmatprep.subr.mxu0 0.0
  %3561 = vmatpush1.xpose.msra.mxu0 0.0
  %3562 = vmatprep.subr.mxu0 0.0
  %3563 = vmatpush1.xpose.msra.mxu0 0.0
  %3564 = vmatprep.subr.mxu0 0.0
  %3565 = vmatpush1.xpose.msra.mxu0 0.0
  %3566 = vmatprep.subr.mxu0 0.0
  %3567 = vmatpush1.xpose.msra.mxu0 0.0
  %3568 = vmatprep.subr.mxu0 0.0
  %3569 = vmatpush1.xpose.msra.mxu0 0.0
  %3570 = vmatprep.subr.mxu0 0.0
  %3571 = vmatpush1.xpose.msra.mxu0 0.0
  %3572 = vmatprep.subr.mxu0 0.0
  %3573 = vmatpush1.xpose.msra.mxu0 0.0
  %3574 = vmatprep.subr.mxu0 0.0
  %3575 = vmatpush1.xpose.msra.mxu0 0.0
  %3576 = vmatprep.subr.mxu0 0.0
  %3577 = vmatpush1.xpose.msra.mxu0 0.0
  %3578 = vmatprep.subr.mxu0 0.0
  %3579 = vmatpush1.xpose.msra.mxu0 0.0
  %3580 = vmatprep.subr.mxu0 0.0
  %3581 = vmatpush1.xpose.msra.mxu0 0.0
  %3582 = vmatprep.subr.mxu0 0.0
  %3583 = vmatpush1.xpose.msra.mxu0 0.0
  %3584 = vmatprep.subr.mxu0 0.0
  %3585 = vmatpush1.xpose.msra.mxu0 0.0
  %3586 = vmatprep.subr.mxu0 0.0
  %3587 = vmatpush1.xpose.msra.mxu0 0.0
  %3588 = vmatprep.subr.mxu0 0.0
  %3589 = vmatpush1.xpose.msra.mxu0 0.0
  %3590 = vmatprep.subr.mxu0 0.0
  %3591 = vmatpush1.xpose.msra.mxu0 0.0
  %3592 = vmatprep.subr.mxu0 0.0
  %3593 = vmatpush1.xpose.msra.mxu0 0.0
  %3594 = vmatprep.subr.mxu0 0.0
  %3595 = vmatpush1.xpose.msra.mxu0 0.0
  %3596 = vmatprep.mubr.f32.mxu0 0.0
  %3597 = vmatmul.mubr.f32.gmra.mrb[0].mxu0 %v3528
  %v3598 = vpop.f32.mrb[0].mxu0
  %v3599 = vadd.f32 0.0, %v3598
  %v3600 = vpop.f32.mrb[0].mxu0
  %3601 = vdwg.mxu0
  %v3602 = vmul.f32 %v3055, 0.25
  %v3603 = vmul.f32 %v3133, 0.25
  %v3604 = vmul.f32 %v3211, 0.25
  %v3605 = vmul.f32 %v3289, 0.25
  %v3606 = vmul.f32 %v3365, 0.25
  %v3607 = vmul.f32 %v3443, 0.25
  %v3608 = vmul.f32 %v3521, 0.25
  %v3609 = vmul.f32 %v3599, 0.25
  %v3610 = vsel %vm1079, %v3602, -inf
  %3611 = vmax.xlane.f32.xlu0 %v3610
  %v3612 = vpop.xlane.xlu0 %3611
  %v3613 = vsel %vm1079, %v3603, -inf
  %3614 = vmax.xlane.f32.xlu0 %v3613
  %v3615 = vpop.xlane.xlu0 %3614
  %v3616 = vsel %vm1079, %v3604, -inf
  %3617 = vmax.xlane.f32.xlu0 %v3616
  %v3618 = vpop.xlane.xlu0 %3617
  %v3619 = vsel %vm1079, %v3605, -inf
  %3620 = vmax.xlane.f32.xlu0 %v3619
  %v3621 = vpop.xlane.xlu0 %3620
  %v3622 = vsel %vm1079, %v3606, -inf
  %3623 = vmax.xlane.f32.xlu0 %v3622
  %v3624 = vpop.xlane.xlu0 %3623
  %v3625 = vsel %vm1079, %v3607, -inf
  %3626 = vmax.xlane.f32.xlu0 %v3625
  %v3627 = vpop.xlane.xlu0 %3626
  %v3628 = vsel %vm1079, %v3608, -inf
  %3629 = vmax.xlane.f32.xlu0 %v3628
  %v3630 = vpop.xlane.xlu0 %3629
  %v3631 = vsel %vm1079, %v3609, -inf
  %3632 = vmax.xlane.f32.xlu0 %v3631
  %v3633 = vpop.xlane.xlu0 %3632
  %v3634 = vsub.f32 %v3602, %v3612
  %v3635 = vsub.f32 %v3603, %v3615
  %v3636 = vsub.f32 %v3604, %v3618
  %v3637 = vsub.f32 %v3605, %v3621
  %v3638 = vsub.f32 %v3606, %v3624
  %v3639 = vsub.f32 %v3607, %v3627
  %v3640 = vsub.f32 %v3608, %v3630
  %v3641 = vsub.f32 %v3609, %v3633
  %v3642 = vmul.f32 %v3634, 1.442695
  %v3643 = vpow.pop %v3642
  %v3644 = vmul.f32 %v3635, 1.442695
  %v3645 = vpow.pop %v3644
  %v3646 = vmul.f32 %v3636, 1.442695
  %v3647 = vpow.pop %v3646
  %v3648 = vmul.f32 %v3637, 1.442695
  %v3649 = vpow.pop %v3648
  %v3650 = vmul.f32 %v3638, 1.442695
  %v3651 = vpow.pop %v3650
  %v3652 = vmul.f32 %v3639, 1.442695
  %v3653 = vpow.pop %v3652
  %v3654 = vmul.f32 %v3640, 1.442695
  %v3655 = vpow.pop %v3654
  %v3656 = vmul.f32 %v3641, 1.442695
  %v3657 = vpow.pop %v3656
  %v3658 = vsel %vm1079, %v3643, 0.0
  %3659 = vadd.xlane.f32.xlu0 %v3658
  %v3660 = vpop.xlane.xlu0 %3659
  %v3661 = vsel %vm1079, %v3645, 0.0
  %3662 = vadd.xlane.f32.xlu0 %v3661
  %v3663 = vpop.xlane.xlu0 %3662
  %v3664 = vsel %vm1079, %v3647, 0.0
  %3665 = vadd.xlane.f32.xlu0 %v3664
  %v3666 = vpop.xlane.xlu0 %3665
  %v3667 = vsel %vm1079, %v3649, 0.0
  %3668 = vadd.xlane.f32.xlu0 %v3667
  %v3669 = vpop.xlane.xlu0 %3668
  %v3670 = vsel %vm1079, %v3651, 0.0
  %3671 = vadd.xlane.f32.xlu0 %v3670
  %v3672 = vpop.xlane.xlu0 %3671
  %v3673 = vsel %vm1079, %v3653, 0.0
  %3674 = vadd.xlane.f32.xlu0 %v3673
  %v3675 = vpop.xlane.xlu0 %3674
  %v3676 = vsel %vm1079, %v3655, 0.0
  %3677 = vadd.xlane.f32.xlu0 %v3676
  %v3678 = vpop.xlane.xlu0 %3677
  %v3679 = vsel %vm1079, %v3657, 0.0
  %3680 = vadd.xlane.f32.xlu0 %v3679
  %v3681 = vpop.xlane.xlu0 %3680
  %v3682 = vrcp.pop %v3660
  %v3683 = vrcp.pop %v3663
  %v3684 = vrcp.pop %v3666
  %v3685 = vrcp.pop %v3669
  %v3686 = vrcp.pop %v3672
  %v3687 = vrcp.pop %v3675
  %v3688 = vrcp.pop %v3678
  %v3689 = vrcp.pop %v3681
  %v3690 = vmul.f32 %v3643, %v3682
  %v3691 = vmul.f32 %v3645, %v3683
  %v3692 = vmul.f32 %v3647, %v3684
  %v3693 = vmul.f32 %v3649, %v3685
  %v3694 = vmul.f32 %v3651, %v3686
  %v3695 = vmul.f32 %v3653, %v3687
  %v3696 = vmul.f32 %v3655, %v3688
  %v3697 = vmul.f32 %v3657, %v3689
  %v3699 = vsel %vm1079, %v3690, 0
  %3701 = vmatprep.subr.mxu0 0.0
  %3702 = vmatpush1.msra.mxu0 %v2974
  %3703 = vmatprep.subr.mxu0 0.0
  %3704 = vmatpush1.msra.mxu0 0.0
  %3705 = vmatprep.subr.mxu0 0.0
  %3706 = vmatpush1.msra.mxu0 0.0
  %3707 = vmatprep.subr.mxu0 0.0
  %3708 = vmatpush1.msra.mxu0 0.0
  %3709 = vmatprep.subr.mxu0 0.0
  %3710 = vmatpush1.msra.mxu0 0.0
  %3711 = vmatprep.subr.mxu0 0.0
  %3712 = vmatpush1.msra.mxu0 0.0
  %3713 = vmatprep.subr.mxu0 0.0
  %3714 = vmatpush1.msra.mxu0 0.0
  %3715 = vmatprep.subr.mxu0 0.0
  %3716 = vmatpush1.msra.mxu0 0.0
  %3717 = vmatprep.subr.mxu0 0.0
  %3718 = vmatpush1.msra.mxu0 0.0
  %3719 = vmatprep.subr.mxu0 0.0
  %3720 = vmatpush1.msra.mxu0 0.0
  %3721 = vmatprep.subr.mxu0 0.0
  %3722 = vmatpush1.msra.mxu0 0.0
  %3723 = vmatprep.subr.mxu0 0.0
  %3724 = vmatpush1.msra.mxu0 0.0
  %3725 = vmatprep.subr.mxu0 0.0
  %3726 = vmatpush1.msra.mxu0 0.0
  %3727 = vmatprep.subr.mxu0 0.0
  %3728 = vmatpush1.msra.mxu0 0.0
  %3729 = vmatprep.subr.mxu0 0.0
  %3730 = vmatpush1.msra.mxu0 0.0
  %3731 = vmatprep.subr.mxu0 0.0
  %3732 = vmatpush1.msra.mxu0 0.0
  %3733 = vmatprep.subr.mxu0 0.0
  %3734 = vmatpush1.msra.mxu0 0.0
  %3735 = vmatprep.subr.mxu0 0.0
  %3736 = vmatpush1.msra.mxu0 0.0
  %3737 = vmatprep.subr.mxu0 0.0
  %3738 = vmatpush1.msra.mxu0 0.0
  %3739 = vmatprep.subr.mxu0 0.0
  %3740 = vmatpush1.msra.mxu0 0.0
  %3741 = vmatprep.subr.mxu0 0.0
  %3742 = vmatpush1.msra.mxu0 0.0
  %3743 = vmatprep.subr.mxu0 0.0
  %3744 = vmatpush1.msra.mxu0 0.0
  %3745 = vmatprep.subr.mxu0 0.0
  %3746 = vmatpush1.msra.mxu0 0.0
  %3747 = vmatprep.subr.mxu0 0.0
  %3748 = vmatpush1.msra.mxu0 0.0
  %3749 = vmatprep.subr.mxu0 0.0
  %3750 = vmatpush1.msra.mxu0 0.0
  %3751 = vmatprep.subr.mxu0 0.0
  %3752 = vmatpush1.msra.mxu0 0.0
  %3753 = vmatprep.subr.mxu0 0.0
  %3754 = vmatpush1.msra.mxu0 0.0
  %3755 = vmatprep.subr.mxu0 0.0
  %3756 = vmatpush1.msra.mxu0 0.0
  %3757 = vmatprep.subr.mxu0 0.0
  %3758 = vmatpush1.msra.mxu0 0.0
  %3759 = vmatprep.subr.mxu0 0.0
  %3760 = vmatpush1.msra.mxu0 0.0
  %3761 = vmatprep.subr.mxu0 0.0
  %3762 = vmatpush1.msra.mxu0 0.0
  %3763 = vmatprep.subr.mxu0 0.0
  %3764 = vmatpush1.msra.mxu0 0.0
  %3765 = vmatprep.mubr.f32.mxu0 0.0
  %3766 = vmatmul.mubr.f32.gmra.mrb[0].mxu0 %v3699
  %v3767 = vpop.f32.mrb[0].mxu0
  %v3768 = vadd.f32 0.0, %v3767
  %v3769 = vpop.f32.mrb[0].mxu0
  %3770 = vdwg.mxu0
  %3772 = vrot.lane.b32.xlu0 %v2974, 112
  %v3773 = vpop.permute.xlu0 %3772
  %v3776 = vsel %vm1079, %v3691, 0
  %3778 = vmatprep.subr.mxu0 0.0
  %3779 = vmatpush1.msra.mxu0 %v3773
  %3780 = vmatprep.subr.mxu0 0.0
  %3781 = vmatpush1.msra.mxu0 0.0
  %3782 = vmatprep.subr.mxu0 0.0
  %3783 = vmatpush1.msra.mxu0 0.0
  %3784 = vmatprep.subr.mxu0 0.0
  %3785 = vmatpush1.msra.mxu0 0.0
  %3786 = vmatprep.subr.mxu0 0.0
  %3787 = vmatpush1.msra.mxu0 0.0
  %3788 = vmatprep.subr.mxu0 0.0
  %3789 = vmatpush1.msra.mxu0 0.0
  %3790 = vmatprep.subr.mxu0 0.0
  %3791 = vmatpush1.msra.mxu0 0.0
  %3792 = vmatprep.subr.mxu0 0.0
  %3793 = vmatpush1.msra.mxu0 0.0
  %3794 = vmatprep.subr.mxu0 0.0
  %3795 = vmatpush1.msra.mxu0 0.0
  %3796 = vmatprep.subr.mxu0 0.0
  %3797 = vmatpush1.msra.mxu0 0.0
  %3798 = vmatprep.subr.mxu0 0.0
  %3799 = vmatpush1.msra.mxu0 0.0
  %3800 = vmatprep.subr.mxu0 0.0
  %3801 = vmatpush1.msra.mxu0 0.0
  %3802 = vmatprep.subr.mxu0 0.0
  %3803 = vmatpush1.msra.mxu0 0.0
  %3804 = vmatprep.subr.mxu0 0.0
  %3805 = vmatpush1.msra.mxu0 0.0
  %3806 = vmatprep.subr.mxu0 0.0
  %3807 = vmatpush1.msra.mxu0 0.0
  %3808 = vmatprep.subr.mxu0 0.0
  %3809 = vmatpush1.msra.mxu0 0.0
  %3810 = vmatprep.subr.mxu0 0.0
  %3811 = vmatpush1.msra.mxu0 0.0
  %3812 = vmatprep.subr.mxu0 0.0
  %3813 = vmatpush1.msra.mxu0 0.0
  %3814 = vmatprep.subr.mxu0 0.0
  %3815 = vmatpush1.msra.mxu0 0.0
  %3816 = vmatprep.subr.mxu0 0.0
  %3817 = vmatpush1.msra.mxu0 0.0
  %3818 = vmatprep.subr.mxu0 0.0
  %3819 = vmatpush1.msra.mxu0 0.0
  %3820 = vmatprep.subr.mxu0 0.0
  %3821 = vmatpush1.msra.mxu0 0.0
  %3822 = vmatprep.subr.mxu0 0.0
  %3823 = vmatpush1.msra.mxu0 0.0
  %3824 = vmatprep.subr.mxu0 0.0
  %3825 = vmatpush1.msra.mxu0 0.0
  %3826 = vmatprep.subr.mxu0 0.0
  %3827 = vmatpush1.msra.mxu0 0.0
  %3828 = vmatprep.subr.mxu0 0.0
  %3829 = vmatpush1.msra.mxu0 0.0
  %3830 = vmatprep.subr.mxu0 0.0
  %3831 = vmatpush1.msra.mxu0 0.0
  %3832 = vmatprep.subr.mxu0 0.0
  %3833 = vmatpush1.msra.mxu0 0.0
  %3834 = vmatprep.subr.mxu0 0.0
  %3835 = vmatpush1.msra.mxu0 0.0
  %3836 = vmatprep.subr.mxu0 0.0
  %3837 = vmatpush1.msra.mxu0 0.0
  %3838 = vmatprep.subr.mxu0 0.0
  %3839 = vmatpush1.msra.mxu0 0.0
  %3840 = vmatprep.subr.mxu0 0.0
  %3841 = vmatpush1.msra.mxu0 0.0
  %3842 = vmatprep.mubr.f32.mxu0 0.0
  %3843 = vmatmul.mubr.f32.gmra.mrb[0].mxu0 %v3776
  %v3844 = vpop.f32.mrb[0].mxu0
  %v3845 = vadd.f32 0.0, %v3844
  %v3846 = vpop.f32.mrb[0].mxu0
  %3847 = vdwg.mxu0
  %v3849 = vsel %vm450, %v3845, 0
  %3851 = vmatprep.subr.mxu0 0.0
  %3852 = vmatpush1.msra.mxu0 %v2721
  %3853 = vmatprep.subr.mxu0 0.0
  %3854 = vmatpush1.msra.mxu0 %v2722
  %3855 = vmatprep.subr.mxu0 0.0
  %3856 = vmatpush1.msra.mxu0 0.0
  %3857 = vmatprep.subr.mxu0 0.0
  %3858 = vmatpush1.msra.mxu0 0.0
  %3859 = vmatprep.subr.mxu0 0.0
  %3860 = vmatpush1.msra.mxu0 0.0
  %3861 = vmatprep.subr.mxu0 0.0
  %3862 = vmatpush1.msra.mxu0 0.0
  %3863 = vmatprep.subr.mxu0 0.0
  %3864 = vmatpush1.msra.mxu0 0.0
  %3865 = vmatprep.subr.mxu0 0.0
  %3866 = vmatpush1.msra.mxu0 0.0
  %3867 = vmatprep.subr.mxu0 0.0
  %3868 = vmatpush1.msra.mxu0 0.0
  %3869 = vmatprep.subr.mxu0 0.0
  %3870 = vmatpush1.msra.mxu0 0.0
  %3871 = vmatprep.subr.mxu0 0.0
  %3872 = vmatpush1.msra.mxu0 0.0
  %3873 = vmatprep.subr.mxu0 0.0
  %3874 = vmatpush1.msra.mxu0 0.0
  %3875 = vmatprep.subr.mxu0 0.0
  %3876 = vmatpush1.msra.mxu0 0.0
  %3877 = vmatprep.subr.mxu0 0.0
  %3878 = vmatpush1.msra.mxu0 0.0
  %3879 = vmatprep.subr.mxu0 0.0
  %3880 = vmatpush1.msra.mxu0 0.0
  %3881 = vmatprep.subr.mxu0 0.0
  %3882 = vmatpush1.msra.mxu0 0.0
  %3883 = vmatprep.subr.mxu0 0.0
  %3884 = vmatpush1.msra.mxu0 0.0
  %3885 = vmatprep.subr.mxu0 0.0
  %3886 = vmatpush1.msra.mxu0 0.0
  %3887 = vmatprep.subr.mxu0 0.0
  %3888 = vmatpush1.msra.mxu0 0.0
  %3889 = vmatprep.subr.mxu0 0.0
  %3890 = vmatpush1.msra.mxu0 0.0
  %3891 = vmatprep.subr.mxu0 0.0
  %3892 = vmatpush1.msra.mxu0 0.0
  %3893 = vmatprep.subr.mxu0 0.0
  %3894 = vmatpush1.msra.mxu0 0.0
  %3895 = vmatprep.subr.mxu0 0.0
  %3896 = vmatpush1.msra.mxu0 0.0
  %3897 = vmatprep.subr.mxu0 0.0
  %3898 = vmatpush1.msra.mxu0 0.0
  %3899 = vmatprep.subr.mxu0 0.0
  %3900 = vmatpush1.msra.mxu0 0.0
  %3901 = vmatprep.subr.mxu0 0.0
  %3902 = vmatpush1.msra.mxu0 0.0
  %3903 = vmatprep.subr.mxu0 0.0
  %3904 = vmatpush1.msra.mxu0 0.0
  %3905 = vmatprep.subr.mxu0 0.0
  %3906 = vmatpush1.msra.mxu0 0.0
  %3907 = vmatprep.subr.mxu0 0.0
  %3908 = vmatpush1.msra.mxu0 0.0
  %3909 = vmatprep.subr.mxu0 0.0
  %3910 = vmatpush1.msra.mxu0 0.0
  %3911 = vmatprep.subr.mxu0 0.0
  %3912 = vmatpush1.msra.mxu0 0.0
  %3913 = vmatprep.subr.mxu0 0.0
  %3914 = vmatpush1.msra.mxu0 0.0
  %3915 = vmatprep.mubr.f32.mxu0 0.0
  %3916 = vmatmul.mubr.f32.gmra.mrb[0].mxu0 %v3849
  %v3917 = vpop.f32.mrb[0].mxu0
  %v3918 = vadd.f32 0.0, %v3917
  %v3919 = vpop.f32.mrb[0].mxu0
  %3920 = vdwg.mxu0
  %v3922 = vsel %vm450, %v3768, 0
  %3924 = vmatprep.subr.mxu0 0.0
  %3925 = vmatpush1.msra.mxu0 %v2719
  %3926 = vmatprep.subr.mxu0 0.0
  %3927 = vmatpush1.msra.mxu0 %v2720
  %3928 = vmatprep.subr.mxu0 0.0
  %3929 = vmatpush1.msra.mxu0 0.0
  %3930 = vmatprep.subr.mxu0 0.0
  %3931 = vmatpush1.msra.mxu0 0.0
  %3932 = vmatprep.subr.mxu0 0.0
  %3933 = vmatpush1.msra.mxu0 0.0
  %3934 = vmatprep.subr.mxu0 0.0
  %3935 = vmatpush1.msra.mxu0 0.0
  %3936 = vmatprep.subr.mxu0 0.0
  %3937 = vmatpush1.msra.mxu0 0.0
  %3938 = vmatprep.subr.mxu0 0.0
  %3939 = vmatpush1.msra.mxu0 0.0
  %3940 = vmatprep.subr.mxu0 0.0
  %3941 = vmatpush1.msra.mxu0 0.0
  %3942 = vmatprep.subr.mxu0 0.0
  %3943 = vmatpush1.msra.mxu0 0.0
  %3944 = vmatprep.subr.mxu0 0.0
  %3945 = vmatpush1.msra.mxu0 0.0
  %3946 = vmatprep.subr.mxu0 0.0
  %3947 = vmatpush1.msra.mxu0 0.0
  %3948 = vmatprep.subr.mxu0 0.0
  %3949 = vmatpush1.msra.mxu0 0.0
  %3950 = vmatprep.subr.mxu0 0.0
  %3951 = vmatpush1.msra.mxu0 0.0
  %3952 = vmatprep.subr.mxu0 0.0
  %3953 = vmatpush1.msra.mxu0 0.0
  %3954 = vmatprep.subr.mxu0 0.0
  %3955 = vmatpush1.msra.mxu0 0.0
  %3956 = vmatprep.subr.mxu0 0.0
  %3957 = vmatpush1.msra.mxu0 0.0
  %3958 = vmatprep.subr.mxu0 0.0
  %3959 = vmatpush1.msra.mxu0 0.0
  %3960 = vmatprep.subr.mxu0 0.0
  %3961 = vmatpush1.msra.mxu0 0.0
  %3962 = vmatprep.subr.mxu0 0.0
  %3963 = vmatpush1.msra.mxu0 0.0
  %3964 = vmatprep.subr.mxu0 0.0
  %3965 = vmatpush1.msra.mxu0 0.0
  %3966 = vmatprep.subr.mxu0 0.0
  %3967 = vmatpush1.msra.mxu0 0.0
  %3968 = vmatprep.subr.mxu0 0.0
  %3969 = vmatpush1.msra.mxu0 0.0
  %3970 = vmatprep.subr.mxu0 0.0
  %3971 = vmatpush1.msra.mxu0 0.0
  %3972 = vmatprep.subr.mxu0 0.0
  %3973 = vmatpush1.msra.mxu0 0.0
  %3974 = vmatprep.subr.mxu0 0.0
  %3975 = vmatpush1.msra.mxu0 0.0
  %3976 = vmatprep.subr.mxu0 0.0
  %3977 = vmatpush1.msra.mxu0 0.0
  %3978 = vmatprep.subr.mxu0 0.0
  %3979 = vmatpush1.msra.mxu0 0.0
  %3980 = vmatprep.subr.mxu0 0.0
  %3981 = vmatpush1.msra.mxu0 0.0
  %3982 = vmatprep.subr.mxu0 0.0
  %3983 = vmatpush1.msra.mxu0 0.0
  %3984 = vmatprep.subr.mxu0 0.0
  %3985 = vmatpush1.msra.mxu0 0.0
  %3986 = vmatprep.subr.mxu0 0.0
  %3987 = vmatpush1.msra.mxu0 0.0
  %3988 = vmatprep.mubr.f32.mxu0 0.0
  %3989 = vmatmul.mubr.f32.gmra.mrb[0].mxu0 %v3922
  %v3990 = vpop.f32.mrb[0].mxu0
  %v3991 = vadd.f32 %v3918, %v3990
  %v3992 = vpop.f32.mrb[0].mxu0
  %3993 = vdwg.mxu0
  %3994 = vrot.lane.b32.xlu0 %v2974, 96
  %v3995 = vpop.permute.xlu0 %3994
  %v3998 = vsel %vm1079, %v3692, 0
  %4000 = vmatprep.subr.mxu0 0.0
  %4001 = vmatpush1.msra.mxu0 %v3995
  %4002 = vmatprep.subr.mxu0 0.0
  %4003 = vmatpush1.msra.mxu0 0.0
  %4004 = vmatprep.subr.mxu0 0.0
  %4005 = vmatpush1.msra.mxu0 0.0
  %4006 = vmatprep.subr.mxu0 0.0
  %4007 = vmatpush1.msra.mxu0 0.0
  %4008 = vmatprep.subr.mxu0 0.0
  %4009 = vmatpush1.msra.mxu0 0.0
  %4010 = vmatprep.subr.mxu0 0.0
  %4011 = vmatpush1.msra.mxu0 0.0
  %4012 = vmatprep.subr.mxu0 0.0
  %4013 = vmatpush1.msra.mxu0 0.0
  %4014 = vmatprep.subr.mxu0 0.0
  %4015 = vmatpush1.msra.mxu0 0.0
  %4016 = vmatprep.subr.mxu0 0.0
  %4017 = vmatpush1.msra.mxu0 0.0
  %4018 = vmatprep.subr.mxu0 0.0
  %4019 = vmatpush1.msra.mxu0 0.0
  %4020 = vmatprep.subr.mxu0 0.0
  %4021 = vmatpush1.msra.mxu0 0.0
  %4022 = vmatprep.subr.mxu0 0.0
  %4023 = vmatpush1.msra.mxu0 0.0
  %4024 = vmatprep.subr.mxu0 0.0
  %4025 = vmatpush1.msra.mxu0 0.0
  %4026 = vmatprep.subr.mxu0 0.0
  %4027 = vmatpush1.msra.mxu0 0.0
  %4028 = vmatprep.subr.mxu0 0.0
  %4029 = vmatpush1.msra.mxu0 0.0
  %4030 = vmatprep.subr.mxu0 0.0
  %4031 = vmatpush1.msra.mxu0 0.0
  %4032 = vmatprep.subr.mxu0 0.0
  %4033 = vmatpush1.msra.mxu0 0.0
  %4034 = vmatprep.subr.mxu0 0.0
  %4035 = vmatpush1.msra.mxu0 0.0
  %4036 = vmatprep.subr.mxu0 0.0
  %4037 = vmatpush1.msra.mxu0 0.0
  %4038 = vmatprep.subr.mxu0 0.0
  %4039 = vmatpush1.msra.mxu0 0.0
  %4040 = vmatprep.subr.mxu0 0.0
  %4041 = vmatpush1.msra.mxu0 0.0
  %4042 = vmatprep.subr.mxu0 0.0
  %4043 = vmatpush1.msra.mxu0 0.0
  %4044 = vmatprep.subr.mxu0 0.0
  %4045 = vmatpush1.msra.mxu0 0.0
  %4046 = vmatprep.subr.mxu0 0.0
  %4047 = vmatpush1.msra.mxu0 0.0
  %4048 = vmatprep.subr.mxu0 0.0
  %4049 = vmatpush1.msra.mxu0 0.0
  %4050 = vmatprep.subr.mxu0 0.0
  %4051 = vmatpush1.msra.mxu0 0.0
  %4052 = vmatprep.subr.mxu0 0.0
  %4053 = vmatpush1.msra.mxu0 0.0
  %4054 = vmatprep.subr.mxu0 0.0
  %4055 = vmatpush1.msra.mxu0 0.0
  %4056 = vmatprep.subr.mxu0 0.0
  %4057 = vmatpush1.msra.mxu0 0.0
  %4058 = vmatprep.subr.mxu0 0.0
  %4059 = vmatpush1.msra.mxu0 0.0
  %4060 = vmatprep.subr.mxu0 0.0
  %4061 = vmatpush1.msra.mxu0 0.0
  %4062 = vmatprep.subr.mxu0 0.0
  %4063 = vmatpush1.msra.mxu0 0.0
  %4064 = vmatprep.mubr.f32.mxu0 0.0
  %4065 = vmatmul.mubr.f32.gmra.mrb[0].mxu0 %v3998
  %v4066 = vpop.f32.mrb[0].mxu0
  %v4067 = vadd.f32 0.0, %v4066
  %v4068 = vpop.f32.mrb[0].mxu0
  %4069 = vdwg.mxu0
  %v4071 = vsel %vm450, %v4067, 0
  %4073 = vmatprep.subr.mxu0 0.0
  %4074 = vmatpush1.msra.mxu0 %v2723
  %4075 = vmatprep.subr.mxu0 0.0
  %4076 = vmatpush1.msra.mxu0 %v2724
  %4077 = vmatprep.subr.mxu0 0.0
  %4078 = vmatpush1.msra.mxu0 0.0
  %4079 = vmatprep.subr.mxu0 0.0
  %4080 = vmatpush1.msra.mxu0 0.0
  %4081 = vmatprep.subr.mxu0 0.0
  %4082 = vmatpush1.msra.mxu0 0.0
  %4083 = vmatprep.subr.mxu0 0.0
  %4084 = vmatpush1.msra.mxu0 0.0
  %4085 = vmatprep.subr.mxu0 0.0
  %4086 = vmatpush1.msra.mxu0 0.0
  %4087 = vmatprep.subr.mxu0 0.0
  %4088 = vmatpush1.msra.mxu0 0.0
  %4089 = vmatprep.subr.mxu0 0.0
  %4090 = vmatpush1.msra.mxu0 0.0
  %4091 = vmatprep.subr.mxu0 0.0
  %4092 = vmatpush1.msra.mxu0 0.0
  %4093 = vmatprep.subr.mxu0 0.0
  %4094 = vmatpush1.msra.mxu0 0.0
  %4095 = vmatprep.subr.mxu0 0.0
  %4096 = vmatpush1.msra.mxu0 0.0
  %4097 = vmatprep.subr.mxu0 0.0
  %4098 = vmatpush1.msra.mxu0 0.0
  %4099 = vmatprep.subr.mxu0 0.0
  %4100 = vmatpush1.msra.mxu0 0.0
  %4101 = vmatprep.subr.mxu0 0.0
  %4102 = vmatpush1.msra.mxu0 0.0
  %4103 = vmatprep.subr.mxu0 0.0
  %4104 = vmatpush1.msra.mxu0 0.0
  %4105 = vmatprep.subr.mxu0 0.0
  %4106 = vmatpush1.msra.mxu0 0.0
  %4107 = vmatprep.subr.mxu0 0.0
  %4108 = vmatpush1.msra.mxu0 0.0
  %4109 = vmatprep.subr.mxu0 0.0
  %4110 = vmatpush1.msra.mxu0 0.0
  %4111 = vmatprep.subr.mxu0 0.0
  %4112 = vmatpush1.msra.mxu0 0.0
  %4113 = vmatprep.subr.mxu0 0.0
  %4114 = vmatpush1.msra.mxu0 0.0
  %4115 = vmatprep.subr.mxu0 0.0
  %4116 = vmatpush1.msra.mxu0 0.0
  %4117 = vmatprep.subr.mxu0 0.0
  %4118 = vmatpush1.msra.mxu0 0.0
  %4119 = vmatprep.subr.mxu0 0.0
  %4120 = vmatpush1.msra.mxu0 0.0
  %4121 = vmatprep.subr.mxu0 0.0
  %4122 = vmatpush1.msra.mxu0 0.0
  %4123 = vmatprep.subr.mxu0 0.0
  %4124 = vmatpush1.msra.mxu0 0.0
  %4125 = vmatprep.subr.mxu0 0.0
  %4126 = vmatpush1.msra.mxu0 0.0
  %4127 = vmatprep.subr.mxu0 0.0
  %4128 = vmatpush1.msra.mxu0 0.0
  %4129 = vmatprep.subr.mxu0 0.0
  %4130 = vmatpush1.msra.mxu0 0.0
  %4131 = vmatprep.subr.mxu0 0.0
  %4132 = vmatpush1.msra.mxu0 0.0
  %4133 = vmatprep.subr.mxu0 0.0
  %4134 = vmatpush1.msra.mxu0 0.0
  %4135 = vmatprep.subr.mxu0 0.0
  %4136 = vmatpush1.msra.mxu0 0.0
  %4137 = vmatprep.mubr.f32.mxu0 0.0
  %4138 = vmatmul.mubr.f32.gmra.mrb[0].mxu0 %v4071
  %v4139 = vpop.f32.mrb[0].mxu0
  %v4140 = vadd.f32 0.0, %v4139
  %v4141 = vpop.f32.mrb[0].mxu0
  %4142 = vdwg.mxu0
  %v4143 = vadd.f32 %v3991, %v4140
  %4144 = vrot.lane.b32.xlu0 %v2974, 80
  %v4145 = vpop.permute.xlu0 %4144
  %v4148 = vsel %vm1079, %v3693, 0
  %4150 = vmatprep.subr.mxu0 0.0
  %4151 = vmatpush1.msra.mxu0 %v4145
  %4152 = vmatprep.subr.mxu0 0.0
  %4153 = vmatpush1.msra.mxu0 0.0
  %4154 = vmatprep.subr.mxu0 0.0
  %4155 = vmatpush1.msra.mxu0 0.0
  %4156 = vmatprep.subr.mxu0 0.0
  %4157 = vmatpush1.msra.mxu0 0.0
  %4158 = vmatprep.subr.mxu0 0.0
  %4159 = vmatpush1.msra.mxu0 0.0
  %4160 = vmatprep.subr.mxu0 0.0
  %4161 = vmatpush1.msra.mxu0 0.0
  %4162 = vmatprep.subr.mxu0 0.0
  %4163 = vmatpush1.msra.mxu0 0.0
  %4164 = vmatprep.subr.mxu0 0.0
  %4165 = vmatpush1.msra.mxu0 0.0
  %4166 = vmatprep.subr.mxu0 0.0
  %4167 = vmatpush1.msra.mxu0 0.0
  %4168 = vmatprep.subr.mxu0 0.0
  %4169 = vmatpush1.msra.mxu0 0.0
  %4170 = vmatprep.subr.mxu0 0.0
  %4171 = vmatpush1.msra.mxu0 0.0
  %4172 = vmatprep.subr.mxu0 0.0
  %4173 = vmatpush1.msra.mxu0 0.0
  %4174 = vmatprep.subr.mxu0 0.0
  %4175 = vmatpush1.msra.mxu0 0.0
  %4176 = vmatprep.subr.mxu0 0.0
  %4177 = vmatpush1.msra.mxu0 0.0
  %4178 = vmatprep.subr.mxu0 0.0
  %4179 = vmatpush1.msra.mxu0 0.0
  %4180 = vmatprep.subr.mxu0 0.0
  %4181 = vmatpush1.msra.mxu0 0.0
  %4182 = vmatprep.subr.mxu0 0.0
  %4183 = vmatpush1.msra.mxu0 0.0
  %4184 = vmatprep.subr.mxu0 0.0
  %4185 = vmatpush1.msra.mxu0 0.0
  %4186 = vmatprep.subr.mxu0 0.0
  %4187 = vmatpush1.msra.mxu0 0.0
  %4188 = vmatprep.subr.mxu0 0.0
  %4189 = vmatpush1.msra.mxu0 0.0
  %4190 = vmatprep.subr.mxu0 0.0
  %4191 = vmatpush1.msra.mxu0 0.0
  %4192 = vmatprep.subr.mxu0 0.0
  %4193 = vmatpush1.msra.mxu0 0.0
  %4194 = vmatprep.subr.mxu0 0.0
  %4195 = vmatpush1.msra.mxu0 0.0
  %4196 = vmatprep.subr.mxu0 0.0
  %4197 = vmatpush1.msra.mxu0 0.0
  %4198 = vmatprep.subr.mxu0 0.0
  %4199 = vmatpush1.msra.mxu0 0.0
  %4200 = vmatprep.subr.mxu0 0.0
  %4201 = vmatpush1.msra.mxu0 0.0
  %4202 = vmatprep.subr.mxu0 0.0
  %4203 = vmatpush1.msra.mxu0 0.0
  %4204 = vmatprep.subr.mxu0 0.0
  %4205 = vmatpush1.msra.mxu0 0.0
  %4206 = vmatprep.subr.mxu0 0.0
  %4207 = vmatpush1.msra.mxu0 0.0
  %4208 = vmatprep.subr.mxu0 0.0
  %4209 = vmatpush1.msra.mxu0 0.0
  %4210 = vmatprep.subr.mxu0 0.0
  %4211 = vmatpush1.msra.mxu0 0.0
  %4212 = vmatprep.subr.mxu0 0.0
  %4213 = vmatpush1.msra.mxu0 0.0
  %4214 = vmatprep.mubr.f32.mxu0 0.0
  %4215 = vmatmul.mubr.f32.gmra.mrb[0].mxu0 %v4148
  %v4216 = vpop.f32.mrb[0].mxu0
  %v4217 = vadd.f32 0.0, %v4216
  %v4218 = vpop.f32.mrb[0].mxu0
  %4219 = vdwg.mxu0
  %v4221 = vsel %vm450, %v4217, 0
  %4223 = vmatprep.subr.mxu0 0.0
  %4224 = vmatpush1.msra.mxu0 %v2725
  %4225 = vmatprep.subr.mxu0 0.0
  %4226 = vmatpush1.msra.mxu0 %v2726
  %4227 = vmatprep.subr.mxu0 0.0
  %4228 = vmatpush1.msra.mxu0 0.0
  %4229 = vmatprep.subr.mxu0 0.0
  %4230 = vmatpush1.msra.mxu0 0.0
  %4231 = vmatprep.subr.mxu0 0.0
  %4232 = vmatpush1.msra.mxu0 0.0
  %4233 = vmatprep.subr.mxu0 0.0
  %4234 = vmatpush1.msra.mxu0 0.0
  %4235 = vmatprep.subr.mxu0 0.0
  %4236 = vmatpush1.msra.mxu0 0.0
  %4237 = vmatprep.subr.mxu0 0.0
  %4238 = vmatpush1.msra.mxu0 0.0
  %4239 = vmatprep.subr.mxu0 0.0
  %4240 = vmatpush1.msra.mxu0 0.0
  %4241 = vmatprep.subr.mxu0 0.0
  %4242 = vmatpush1.msra.mxu0 0.0
  %4243 = vmatprep.subr.mxu0 0.0
  %4244 = vmatpush1.msra.mxu0 0.0
  %4245 = vmatprep.subr.mxu0 0.0
  %4246 = vmatpush1.msra.mxu0 0.0
  %4247 = vmatprep.subr.mxu0 0.0
  %4248 = vmatpush1.msra.mxu0 0.0
  %4249 = vmatprep.subr.mxu0 0.0
  %4250 = vmatpush1.msra.mxu0 0.0
  %4251 = vmatprep.subr.mxu0 0.0
  %4252 = vmatpush1.msra.mxu0 0.0
  %4253 = vmatprep.subr.mxu0 0.0
  %4254 = vmatpush1.msra.mxu0 0.0
  %4255 = vmatprep.subr.mxu0 0.0
  %4256 = vmatpush1.msra.mxu0 0.0
  %4257 = vmatprep.subr.mxu0 0.0
  %4258 = vmatpush1.msra.mxu0 0.0
  %4259 = vmatprep.subr.mxu0 0.0
  %4260 = vmatpush1.msra.mxu0 0.0
  %4261 = vmatprep.subr.mxu0 0.0
  %4262 = vmatpush1.msra.mxu0 0.0
  %4263 = vmatprep.subr.mxu0 0.0
  %4264 = vmatpush1.msra.mxu0 0.0
  %4265 = vmatprep.subr.mxu0 0.0
  %4266 = vmatpush1.msra.mxu0 0.0
  %4267 = vmatprep.subr.mxu0 0.0
  %4268 = vmatpush1.msra.mxu0 0.0
  %4269 = vmatprep.subr.mxu0 0.0
  %4270 = vmatpush1.msra.mxu0 0.0
  %4271 = vmatprep.subr.mxu0 0.0
  %4272 = vmatpush1.msra.mxu0 0.0
  %4273 = vmatprep.subr.mxu0 0.0
  %4274 = vmatpush1.msra.mxu0 0.0
  %4275 = vmatprep.subr.mxu0 0.0
  %4276 = vmatpush1.msra.mxu0 0.0
  %4277 = vmatprep.subr.mxu0 0.0
  %4278 = vmatpush1.msra.mxu0 0.0
  %4279 = vmatprep.subr.mxu0 0.0
  %4280 = vmatpush1.msra.mxu0 0.0
  %4281 = vmatprep.subr.mxu0 0.0
  %4282 = vmatpush1.msra.mxu0 0.0
  %4283 = vmatprep.subr.mxu0 0.0
  %4284 = vmatpush1.msra.mxu0 0.0
  %4285 = vmatprep.subr.mxu0 0.0
  %4286 = vmatpush1.msra.mxu0 0.0
  %4287 = vmatprep.mubr.f32.mxu0 0.0
  %4288 = vmatmul.mubr.f32.gmra.mrb[0].mxu0 %v4221
  %v4289 = vpop.f32.mrb[0].mxu0
  %v4290 = vadd.f32 0.0, %v4289
  %v4291 = vpop.f32.mrb[0].mxu0
  %4292 = vdwg.mxu0
  %v4293 = vadd.f32 %v4143, %v4290
  %v4295 = vsel %vm1079, %v3694, 0
  %4297 = vmatprep.subr.mxu0 0.0
  %4298 = vmatpush1.msra.mxu0 %v2979
  %4299 = vmatprep.subr.mxu0 0.0
  %4300 = vmatpush1.msra.mxu0 0.0
  %4301 = vmatprep.subr.mxu0 0.0
  %4302 = vmatpush1.msra.mxu0 0.0
  %4303 = vmatprep.subr.mxu0 0.0
  %4304 = vmatpush1.msra.mxu0 0.0
  %4305 = vmatprep.subr.mxu0 0.0
  %4306 = vmatpush1.msra.mxu0 0.0
  %4307 = vmatprep.subr.mxu0 0.0
  %4308 = vmatpush1.msra.mxu0 0.0
  %4309 = vmatprep.subr.mxu0 0.0
  %4310 = vmatpush1.msra.mxu0 0.0
  %4311 = vmatprep.subr.mxu0 0.0
  %4312 = vmatpush1.msra.mxu0 0.0
  %4313 = vmatprep.subr.mxu0 0.0
  %4314 = vmatpush1.msra.mxu0 0.0
  %4315 = vmatprep.subr.mxu0 0.0
  %4316 = vmatpush1.msra.mxu0 0.0
  %4317 = vmatprep.subr.mxu0 0.0
  %4318 = vmatpush1.msra.mxu0 0.0
  %4319 = vmatprep.subr.mxu0 0.0
  %4320 = vmatpush1.msra.mxu0 0.0
  %4321 = vmatprep.subr.mxu0 0.0
  %4322 = vmatpush1.msra.mxu0 0.0
  %4323 = vmatprep.subr.mxu0 0.0
  %4324 = vmatpush1.msra.mxu0 0.0
  %4325 = vmatprep.subr.mxu0 0.0
  %4326 = vmatpush1.msra.mxu0 0.0
  %4327 = vmatprep.subr.mxu0 0.0
  %4328 = vmatpush1.msra.mxu0 0.0
  %4329 = vmatprep.subr.mxu0 0.0
  %4330 = vmatpush1.msra.mxu0 0.0
  %4331 = vmatprep.subr.mxu0 0.0
  %4332 = vmatpush1.msra.mxu0 0.0
  %4333 = vmatprep.subr.mxu0 0.0
  %4334 = vmatpush1.msra.mxu0 0.0
  %4335 = vmatprep.subr.mxu0 0.0
  %4336 = vmatpush1.msra.mxu0 0.0
  %4337 = vmatprep.subr.mxu0 0.0
  %4338 = vmatpush1.msra.mxu0 0.0
  %4339 = vmatprep.subr.mxu0 0.0
  %4340 = vmatpush1.msra.mxu0 0.0
  %4341 = vmatprep.subr.mxu0 0.0
  %4342 = vmatpush1.msra.mxu0 0.0
  %4343 = vmatprep.subr.mxu0 0.0
  %4344 = vmatpush1.msra.mxu0 0.0
  %4345 = vmatprep.subr.mxu0 0.0
  %4346 = vmatpush1.msra.mxu0 0.0
  %4347 = vmatprep.subr.mxu0 0.0
  %4348 = vmatpush1.msra.mxu0 0.0
  %4349 = vmatprep.subr.mxu0 0.0
  %4350 = vmatpush1.msra.mxu0 0.0
  %4351 = vmatprep.subr.mxu0 0.0
  %4352 = vmatpush1.msra.mxu0 0.0
  %4353 = vmatprep.subr.mxu0 0.0
  %4354 = vmatpush1.msra.mxu0 0.0
  %4355 = vmatprep.subr.mxu0 0.0
  %4356 = vmatpush1.msra.mxu0 0.0
  %4357 = vmatprep.subr.mxu0 0.0
  %4358 = vmatpush1.msra.mxu0 0.0
  %4359 = vmatprep.subr.mxu0 0.0
  %4360 = vmatpush1.msra.mxu0 0.0
  %4361 = vmatprep.mubr.f32.mxu0 0.0
  %4362 = vmatmul.mubr.f32.gmra.mrb[0].mxu0 %v4295
  %v4363 = vpop.f32.mrb[0].mxu0
  %v4364 = vadd.f32 0.0, %v4363
  %v4365 = vpop.f32.mrb[0].mxu0
  %4366 = vdwg.mxu0
  %4368 = vrot.lane.b32.xlu0 %v2979, 112
  %v4369 = vpop.permute.xlu0 %4368
  %v4372 = vsel %vm1079, %v3695, 0
  %4374 = vmatprep.subr.mxu0 0.0
  %4375 = vmatpush1.msra.mxu0 %v4369
  %4376 = vmatprep.subr.mxu0 0.0
  %4377 = vmatpush1.msra.mxu0 0.0
  %4378 = vmatprep.subr.mxu0 0.0
  %4379 = vmatpush1.msra.mxu0 0.0
  %4380 = vmatprep.subr.mxu0 0.0
  %4381 = vmatpush1.msra.mxu0 0.0
  %4382 = vmatprep.subr.mxu0 0.0
  %4383 = vmatpush1.msra.mxu0 0.0
  %4384 = vmatprep.subr.mxu0 0.0
  %4385 = vmatpush1.msra.mxu0 0.0
  %4386 = vmatprep.subr.mxu0 0.0
  %4387 = vmatpush1.msra.mxu0 0.0
  %4388 = vmatprep.subr.mxu0 0.0
  %4389 = vmatpush1.msra.mxu0 0.0
  %4390 = vmatprep.subr.mxu0 0.0
  %4391 = vmatpush1.msra.mxu0 0.0
  %4392 = vmatprep.subr.mxu0 0.0
  %4393 = vmatpush1.msra.mxu0 0.0
  %4394 = vmatprep.subr.mxu0 0.0
  %4395 = vmatpush1.msra.mxu0 0.0
  %4396 = vmatprep.subr.mxu0 0.0
  %4397 = vmatpush1.msra.mxu0 0.0
  %4398 = vmatprep.subr.mxu0 0.0
  %4399 = vmatpush1.msra.mxu0 0.0
  %4400 = vmatprep.subr.mxu0 0.0
  %4401 = vmatpush1.msra.mxu0 0.0
  %4402 = vmatprep.subr.mxu0 0.0
  %4403 = vmatpush1.msra.mxu0 0.0
  %4404 = vmatprep.subr.mxu0 0.0
  %4405 = vmatpush1.msra.mxu0 0.0
  %4406 = vmatprep.subr.mxu0 0.0
  %4407 = vmatpush1.msra.mxu0 0.0
  %4408 = vmatprep.subr.mxu0 0.0
  %4409 = vmatpush1.msra.mxu0 0.0
  %4410 = vmatprep.subr.mxu0 0.0
  %4411 = vmatpush1.msra.mxu0 0.0
  %4412 = vmatprep.subr.mxu0 0.0
  %4413 = vmatpush1.msra.mxu0 0.0
  %4414 = vmatprep.subr.mxu0 0.0
  %4415 = vmatpush1.msra.mxu0 0.0
  %4416 = vmatprep.subr.mxu0 0.0
  %4417 = vmatpush1.msra.mxu0 0.0
  %4418 = vmatprep.subr.mxu0 0.0
  %4419 = vmatpush1.msra.mxu0 0.0
  %4420 = vmatprep.subr.mxu0 0.0
  %4421 = vmatpush1.msra.mxu0 0.0
  %4422 = vmatprep.subr.mxu0 0.0
  %4423 = vmatpush1.msra.mxu0 0.0
  %4424 = vmatprep.subr.mxu0 0.0
  %4425 = vmatpush1.msra.mxu0 0.0
  %4426 = vmatprep.subr.mxu0 0.0
  %4427 = vmatpush1.msra.mxu0 0.0
  %4428 = vmatprep.subr.mxu0 0.0
  %4429 = vmatpush1.msra.mxu0 0.0
  %4430 = vmatprep.subr.mxu0 0.0
  %4431 = vmatpush1.msra.mxu0 0.0
  %4432 = vmatprep.subr.mxu0 0.0
  %4433 = vmatpush1.msra.mxu0 0.0
  %4434 = vmatprep.subr.mxu0 0.0
  %4435 = vmatpush1.msra.mxu0 0.0
  %4436 = vmatprep.subr.mxu0 0.0
  %4437 = vmatpush1.msra.mxu0 0.0
  %4438 = vmatprep.mubr.f32.mxu0 0.0
  %4439 = vmatmul.mubr.f32.gmra.mrb[0].mxu0 %v4372
  %v4440 = vpop.f32.mrb[0].mxu0
  %v4441 = vadd.f32 0.0, %v4440
  %v4442 = vpop.f32.mrb[0].mxu0
  %4443 = vdwg.mxu0
  %v4445 = vsel %vm450, %v4441, 0
  %4447 = vmatprep.subr.mxu0 0.0
  %4448 = vmatpush1.msra.mxu0 %v2721
  %4449 = vmatprep.subr.mxu0 0.0
  %4450 = vmatpush1.msra.mxu0 %v2722
  %4451 = vmatprep.subr.mxu0 0.0
  %4452 = vmatpush1.msra.mxu0 0.0
  %4453 = vmatprep.subr.mxu0 0.0
  %4454 = vmatpush1.msra.mxu0 0.0
  %4455 = vmatprep.subr.mxu0 0.0
  %4456 = vmatpush1.msra.mxu0 0.0
  %4457 = vmatprep.subr.mxu0 0.0
  %4458 = vmatpush1.msra.mxu0 0.0
  %4459 = vmatprep.subr.mxu0 0.0
  %4460 = vmatpush1.msra.mxu0 0.0
  %4461 = vmatprep.subr.mxu0 0.0
  %4462 = vmatpush1.msra.mxu0 0.0
  %4463 = vmatprep.subr.mxu0 0.0
  %4464 = vmatpush1.msra.mxu0 0.0
  %4465 = vmatprep.subr.mxu0 0.0
  %4466 = vmatpush1.msra.mxu0 0.0
  %4467 = vmatprep.subr.mxu0 0.0
  %4468 = vmatpush1.msra.mxu0 0.0
  %4469 = vmatprep.subr.mxu0 0.0
  %4470 = vmatpush1.msra.mxu0 0.0
  %4471 = vmatprep.subr.mxu0 0.0
  %4472 = vmatpush1.msra.mxu0 0.0
  %4473 = vmatprep.subr.mxu0 0.0
  %4474 = vmatpush1.msra.mxu0 0.0
  %4475 = vmatprep.subr.mxu0 0.0
  %4476 = vmatpush1.msra.mxu0 0.0
  %4477 = vmatprep.subr.mxu0 0.0
  %4478 = vmatpush1.msra.mxu0 0.0
  %4479 = vmatprep.subr.mxu0 0.0
  %4480 = vmatpush1.msra.mxu0 0.0
  %4481 = vmatprep.subr.mxu0 0.0
  %4482 = vmatpush1.msra.mxu0 0.0
  %4483 = vmatprep.subr.mxu0 0.0
  %4484 = vmatpush1.msra.mxu0 0.0
  %4485 = vmatprep.subr.mxu0 0.0
  %4486 = vmatpush1.msra.mxu0 0.0
  %4487 = vmatprep.subr.mxu0 0.0
  %4488 = vmatpush1.msra.mxu0 0.0
  %4489 = vmatprep.subr.mxu0 0.0
  %4490 = vmatpush1.msra.mxu0 0.0
  %4491 = vmatprep.subr.mxu0 0.0
  %4492 = vmatpush1.msra.mxu0 0.0
  %4493 = vmatprep.subr.mxu0 0.0
  %4494 = vmatpush1.msra.mxu0 0.0
  %4495 = vmatprep.subr.mxu0 0.0
  %4496 = vmatpush1.msra.mxu0 0.0
  %4497 = vmatprep.subr.mxu0 0.0
  %4498 = vmatpush1.msra.mxu0 0.0
  %4499 = vmatprep.subr.mxu0 0.0
  %4500 = vmatpush1.msra.mxu0 0.0
  %4501 = vmatprep.subr.mxu0 0.0
  %4502 = vmatpush1.msra.mxu0 0.0
  %4503 = vmatprep.subr.mxu0 0.0
  %4504 = vmatpush1.msra.mxu0 0.0
  %4505 = vmatprep.subr.mxu0 0.0
  %4506 = vmatpush1.msra.mxu0 0.0
  %4507 = vmatprep.subr.mxu0 0.0
  %4508 = vmatpush1.msra.mxu0 0.0
  %4509 = vmatprep.subr.mxu0 0.0
  %4510 = vmatpush1.msra.mxu0 0.0
  %4511 = vmatprep.mubr.f32.mxu0 0.0
  %4512 = vmatmul.mubr.f32.gmra.mrb[0].mxu0 %v4445
  %v4513 = vpop.f32.mrb[0].mxu0
  %v4514 = vadd.f32 0.0, %v4513
  %v4515 = vpop.f32.mrb[0].mxu0
  %4516 = vdwg.mxu0
  %v4518 = vsel %vm450, %v4364, 0
  %4520 = vmatprep.subr.mxu0 0.0
  %4521 = vmatpush1.msra.mxu0 %v2719
  %4522 = vmatprep.subr.mxu0 0.0
  %4523 = vmatpush1.msra.mxu0 %v2720
  %4524 = vmatprep.subr.mxu0 0.0
  %4525 = vmatpush1.msra.mxu0 0.0
  %4526 = vmatprep.subr.mxu0 0.0
  %4527 = vmatpush1.msra.mxu0 0.0
  %4528 = vmatprep.subr.mxu0 0.0
  %4529 = vmatpush1.msra.mxu0 0.0
  %4530 = vmatprep.subr.mxu0 0.0
  %4531 = vmatpush1.msra.mxu0 0.0
  %4532 = vmatprep.subr.mxu0 0.0
  %4533 = vmatpush1.msra.mxu0 0.0
  %4534 = vmatprep.subr.mxu0 0.0
  %4535 = vmatpush1.msra.mxu0 0.0
  %4536 = vmatprep.subr.mxu0 0.0
  %4537 = vmatpush1.msra.mxu0 0.0
  %4538 = vmatprep.subr.mxu0 0.0
  %4539 = vmatpush1.msra.mxu0 0.0
  %4540 = vmatprep.subr.mxu0 0.0
  %4541 = vmatpush1.msra.mxu0 0.0
  %4542 = vmatprep.subr.mxu0 0.0
  %4543 = vmatpush1.msra.mxu0 0.0
  %4544 = vmatprep.subr.mxu0 0.0
  %4545 = vmatpush1.msra.mxu0 0.0
  %4546 = vmatprep.subr.mxu0 0.0
  %4547 = vmatpush1.msra.mxu0 0.0
  %4548 = vmatprep.subr.mxu0 0.0
  %4549 = vmatpush1.msra.mxu0 0.0
  %4550 = vmatprep.subr.mxu0 0.0
  %4551 = vmatpush1.msra.mxu0 0.0
  %4552 = vmatprep.subr.mxu0 0.0
  %4553 = vmatpush1.msra.mxu0 0.0
  %4554 = vmatprep.subr.mxu0 0.0
  %4555 = vmatpush1.msra.mxu0 0.0
  %4556 = vmatprep.subr.mxu0 0.0
  %4557 = vmatpush1.msra.mxu0 0.0
  %4558 = vmatprep.subr.mxu0 0.0
  %4559 = vmatpush1.msra.mxu0 0.0
  %4560 = vmatprep.subr.mxu0 0.0
  %4561 = vmatpush1.msra.mxu0 0.0
  %4562 = vmatprep.subr.mxu0 0.0
  %4563 = vmatpush1.msra.mxu0 0.0
  %4564 = vmatprep.subr.mxu0 0.0
  %4565 = vmatpush1.msra.mxu0 0.0
  %4566 = vmatprep.subr.mxu0 0.0
  %4567 = vmatpush1.msra.mxu0 0.0
  %4568 = vmatprep.subr.mxu0 0.0
  %4569 = vmatpush1.msra.mxu0 0.0
  %4570 = vmatprep.subr.mxu0 0.0
  %4571 = vmatpush1.msra.mxu0 0.0
  %4572 = vmatprep.subr.mxu0 0.0
  %4573 = vmatpush1.msra.mxu0 0.0
  %4574 = vmatprep.subr.mxu0 0.0
  %4575 = vmatpush1.msra.mxu0 0.0
  %4576 = vmatprep.subr.mxu0 0.0
  %4577 = vmatpush1.msra.mxu0 0.0
  %4578 = vmatprep.subr.mxu0 0.0
  %4579 = vmatpush1.msra.mxu0 0.0
  %4580 = vmatprep.subr.mxu0 0.0
  %4581 = vmatpush1.msra.mxu0 0.0
  %4582 = vmatprep.subr.mxu0 0.0
  %4583 = vmatpush1.msra.mxu0 0.0
  %4584 = vmatprep.mubr.f32.mxu0 0.0
  %4585 = vmatmul.mubr.f32.gmra.mrb[0].mxu0 %v4518
  %v4586 = vpop.f32.mrb[0].mxu0
  %v4587 = vadd.f32 %v4514, %v4586
  %v4588 = vpop.f32.mrb[0].mxu0
  %4589 = vdwg.mxu0
  %4590 = vrot.lane.b32.xlu0 %v2979, 96
  %v4591 = vpop.permute.xlu0 %4590
  %v4594 = vsel %vm1079, %v3696, 0
  %4596 = vmatprep.subr.mxu0 0.0
  %4597 = vmatpush1.msra.mxu0 %v4591
  %4598 = vmatprep.subr.mxu0 0.0
  %4599 = vmatpush1.msra.mxu0 0.0
  %4600 = vmatprep.subr.mxu0 0.0
  %4601 = vmatpush1.msra.mxu0 0.0
  %4602 = vmatprep.subr.mxu0 0.0
  %4603 = vmatpush1.msra.mxu0 0.0
  %4604 = vmatprep.subr.mxu0 0.0
  %4605 = vmatpush1.msra.mxu0 0.0
  %4606 = vmatprep.subr.mxu0 0.0
  %4607 = vmatpush1.msra.mxu0 0.0
  %4608 = vmatprep.subr.mxu0 0.0
  %4609 = vmatpush1.msra.mxu0 0.0
  %4610 = vmatprep.subr.mxu0 0.0
  %4611 = vmatpush1.msra.mxu0 0.0
  %4612 = vmatprep.subr.mxu0 0.0
  %4613 = vmatpush1.msra.mxu0 0.0
  %4614 = vmatprep.subr.mxu0 0.0
  %4615 = vmatpush1.msra.mxu0 0.0
  %4616 = vmatprep.subr.mxu0 0.0
  %4617 = vmatpush1.msra.mxu0 0.0
  %4618 = vmatprep.subr.mxu0 0.0
  %4619 = vmatpush1.msra.mxu0 0.0
  %4620 = vmatprep.subr.mxu0 0.0
  %4621 = vmatpush1.msra.mxu0 0.0
  %4622 = vmatprep.subr.mxu0 0.0
  %4623 = vmatpush1.msra.mxu0 0.0
  %4624 = vmatprep.subr.mxu0 0.0
  %4625 = vmatpush1.msra.mxu0 0.0
  %4626 = vmatprep.subr.mxu0 0.0
  %4627 = vmatpush1.msra.mxu0 0.0
  %4628 = vmatprep.subr.mxu0 0.0
  %4629 = vmatpush1.msra.mxu0 0.0
  %4630 = vmatprep.subr.mxu0 0.0
  %4631 = vmatpush1.msra.mxu0 0.0
  %4632 = vmatprep.subr.mxu0 0.0
  %4633 = vmatpush1.msra.mxu0 0.0
  %4634 = vmatprep.subr.mxu0 0.0
  %4635 = vmatpush1.msra.mxu0 0.0
  %4636 = vmatprep.subr.mxu0 0.0
  %4637 = vmatpush1.msra.mxu0 0.0
  %4638 = vmatprep.subr.mxu0 0.0
  %4639 = vmatpush1.msra.mxu0 0.0
  %4640 = vmatprep.subr.mxu0 0.0
  %4641 = vmatpush1.msra.mxu0 0.0
  %4642 = vmatprep.subr.mxu0 0.0
  %4643 = vmatpush1.msra.mxu0 0.0
  %4644 = vmatprep.subr.mxu0 0.0
  %4645 = vmatpush1.msra.mxu0 0.0
  %4646 = vmatprep.subr.mxu0 0.0
  %4647 = vmatpush1.msra.mxu0 0.0
  %4648 = vmatprep.subr.mxu0 0.0
  %4649 = vmatpush1.msra.mxu0 0.0
  %4650 = vmatprep.subr.mxu0 0.0
  %4651 = vmatpush1.msra.mxu0 0.0
  %4652 = vmatprep.subr.mxu0 0.0
  %4653 = vmatpush1.msra.mxu0 0.0
  %4654 = vmatprep.subr.mxu0 0.0
  %4655 = vmatpush1.msra.mxu0 0.0
  %4656 = vmatprep.subr.mxu0 0.0
  %4657 = vmatpush1.msra.mxu0 0.0
  %4658 = vmatprep.subr.mxu0 0.0
  %4659 = vmatpush1.msra.mxu0 0.0
  %4660 = vmatprep.mubr.f32.mxu0 0.0
  %4661 = vmatmul.mubr.f32.gmra.mrb[0].mxu0 %v4594
  %v4662 = vpop.f32.mrb[0].mxu0
  %v4663 = vadd.f32 0.0, %v4662
  %v4664 = vpop.f32.mrb[0].mxu0
  %4665 = vdwg.mxu0
  %v4667 = vsel %vm450, %v4663, 0
  %4669 = vmatprep.subr.mxu0 0.0
  %4670 = vmatpush1.msra.mxu0 %v2723
  %4671 = vmatprep.subr.mxu0 0.0
  %4672 = vmatpush1.msra.mxu0 %v2724
  %4673 = vmatprep.subr.mxu0 0.0
  %4674 = vmatpush1.msra.mxu0 0.0
  %4675 = vmatprep.subr.mxu0 0.0
  %4676 = vmatpush1.msra.mxu0 0.0
  %4677 = vmatprep.subr.mxu0 0.0
  %4678 = vmatpush1.msra.mxu0 0.0
  %4679 = vmatprep.subr.mxu0 0.0
  %4680 = vmatpush1.msra.mxu0 0.0
  %4681 = vmatprep.subr.mxu0 0.0
  %4682 = vmatpush1.msra.mxu0 0.0
  %4683 = vmatprep.subr.mxu0 0.0
  %4684 = vmatpush1.msra.mxu0 0.0
  %4685 = vmatprep.subr.mxu0 0.0
  %4686 = vmatpush1.msra.mxu0 0.0
  %4687 = vmatprep.subr.mxu0 0.0
  %4688 = vmatpush1.msra.mxu0 0.0
  %4689 = vmatprep.subr.mxu0 0.0
  %4690 = vmatpush1.msra.mxu0 0.0
  %4691 = vmatprep.subr.mxu0 0.0
  %4692 = vmatpush1.msra.mxu0 0.0
  %4693 = vmatprep.subr.mxu0 0.0
  %4694 = vmatpush1.msra.mxu0 0.0
  %4695 = vmatprep.subr.mxu0 0.0
  %4696 = vmatpush1.msra.mxu0 0.0
  %4697 = vmatprep.subr.mxu0 0.0
  %4698 = vmatpush1.msra.mxu0 0.0
  %4699 = vmatprep.subr.mxu0 0.0
  %4700 = vmatpush1.msra.mxu0 0.0
  %4701 = vmatprep.subr.mxu0 0.0
  %4702 = vmatpush1.msra.mxu0 0.0
  %4703 = vmatprep.subr.mxu0 0.0
  %4704 = vmatpush1.msra.mxu0 0.0
  %4705 = vmatprep.subr.mxu0 0.0
  %4706 = vmatpush1.msra.mxu0 0.0
  %4707 = vmatprep.subr.mxu0 0.0
  %4708 = vmatpush1.msra.mxu0 0.0
  %4709 = vmatprep.subr.mxu0 0.0
  %4710 = vmatpush1.msra.mxu0 0.0
  %4711 = vmatprep.subr.mxu0 0.0
  %4712 = vmatpush1.msra.mxu0 0.0
  %4713 = vmatprep.subr.mxu0 0.0
  %4714 = vmatpush1.msra.mxu0 0.0
  %4715 = vmatprep.subr.mxu0 0.0
  %4716 = vmatpush1.msra.mxu0 0.0
  %4717 = vmatprep.subr.mxu0 0.0
  %4718 = vmatpush1.msra.mxu0 0.0
  %4719 = vmatprep.subr.mxu0 0.0
  %4720 = vmatpush1.msra.mxu0 0.0
  %4721 = vmatprep.subr.mxu0 0.0
  %4722 = vmatpush1.msra.mxu0 0.0
  %4723 = vmatprep.subr.mxu0 0.0
  %4724 = vmatpush1.msra.mxu0 0.0
  %4725 = vmatprep.subr.mxu0 0.0
  %4726 = vmatpush1.msra.mxu0 0.0
  %4727 = vmatprep.subr.mxu0 0.0
  %4728 = vmatpush1.msra.mxu0 0.0
  %4729 = vmatprep.subr.mxu0 0.0
  %4730 = vmatpush1.msra.mxu0 0.0
  %4731 = vmatprep.subr.mxu0 0.0
  %4732 = vmatpush1.msra.mxu0 0.0
  %4733 = vmatprep.mubr.f32.mxu0 0.0
  %4734 = vmatmul.mubr.f32.gmra.mrb[0].mxu0 %v4667
  %v4735 = vpop.f32.mrb[0].mxu0
  %v4736 = vadd.f32 0.0, %v4735
  %v4737 = vpop.f32.mrb[0].mxu0
  %4738 = vdwg.mxu0
  %v4739 = vadd.f32 %v4587, %v4736
  %4740 = vrot.lane.b32.xlu0 %v2979, 80
  %v4741 = vpop.permute.xlu0 %4740
  %v4744 = vsel %vm1079, %v3697, 0
  %4746 = vmatprep.subr.mxu0 0.0
  %4747 = vmatpush1.msra.mxu0 %v4741
  %4748 = vmatprep.subr.mxu0 0.0
  %4749 = vmatpush1.msra.mxu0 0.0
  %4750 = vmatprep.subr.mxu0 0.0
  %4751 = vmatpush1.msra.mxu0 0.0
  %4752 = vmatprep.subr.mxu0 0.0
  %4753 = vmatpush1.msra.mxu0 0.0
  %4754 = vmatprep.subr.mxu0 0.0
  %4755 = vmatpush1.msra.mxu0 0.0
  %4756 = vmatprep.subr.mxu0 0.0
  %4757 = vmatpush1.msra.mxu0 0.0
  %4758 = vmatprep.subr.mxu0 0.0
  %4759 = vmatpush1.msra.mxu0 0.0
  %4760 = vmatprep.subr.mxu0 0.0
  %4761 = vmatpush1.msra.mxu0 0.0
  %4762 = vmatprep.subr.mxu0 0.0
  %4763 = vmatpush1.msra.mxu0 0.0
  %4764 = vmatprep.subr.mxu0 0.0
  %4765 = vmatpush1.msra.mxu0 0.0
  %4766 = vmatprep.subr.mxu0 0.0
  %4767 = vmatpush1.msra.mxu0 0.0
  %4768 = vmatprep.subr.mxu0 0.0
  %4769 = vmatpush1.msra.mxu0 0.0
  %4770 = vmatprep.subr.mxu0 0.0
  %4771 = vmatpush1.msra.mxu0 0.0
  %4772 = vmatprep.subr.mxu0 0.0
  %4773 = vmatpush1.msra.mxu0 0.0
  %4774 = vmatprep.subr.mxu0 0.0
  %4775 = vmatpush1.msra.mxu0 0.0
  %4776 = vmatprep.subr.mxu0 0.0
  %4777 = vmatpush1.msra.mxu0 0.0
  %4778 = vmatprep.subr.mxu0 0.0
  %4779 = vmatpush1.msra.mxu0 0.0
  %4780 = vmatprep.subr.mxu0 0.0
  %4781 = vmatpush1.msra.mxu0 0.0
  %4782 = vmatprep.subr.mxu0 0.0
  %4783 = vmatpush1.msra.mxu0 0.0
  %4784 = vmatprep.subr.mxu0 0.0
  %4785 = vmatpush1.msra.mxu0 0.0
  %4786 = vmatprep.subr.mxu0 0.0
  %4787 = vmatpush1.msra.mxu0 0.0
  %4788 = vmatprep.subr.mxu0 0.0
  %4789 = vmatpush1.msra.mxu0 0.0
  %4790 = vmatprep.subr.mxu0 0.0
  %4791 = vmatpush1.msra.mxu0 0.0
  %4792 = vmatprep.subr.mxu0 0.0
  %4793 = vmatpush1.msra.mxu0 0.0
  %4794 = vmatprep.subr.mxu0 0.0
  %4795 = vmatpush1.msra.mxu0 0.0
  %4796 = vmatprep.subr.mxu0 0.0
  %4797 = vmatpush1.msra.mxu0 0.0
  %4798 = vmatprep.subr.mxu0 0.0
  %4799 = vmatpush1.msra.mxu0 0.0
  %4800 = vmatprep.subr.mxu0 0.0
  %4801 = vmatpush1.msra.mxu0 0.0
  %4802 = vmatprep.subr.mxu0 0.0
  %4803 = vmatpush1.msra.mxu0 0.0
  %4804 = vmatprep.subr.mxu0 0.0
  %4805 = vmatpush1.msra.mxu0 0.0
  %4806 = vmatprep.subr.mxu0 0.0
  %4807 = vmatpush1.msra.mxu0 0.0
  %4808 = vmatprep.subr.mxu0 0.0
  %4809 = vmatpush1.msra.mxu0 0.0
  %4810 = vmatprep.mubr.f32.mxu0 0.0
  %4811 = vmatmul.mubr.f32.gmra.mrb[0].mxu0 %v4744
  %v4812 = vpop.f32.mrb[0].mxu0
  %v4813 = vadd.f32 0.0, %v4812
  %v4814 = vpop.f32.mrb[0].mxu0
  %4815 = vdwg.mxu0
  %v4817 = vsel %vm450, %v4813, 0
  %4819 = vmatprep.subr.mxu0 0.0
  %4820 = vmatpush1.msra.mxu0 %v2725
  %4821 = vmatprep.subr.mxu0 0.0
  %4822 = vmatpush1.msra.mxu0 %v2726
  %4823 = vmatprep.subr.mxu0 0.0
  %4824 = vmatpush1.msra.mxu0 0.0
  %4825 = vmatprep.subr.mxu0 0.0
  %4826 = vmatpush1.msra.mxu0 0.0
  %4827 = vmatprep.subr.mxu0 0.0
  %4828 = vmatpush1.msra.mxu0 0.0
  %4829 = vmatprep.subr.mxu0 0.0
  %4830 = vmatpush1.msra.mxu0 0.0
  %4831 = vmatprep.subr.mxu0 0.0
  %4832 = vmatpush1.msra.mxu0 0.0
  %4833 = vmatprep.subr.mxu0 0.0
  %4834 = vmatpush1.msra.mxu0 0.0
  %4835 = vmatprep.subr.mxu0 0.0
  %4836 = vmatpush1.msra.mxu0 0.0
  %4837 = vmatprep.subr.mxu0 0.0
  %4838 = vmatpush1.msra.mxu0 0.0
  %4839 = vmatprep.subr.mxu0 0.0
  %4840 = vmatpush1.msra.mxu0 0.0
  %4841 = vmatprep.subr.mxu0 0.0
  %4842 = vmatpush1.msra.mxu0 0.0
  %4843 = vmatprep.subr.mxu0 0.0
  %4844 = vmatpush1.msra.mxu0 0.0
  %4845 = vmatprep.subr.mxu0 0.0
  %4846 = vmatpush1.msra.mxu0 0.0
  %4847 = vmatprep.subr.mxu0 0.0
  %4848 = vmatpush1.msra.mxu0 0.0
  %4849 = vmatprep.subr.mxu0 0.0
  %4850 = vmatpush1.msra.mxu0 0.0
  %4851 = vmatprep.subr.mxu0 0.0
  %4852 = vmatpush1.msra.mxu0 0.0
  %4853 = vmatprep.subr.mxu0 0.0
  %4854 = vmatpush1.msra.mxu0 0.0
  %4855 = vmatprep.subr.mxu0 0.0
  %4856 = vmatpush1.msra.mxu0 0.0
  %4857 = vmatprep.subr.mxu0 0.0
  %4858 = vmatpush1.msra.mxu0 0.0
  %4859 = vmatprep.subr.mxu0 0.0
  %4860 = vmatpush1.msra.mxu0 0.0
  %4861 = vmatprep.subr.mxu0 0.0
  %4862 = vmatpush1.msra.mxu0 0.0
  %4863 = vmatprep.subr.mxu0 0.0
  %4864 = vmatpush1.msra.mxu0 0.0
  %4865 = vmatprep.subr.mxu0 0.0
  %4866 = vmatpush1.msra.mxu0 0.0
  %4867 = vmatprep.subr.mxu0 0.0
  %4868 = vmatpush1.msra.mxu0 0.0
  %4869 = vmatprep.subr.mxu0 0.0
  %4870 = vmatpush1.msra.mxu0 0.0
  %4871 = vmatprep.subr.mxu0 0.0
  %4872 = vmatpush1.msra.mxu0 0.0
  %4873 = vmatprep.subr.mxu0 0.0
  %4874 = vmatpush1.msra.mxu0 0.0
  %4875 = vmatprep.subr.mxu0 0.0
  %4876 = vmatpush1.msra.mxu0 0.0
  %4877 = vmatprep.subr.mxu0 0.0
  %4878 = vmatpush1.msra.mxu0 0.0
  %4879 = vmatprep.subr.mxu0 0.0
  %4880 = vmatpush1.msra.mxu0 0.0
  %4881 = vmatprep.subr.mxu0 0.0
  %4882 = vmatpush1.msra.mxu0 0.0
  %4883 = vmatprep.mubr.f32.mxu0 0.0
  %4884 = vmatmul.mubr.f32.gmra.mrb[0].mxu0 %v4817
  %v4885 = vpop.f32.mrb[0].mxu0
  %v4886 = vadd.f32 0.0, %v4885
  %v4887 = vpop.f32.mrb[0].mxu0
  %4888 = vdwg.mxu0
  %v4889 = vadd.f32 %v4739, %v4886
  %s4890 = scalar_lea.vmem %s11, 1
  %v4891 = vld [vmem:[%s4890] sm:$0x1]
  %v4893 = vlaneseq
  %v4894 = vshrl.u32 %v4893, 7
  %v4895 = vsub.s32 0, %v4894
  %v4896 = vrot.slane %v4891, %v4895
  %v4898 = vadd.f32 %v4293, %v4896
  %v4899 = vadd.f32 %v4889, %v4896
  %v4900 = vadd.f32 %v2689, %v4898
  %v4901 = vadd.f32 %v2690, %v4899
  %s4902 = scalar_lea.vmem %s12, 1
  %v4903 = vld [vmem:[%s4902] sm:$0x1]
  %s4904 = scalar_lea.vmem %s13, 1
  %v4905 = vld [vmem:[%s4904] sm:$0x1]
  %v4906 = vsel %vm204, %v4900, 0.0
  %4907 = vadd.xlane.f32.xlu0 %v4906
  %v4908 = vpop.xlane.xlu0 %4907
  %v4909 = vsel %vm204, %v4901, 0.0
  %4910 = vadd.xlane.f32.xlu0 %v4909
  %v4911 = vpop.xlane.xlu0 %4910
  %v4912 = vmul.f32 %v4908, %v2379
  %v4913 = vmul.f32 %v4911, %v2379
  %v4914 = vsub.f32 %v4900, %v4912
  %v4915 = vsub.f32 %v4901, %v4913
  %v4916 = vmul.f32 %v4914, %v4914
  %v4917 = vmul.f32 %v4915, %v4915
  %v4918 = vsel %vm204, %v4916, 0.0
  %4919 = vadd.xlane.f32.xlu0 %v4918
  %v4920 = vpop.xlane.xlu0 %4919
  %v4921 = vsel %vm204, %v4917, 0.0
  %4922 = vadd.xlane.f32.xlu0 %v4921
  %v4923 = vpop.xlane.xlu0 %4922
  %v4924 = vmul.f32 %v4920, %v2379
  %v4925 = vmul.f32 %v4923, %v2379
  %v4926 = vadd.f32 %v4924, 1e-05
  %v4927 = vadd.f32 %v4925, 1e-05
  %v4928 = vrsqrt.pop %v4926
  %v4929 = vrsqrt.pop %v4927
  %v4930 = vmul.f32 %v4914, %v4928
  %v4931 = vmul.f32 %v4915, %v4929
  %v4933 = vlaneseq
  %v4934 = vshrl.u32 %v4933, 7
  %v4935 = vsub.s32 0, %v4934
  %v4936 = vrot.slane %v4903, %v4935
  %v4938 = vmul.f32 %v4930, %v4936
  %v4939 = vmul.f32 %v4931, %v4936
  %v4941 = vlaneseq
  %v4942 = vshrl.u32 %v4941, 7
  %v4943 = vsub.s32 0, %v4942
  %v4944 = vrot.slane %v4905, %v4943
  %v4946 = vadd.f32 %v4938, %v4944
  %v4947 = vadd.f32 %v4939, %v4944
  %s4948 = scalar_lea.vmem %s14, 128
  %v4949 = vld [vmem:[%s4948] sm:$0xff]
  %v4950 = vld [vmem:[%s4948 + $0x8] sm:$0xff]
  %v4951 = vld [vmem:[%s4948 + $0x10] sm:$0xff]
  %v4952 = vld [vmem:[%s4948 + $0x18] sm:$0xff]
  %v4953 = vld [vmem:[%s4948 + $0x20] sm:$0xff]
  %v4954 = vld [vmem:[%s4948 + $0x28] sm:$0xff]
  %v4955 = vld [vmem:[%s4948 + $0x30] sm:$0xff]
  %v4956 = vld [vmem:[%s4948 + $0x38] sm:$0xff]
  %v4957 = vld [vmem:[%s4948 + $0x40] sm:$0xff]
  %v4958 = vld [vmem:[%s4948 + $0x48] sm:$0xff]
  %v4959 = vld [vmem:[%s4948 + $0x50] sm:$0xff]
  %v4960 = vld [vmem:[%s4948 + $0x58] sm:$0xff]
  %v4961 = vld [vmem:[%s4948 + $0x60] sm:$0xff]
  %v4962 = vld [vmem:[%s4948 + $0x68] sm:$0xff]
  %v4963 = vld [vmem:[%s4948 + $0x70] sm:$0xff]
  %v4964 = vld [vmem:[%s4948 + $0x78] sm:$0xff]
  %s4965 = scalar_lea.vmem %s15, 2
  %v4966 = vld [vmem:[%s4965] sm:$0x3]
  %v4968 = vlaneseq
  %v4969 = vshrl.u32 %v4968, 7
  %v4970 = vsub.s32 0, %v4969
  %v4971 = vrot.slane %v4966, %v4970
  %v4972 = vlaneseq
  %v4973 = vshrl.u32 %v4972, 7
  %v4974 = vsub.s32 1, %v4973
  %v4975 = vrot.slane %v4966, %v4974
  %v4979 = vsel %vm204, %v4946, 0
  %v4982 = vsel %vm204, %v4947, 0
  %4984 = vmatprep.subr.mxu0 %v4950
  %4985 = vmatpush1.msra.mxu0 %v4949
  %4986 = vmatprep.subr.mxu0 %v4952
  %4987 = vmatpush1.msra.mxu0 %v4951
  %4988 = vmatprep.subr.mxu0 %v4954
  %4989 = vmatpush1.msra.mxu0 %v4953
  %4990 = vmatprep.subr.mxu0 %v4956
  %4991 = vmatpush1.msra.mxu0 %v4955
  %4992 = vmatprep.subr.mxu0 %v4958
  %4993 = vmatpush1.msra.mxu0 %v4957
  %4994 = vmatprep.subr.mxu0 %v4960
  %4995 = vmatpush1.msra.mxu0 %v4959
  %4996 = vmatprep.subr.mxu0 %v4962
  %4997 = vmatpush1.msra.mxu0 %v4961
  %4998 = vmatprep.subr.mxu0 %v4964
  %4999 = vmatpush1.msra.mxu0 %v4963
  %5000 = vmatprep.subr.mxu0 0.0
  %5001 = vmatpush1.msra.mxu0 0.0
  %5002 = vmatprep.subr.mxu0 0.0
  %5003 = vmatpush1.msra.mxu0 0.0
  %5004 = vmatprep.subr.mxu0 0.0
  %5005 = vmatpush1.msra.mxu0 0.0
  %5006 = vmatprep.subr.mxu0 0.0
  %5007 = vmatpush1.msra.mxu0 0.0
  %5008 = vmatprep.subr.mxu0 0.0
  %5009 = vmatpush1.msra.mxu0 0.0
  %5010 = vmatprep.subr.mxu0 0.0
  %5011 = vmatpush1.msra.mxu0 0.0
  %5012 = vmatprep.subr.mxu0 0.0
  %5013 = vmatpush1.msra.mxu0 0.0
  %5014 = vmatprep.subr.mxu0 0.0
  %5015 = vmatpush1.msra.mxu0 0.0
  %5016 = vmatprep.subr.mxu0 0.0
  %5017 = vmatpush1.msra.mxu0 0.0
  %5018 = vmatprep.subr.mxu0 0.0
  %5019 = vmatpush1.msra.mxu0 0.0
  %5020 = vmatprep.subr.mxu0 0.0
  %5021 = vmatpush1.msra.mxu0 0.0
  %5022 = vmatprep.subr.mxu0 0.0
  %5023 = vmatpush1.msra.mxu0 0.0
  %5024 = vmatprep.subr.mxu0 0.0
  %5025 = vmatpush1.msra.mxu0 0.0
  %5026 = vmatprep.subr.mxu0 0.0
  %5027 = vmatpush1.msra.mxu0 0.0
  %5028 = vmatprep.subr.mxu0 0.0
  %5029 = vmatpush1.msra.mxu0 0.0
  %5030 = vmatprep.subr.mxu0 0.0
  %5031 = vmatpush1.msra.mxu0 0.0
  %5032 = vmatprep.subr.mxu0 0.0
  %5033 = vmatpush1.msra.mxu0 0.0
  %5034 = vmatprep.subr.mxu0 0.0
  %5035 = vmatpush1.msra.mxu0 0.0
  %5036 = vmatprep.subr.mxu0 0.0
  %5037 = vmatpush1.msra.mxu0 0.0
  %5038 = vmatprep.subr.mxu0 0.0
  %5039 = vmatpush1.msra.mxu0 0.0
  %5040 = vmatprep.subr.mxu0 0.0
  %5041 = vmatpush1.msra.mxu0 0.0
  %5042 = vmatprep.subr.mxu0 0.0
  %5043 = vmatpush1.msra.mxu0 0.0
  %5044 = vmatprep.subr.mxu0 0.0
  %5045 = vmatpush1.msra.mxu0 0.0
  %5046 = vmatprep.subr.mxu0 0.0
  %5047 = vmatpush1.msra.mxu0 0.0
  %5048 = vmatprep.mubr.f32.mxu0 0.0
  %5049 = vmatmul.mubr.f32.gmra.mrb[0].mxu0 %v4979
  %v5050 = vpop.f32.mrb[0].mxu0
  %v5051 = vadd.f32 %v4971, %v5050
  %v5052 = vpop.f32.mrb[0].mxu0
  %v5053 = vadd.f32 %v4975, %v5052
  %5054 = vmatprep.mubr.f32.mxu0 0.0
  %5055 = vmatmul.mubr.f32.gmra.mrb[0].mxu0 %v4982
  %v5056 = vpop.f32.mrb[0].mxu0
  %v5057 = vadd.f32 %v4971, %v5056
  %v5058 = vpop.f32.mrb[0].mxu0
  %v5059 = vadd.f32 %v4975, %v5058
  %5060 = vdwg.mxu0
  %v5061 = vmax.f32 %v5051, 0.0
  %v5062 = vmax.f32 %v5053, 0.0
  %v5063 = vmax.f32 %v5057, 0.0
  %v5064 = vmax.f32 %v5059, 0.0
  %s5065 = scalar_lea.vmem %s16, 256
  %v5066 = vld [vmem:[%s5065] sm:$0xff]
  %v5067 = vld [vmem:[%s5065 + $0x8] sm:$0xff]
  %v5068 = vld [vmem:[%s5065 + $0x10] sm:$0xff]
  %v5069 = vld [vmem:[%s5065 + $0x18] sm:$0xff]
  %v5070 = vld [vmem:[%s5065 + $0x20] sm:$0xff]
  %v5071 = vld [vmem:[%s5065 + $0x28] sm:$0xff]
  %v5072 = vld [vmem:[%s5065 + $0x30] sm:$0xff]
  %v5073 = vld [vmem:[%s5065 + $0x38] sm:$0xff]
  %v5074 = vld [vmem:[%s5065 + $0x40] sm:$0xff]
  %v5075 = vld [vmem:[%s5065 + $0x48] sm:$0xff]
  %v5076 = vld [vmem:[%s5065 + $0x50] sm:$0xff]
  %v5077 = vld [vmem:[%s5065 + $0x58] sm:$0xff]
  %v5078 = vld [vmem:[%s5065 + $0x60] sm:$0xff]
  %v5079 = vld [vmem:[%s5065 + $0x68] sm:$0xff]
  %v5080 = vld [vmem:[%s5065 + $0x70] sm:$0xff]
  %v5081 = vld [vmem:[%s5065 + $0x78] sm:$0xff]
  %v5082 = vld [vmem:[%s5065 + $0x80] sm:$0xff]
  %v5083 = vld [vmem:[%s5065 + $0x88] sm:$0xff]
  %v5084 = vld [vmem:[%s5065 + $0x90] sm:$0xff]
  %v5085 = vld [vmem:[%s5065 + $0x98] sm:$0xff]
  %v5086 = vld [vmem:[%s5065 + $0xa0] sm:$0xff]
  %v5087 = vld [vmem:[%s5065 + $0xa8] sm:$0xff]
  %v5088 = vld [vmem:[%s5065 + $0xb0] sm:$0xff]
  %v5089 = vld [vmem:[%s5065 + $0xb8] sm:$0xff]
  %v5090 = vld [vmem:[%s5065 + $0xc0] sm:$0xff]
  %v5091 = vld [vmem:[%s5065 + $0xc8] sm:$0xff]
  %v5092 = vld [vmem:[%s5065 + $0xd0] sm:$0xff]
  %v5093 = vld [vmem:[%s5065 + $0xd8] sm:$0xff]
  %v5094 = vld [vmem:[%s5065 + $0xe0] sm:$0xff]
  %v5095 = vld [vmem:[%s5065 + $0xe8] sm:$0xff]
  %v5096 = vld [vmem:[%s5065 + $0xf0] sm:$0xff]
  %v5097 = vld [vmem:[%s5065 + $0xf8] sm:$0xff]
  %s5098 = scalar_lea.vmem %s17, 1
  %v5099 = vld [vmem:[%s5098] sm:$0x1]
  %v5101 = vlaneseq
  %v5102 = vshrl.u32 %v5101, 7
  %v5103 = vsub.s32 0, %v5102
  %v5104 = vrot.slane %v5099, %v5103
  %5106 = vmatprep.subr.mxu0 0.0
  %5107 = vmatpush1.msra.mxu0 %v5066
  %5108 = vmatprep.subr.mxu0 0.0
  %5109 = vmatpush1.msra.mxu0 %v5067
  %5110 = vmatprep.subr.mxu0 0.0
  %5111 = vmatpush1.msra.mxu0 %v5068
  %5112 = vmatprep.subr.mxu0 0.0
  %5113 = vmatpush1.msra.mxu0 %v5069
  %5114 = vmatprep.subr.mxu0 0.0
  %5115 = vmatpush1.msra.mxu0 %v5070
  %5116 = vmatprep.subr.mxu0 0.0
  %5117 = vmatpush1.msra.mxu0 %v5071
  %5118 = vmatprep.subr.mxu0 0.0
  %5119 = vmatpush1.msra.mxu0 %v5072
  %5120 = vmatprep.subr.mxu0 0.0
  %5121 = vmatpush1.msra.mxu0 %v5073
  %5122 = vmatprep.subr.mxu0 0.0
  %5123 = vmatpush1.msra.mxu0 %v5074
  %5124 = vmatprep.subr.mxu0 0.0
  %5125 = vmatpush1.msra.mxu0 %v5075
  %5126 = vmatprep.subr.mxu0 0.0
  %5127 = vmatpush1.msra.mxu0 %v5076
  %5128 = vmatprep.subr.mxu0 0.0
  %5129 = vmatpush1.msra.mxu0 %v5077
  %5130 = vmatprep.subr.mxu0 0.0
  %5131 = vmatpush1.msra.mxu0 %v5078
  %5132 = vmatprep.subr.mxu0 0.0
  %5133 = vmatpush1.msra.mxu0 %v5079
  %5134 = vmatprep.subr.mxu0 0.0
  %5135 = vmatpush1.msra.mxu0 %v5080
  %5136 = vmatprep.subr.mxu0 0.0
  %5137 = vmatpush1.msra.mxu0 %v5081
  %5138 = vmatprep.subr.mxu0 0.0
  %5139 = vmatpush1.msra.mxu0 %v5082
  %5140 = vmatprep.subr.mxu0 0.0
  %5141 = vmatpush1.msra.mxu0 %v5083
  %5142 = vmatprep.subr.mxu0 0.0
  %5143 = vmatpush1.msra.mxu0 %v5084
  %5144 = vmatprep.subr.mxu0 0.0
  %5145 = vmatpush1.msra.mxu0 %v5085
  %5146 = vmatprep.subr.mxu0 0.0
  %5147 = vmatpush1.msra.mxu0 %v5086
  %5148 = vmatprep.subr.mxu0 0.0
  %5149 = vmatpush1.msra.mxu0 %v5087
  %5150 = vmatprep.subr.mxu0 0.0
  %5151 = vmatpush1.msra.mxu0 %v5088
  %5152 = vmatprep.subr.mxu0 0.0
  %5153 = vmatpush1.msra.mxu0 %v5089
  %5154 = vmatprep.subr.mxu0 0.0
  %5155 = vmatpush1.msra.mxu0 %v5090
  %5156 = vmatprep.subr.mxu0 0.0
  %5157 = vmatpush1.msra.mxu0 %v5091
  %5158 = vmatprep.subr.mxu0 0.0
  %5159 = vmatpush1.msra.mxu0 %v5092
  %5160 = vmatprep.subr.mxu0 0.0
  %5161 = vmatpush1.msra.mxu0 %v5093
  %5162 = vmatprep.subr.mxu0 0.0
  %5163 = vmatpush1.msra.mxu0 %v5094
  %5164 = vmatprep.subr.mxu0 0.0
  %5165 = vmatpush1.msra.mxu0 %v5095
  %5166 = vmatprep.subr.mxu0 0.0
  %5167 = vmatpush1.msra.mxu0 %v5096
  %5168 = vmatprep.subr.mxu0 0.0
  %5169 = vmatpush1.msra.mxu0 %v5097
  %5170 = vmatprep.mubr.f32.mxu0 %v5062
  %5171 = vmatmul.mubr.f32.gmra.mrb[0].mxu0 %v5061
  %v5172 = vpop.f32.mrb[0].mxu0
  %v5173 = vadd.f32 %v5104, %v5172
  %v5174 = vpop.f32.mrb[0].mxu0
  %5175 = vmatprep.mubr.f32.mxu0 %v5064
  %5176 = vmatmul.mubr.f32.gmra.mrb[0].mxu0 %v5063
  %v5177 = vpop.f32.mrb[0].mxu0
  %v5178 = vadd.f32 %v5104, %v5177
  %v5179 = vpop.f32.mrb[0].mxu0
  %5180 = vdwg.mxu0
  %v5181 = vadd.f32 %v4946, %v5173
  %v5182 = vadd.f32 %v4947, %v5178
  %s5183 = scalar_lea.vmem %s18, 1
  %v5184 = vld [vmem:[%s5183] sm:$0x1]
  %s5185 = scalar_lea.vmem %s19, 1
  %v5186 = vld [vmem:[%s5185] sm:$0x1]
  %v5187 = vsel %vm204, %v5181, 0.0
  %5188 = vadd.xlane.f32.xlu0 %v5187
  %v5189 = vpop.xlane.xlu0 %5188
  %v5190 = vsel %vm204, %v5182, 0.0
  %5191 = vadd.xlane.f32.xlu0 %v5190
  %v5192 = vpop.xlane.xlu0 %5191
  %v5193 = vmul.f32 %v5189, %v2379
  %v5194 = vmul.f32 %v5192, %v2379
  %v5195 = vsub.f32 %v5181, %v5193
  %v5196 = vsub.f32 %v5182, %v5194
  %v5197 = vmul.f32 %v5195, %v5195
  %v5198 = vmul.f32 %v5196, %v5196
  %v5199 = vsel %vm204, %v5197, 0.0
  %5200 = vadd.xlane.f32.xlu0 %v5199
  %v5201 = vpop.xlane.xlu0 %5200
  %v5202 = vsel %vm204, %v5198, 0.0
  %5203 = vadd.xlane.f32.xlu0 %v5202
  %v5204 = vpop.xlane.xlu0 %5203
  %v5205 = vmul.f32 %v5201, %v2379
  %v5206 = vmul.f32 %v5204, %v2379
  %v5207 = vadd.f32 %v5205, 1e-05
  %v5208 = vadd.f32 %v5206, 1e-05
  %v5209 = vrsqrt.pop %v5207
  %v5210 = vrsqrt.pop %v5208
  %v5211 = vmul.f32 %v5195, %v5209
  %v5212 = vmul.f32 %v5196, %v5210
  %v5214 = vlaneseq
  %v5215 = vshrl.u32 %v5214, 7
  %v5216 = vsub.s32 0, %v5215
  %v5217 = vrot.slane %v5184, %v5216
  %v5219 = vmul.f32 %v5211, %v5217
  %v5220 = vmul.f32 %v5212, %v5217
  %v5222 = vlaneseq
  %v5223 = vshrl.u32 %v5222, 7
  %v5224 = vsub.s32 0, %v5223
  %v5225 = vrot.slane %v5186, %v5224
  %v5227 = vadd.f32 %v5219, %v5225
  %v5228 = vadd.f32 %v5220, %v5225
  %v5230 = vrot.slane %v5227, 7
  %v5233 = vrot.slane %v5228, 6
  %vm5235 = vcmask 1040384
  %v5236 = vsel %vm5235, %v5230, %v5233
  %vm5237 = vcmask 517120
  %5238 = vst.msk [vmem:[%s20] sm:$0x3] %vm5237, %v5236
  // Predicated region
  $region82: #{transformer_forward.1} parent=0 // pred_check
    _
  $region83: #{transformer_forward.1} parent=0 // pred_check_branch
    %5240 = sbr.rel (0) target = $region85
  $region84: #{transformer_forward.1} parent=0 // pred_region
    _
  $region85: #{transformer_forward.1} parent=0 // pred_fallthru
    _
  // Predicated region
  $region86: #{transformer_forward.1} parent=0 // pred_check
    _
  $region87: #{transformer_forward.1} parent=0 // pred_check_branch
    %5242 = sbr.rel (0) target = $region89
  $region88: #{transformer_forward.1} parent=0 // pred_region
    _
  $region89: #{transformer_forward.1} parent=0 // pred_fallthru
    _

</llo_original>
